<compile_context>
chip_gen: v6e
topology: v6e:2x2x1
jax: 0.10.0
libtpu: 0.0.40
codegen_flags: <defaults>
</compile_context>

<pallas_src>
import functools

import jax
import jax.numpy as jnp
from jax.experimental import pallas as pl
from jax.experimental.pallas import tpu as pltpu


# ------------------------------ fused kernel -------------------------------- #

def _decoder_layer_kernel(*refs, nhead, pq, pk, cross_only):
    if cross_only:
        (q_ref, k_ref,
         ca_wq, ca_bq, ca_wkv, ca_bkv, ca_wo, ca_bo, n2g, n2b,
         w1, b1, w2, b2, n3g, n3b,
         o_ref) = refs
    else:
        (q_ref, k_ref,
         sa_wqkv, sa_bqkv, sa_wo, sa_bo, n1g, n1b,
         ca_wq, ca_bq, ca_wkv, ca_bkv, ca_wo, ca_bo, n2g, n2b,
         w1, b1, w2, b2, n3g, n3b,
         o_ref) = refs

    bt = q_ref.shape[0]
    e = q_ref.shape[-1]
    hd = e // nhead
    cdt = jnp.bfloat16          # MXU operand dtype (f32 accumulation)

    # Flatten the batch block so projection / FFN GEMMs fill the MXU M-dim.
    x = q_ref[...].reshape(bt * pq, e).astype(jnp.float32)      # (Bt*Pq, E)
    kin = k_ref[...].reshape(bt * pk, e).astype(jnp.float32)    # (Bt*Pk, E)

    def dot(a, b):
        return jnp.dot(a.astype(cdt), b.astype(cdt),
                       preferred_element_type=jnp.float32)

    def mha(q_all, k_all, v_all, s_len, wo_ref, bo_ref):
        # q_all: (Bt*Pq, E) f32; k_all/v_all: (Bt*s_len, E) f32.
        # NOTE: 1/sqrt(head_dim) is already folded into the Q projection weights.
        q3 = q_all.reshape(bt, pq, e).astype(cdt)
        k3 = k_all.reshape(bt, s_len, e).astype(cdt)
        v3 = v_all.reshape(bt, s_len, e).astype(cdt)
        ctxs = []
        for h in range(nhead):                       # static unroll (nhead small)
            lo = h * hd
            qh = q3[:, :, lo:lo + hd]
            kh = k3[:, :, lo:lo + hd]
            vh = v3[:, :, lo:lo + hd]
            # scores (Bt, Pq, S) via batched NT dot (no materialized transpose)
            s = jnp.einsum("bqd,bkd->bqk", qh, kh,
                           preferred_element_type=jnp.float32)
            s = s - jnp.max(s, axis=-1, keepdims=True)
            p = jnp.exp(s)
            l = jnp.sum(p, axis=-1, keepdims=True)
            ctx = jnp.einsum("bqk,bkd->bqd", p.astype(cdt), vh,
                             preferred_element_type=jnp.float32)
            # normalize AFTER PV: Pq*hd multiplies instead of Pq*S per head
            ctx = ctx * pl.reciprocal(l, approx=True)
            ctxs.append(ctx)
        # single full-K out_proj GEMM on the lane-concatenated head contexts
        ctx_all = jnp.concatenate(ctxs, axis=-1).reshape(bt * pq, e)
        return dot(ctx_all, wo_ref[...]) + bo_ref[...]

    def add_ln(x0, delta, g_ref, b_ref):
        # LayerNorm(x0 + delta), eps=1e-5, biased variance (matches nn.LayerNorm).
        y = x0 + delta
        mean = jnp.mean(y, axis=-1, keepdims=True)
        var = jnp.mean(jnp.square(y - mean), axis=-1, keepdims=True)
        return (y - mean) * jax.lax.rsqrt(var + 1e-5) * g_ref[...] + b_ref[...]

    if not cross_only:
        # fused QKV projection: (Bt*Pq, E) @ (E, 3E)
        qkv = dot(x, sa_wqkv[...]) + sa_bqkv[...]
        a = mha(qkv[:, :e], qkv[:, e:2 * e], qkv[:, 2 * e:], pq, sa_wo, sa_bo)
        x = add_ln(x, a, n1g, n1b)

    # cross attention: q from query; fused K/V projection: (Bt*Pk, E) @ (E, 2E)
    # TODO(synk): for BEV-sized Pk, stream K/V in chunks (second grid axis or
    # pltpu.emit_pipeline with online softmax) instead of holding (Pk, 2E) resident.
    qc = dot(x, ca_wq[...]) + ca_bq[...]
    kv = dot(kin, ca_wkv[...]) + ca_bkv[...]
    a = mha(qc, kv[:, :e], kv[:, e:], pk, ca_wo, ca_bo)
    x = add_ln(x, a, n2g, n2b)

    # FFN: linear2(relu(linear1(x)))  (dropouts are identity in eval mode)
    h1 = jnp.maximum(dot(x, w1[...]) + b1[...], 0.0)
    f = dot(h1, w2[...]) + b2[...]
    x = add_ln(x, f, n3g, n3b)

    o_ref[...] = x.reshape(bt, pq, e).astype(o_ref.dtype)


# --------------------------- one-time weight prep ---------------------------- #

def prepare_params(params, *, nhead, cross_only=False, compute_dtype=jnp.bfloat16):
    """Hoisted out of the per-call path: pre-transpose weights to (Din, Dout),
    cast GEMM weights to bf16, fold the 1/sqrt(head_dim) scale into the Q
    projection, and reshape biases/LN params to (1, D) rows."""
    f32 = jnp.float32
    ca = params["cross_attn"]
    e = ca["out_proj_weight"].shape[0]
    scale = float(e // nhead) ** -0.5

    def row(v):
        return jnp.asarray(v, f32).reshape(1, -1)

    def wT(w):
        return jnp.asarray(w, f32).T.astype(compute_dtype)

    prepped = []
    if not cross_only:
        sa = params["self_attn"]
        wqkv = jnp.asarray(sa["in_proj_weight"], f32)           # (3E, E)
        bqkv = jnp.asarray(sa["in_proj_bias"], f32)             # (3E,)
        wqkv = wqkv.at[:e].multiply(scale)                      # fold scale into Q rows
        bqkv = bqkv.at[:e].multiply(scale)
        prepped += [
            wqkv.T.astype(compute_dtype), row(bqkv),
            wT(sa["out_proj_weight"]), row(sa["out_proj_bias"]),
            row(params["norm1"]["g"]), row(params["norm1"]["b"]),
        ]
    wq = jnp.asarray(ca["in_proj_weight"][:e], f32) * scale
    bq = jnp.asarray(ca["in_proj_bias"][:e], f32) * scale
    prepped += [
        wq.T.astype(compute_dtype), row(bq),
        wT(ca["in_proj_weight"][e:]), row(ca["in_proj_bias"][e:]),
        wT(ca["out_proj_weight"]), row(ca["out_proj_bias"]),
        row(params["norm2"]["g"]), row(params["norm2"]["b"]),
        wT(params["linear1_w"]), row(params["linear1_b"]),
        wT(params["linear2_w"]), row(params["linear2_b"]),
        row(params["norm3"]["g"]), row(params["norm3"]["b"]),
    ]
    return tuple(prepped)


# --------------------------------- wrapper ---------------------------------- #

def _pick_batch_block(b, pq):
    # Fill >=128 MXU rows per grid step when the batch allows ...
    bt = min(b, max(1, pl.cdiv(128, max(pq, 1))))
    # ... but keep >=2 grid steps so v7x megacore can shard the batch axis.
    if b >= 2 and bt >= b:
        bt = pl.cdiv(b, 2)
    return bt


def _cost_estimate(b, pq, pk, e, f, nhead, cross_only):
    mm = 0
    if not cross_only:
        mm += pq * e * 3 * e + 2 * pq * pq * e + pq * e * e
    mm += pq * e * e + pk * e * 2 * e + 2 * pq * pk * e + pq * e * e + 2 * pq * e * f
    flops = 2 * b * mm
    transcendentals = b * nhead * pq * (pk + (0 if cross_only else pq))
    attn_w = 3 * e * e + 3 * e + e * e + e + 2 * e
    weight_elems = (0 if cross_only else attn_w) + attn_w + (2 * e * f + f + e + 2 * e)
    bytes_accessed = 4 * b * (2 * pq * e + pk * e) + 2 * weight_elems
    return pl.CostEstimate(flops=flops, transcendentals=transcendentals,
                           bytes_accessed=bytes_accessed)


@functools.partial(jax.jit, static_argnames=("nhead", "cross_only"))
def transformer_decoder_layer(query, key, prepped, *, nhead,
                              query_pos=None, key_pos=None, cross_only=False):
    """query: (B, C, Pq), key: (B, C, Pk), prepped: prepare_params(...) -> (B, C, Pq)."""
    # TODO(synk): self_posembed / cross_posembed are None in this config, so
    # query_pos / key_pos are unused (exactly as in the PyTorch forward).
    # TODO(synk): attn_mask / key_padding_mask not implemented (None in this config).
    del query_pos, key_pos

    b, e, pq = query.shape
    pk = key.shape[2]
    f = prepped[-6].shape[1]      # linear1_w.T: (E, F)

    # boundary layout change only: (B, C, P) -> (B, P, C)
    q = query.transpose(0, 2, 1)
    k = key.transpose(0, 2, 1)

    bt = _pick_batch_block(b, pq)
    b_pad = pl.cdiv(b, bt) * bt
    if b_pad != b:
        q = jnp.pad(q, ((0, b_pad - b), (0, 0), (0, 0)))
        k = jnp.pad(k, ((0, b_pad - b), (0, 0), (0, 0)))

    def _resident(t):             # full-array block, constant index -> stays in VMEM
        # TODO(synk): optionally add pipeline_mode=pl.Buffered(1) to single-buffer
        # the constant weight blocks on VMEM-tight v7x configs.
        return pl.BlockSpec(t.shape, lambda i: (0, 0))

    in_specs = [
        pl.BlockSpec((bt, pq, e), lambda i: (i, 0, 0)),
        pl.BlockSpec((bt, pk, e), lambda i: (i, 0, 0)),
    ] + [_resident(t) for t in prepped]

    out = pl.pallas_call(
        functools.partial(_decoder_layer_kernel, nhead=nhead, pq=pq, pk=pk,
                          cross_only=cross_only),
        grid=(b_pad // bt,),
        in_specs=in_specs,
        out_specs=pl.BlockSpec((bt, pq, e), lambda i: (i, 0, 0)),
        out_shape=jax.ShapeDtypeStruct((b_pad, pq, e), query.dtype),
        compiler_params=pltpu.CompilerParams(
            dimension_semantics=("parallel",),        # v7x: shard batch over 2 TCs
            vmem_limit_bytes=48 * 1024 * 1024,        # leave headroom on v7x (64 MiB/TC)
        ),
        cost_estimate=_cost_estimate(b_pad, pq, pk, e, f, nhead, cross_only),
    )(q, k, *prepped)

    return out[:b].transpose(0, 2, 1)     # (B, C, Pq)


# --------------------------- pure-JAX reference ------------------------------ #

def _reference(query, key, params, nhead, cross_only=False):
    q = jnp.transpose(query, (2, 0, 1)).astype(jnp.float32)   # (Pq, B, C)
    k = jnp.transpose(key, (2, 0, 1)).astype(jnp.float32)     # (Pk, B, C)
    e = q.shape[-1]
    hd = e // nhead

    def mha(q_in, k_in, v_in, p):
        l, bsz, _ = q_in.shape
        s = k_in.shape[0]
        wq, wk, wv = jnp.split(p["in_proj_weight"], 3, axis=0)
        bq, bk, bv = jnp.split(p["in_proj_bias"], 3)
        qq = (q_in @ wq.T + bq) * (float(hd) ** -0.5)
        kk = k_in @ wk.T + bk
        vv = v_in @ wv.T + bv
        qq = qq.reshape(l, bsz * nhead, hd).transpose(1, 0, 2)
        kk = kk.reshape(s, bsz * nhead, hd).transpose(1, 0, 2)
        vv = vv.reshape(s, bsz * nhead, hd).transpose(1, 0, 2)
        att = jax.nn.softmax(jnp.einsum("bld,bsd->bls", qq, kk), axis=-1)
        o = jnp.einsum("bls,bsd->bld", att, vv)
        o = o.transpose(1, 0, 2).reshape(l, bsz, e)
        return o @ p["out_proj_weight"].T + p["out_proj_bias"]

    def ln(x, pn):
        m = jnp.mean(x, -1, keepdims=True)
        v = jnp.mean(jnp.square(x - m), -1, keepdims=True)
        return (x - m) * jax.lax.rsqrt(v + 1e-5) * pn["g"] + pn["b"]

    if not cross_only:
        q = ln(q + mha(q, q, q, params["self_attn"]), params["norm1"])
    q = ln(q + mha(q, k, k, params["cross_attn"]), params["norm2"])
    h = jnp.maximum(q @ params["linear1_w"].T + params["linear1_b"], 0.0)
    q = ln(q + (h @ params["linear2_w"].T + params["linear2_b"]), params["norm3"])
    return jnp.transpose(q, (1, 2, 0))


# ------------------------------ param init ---------------------------------- #

def _xavier_uniform(key, shape):
    fan_out, fan_in = shape
    bound = (6.0 / (fan_in + fan_out)) ** 0.5
    return jax.random.uniform(key, shape, jnp.float32, -bound, bound)


def init_params(key, d_model, dim_feedforward):
    ks = jax.random.split(key, 8)

    def attn_params(k1, k2):
        return {
            "in_proj_weight": _xavier_uniform(k1, (3 * d_model, d_model)),
            "in_proj_bias": jnp.zeros((3 * d_model,), jnp.float32),
            "out_proj_weight": _xavier_uniform(k2, (d_model, d_model)),
            "out_proj_bias": jnp.zeros((d_model,), jnp.float32),
        }

    ln = lambda: {"g": jnp.ones((d_model,), jnp.float32),
                  "b": jnp.zeros((d_model,), jnp.float32)}

    return {
        "self_attn": attn_params(ks[0], ks[1]),
        "cross_attn": attn_params(ks[2], ks[3]),
        "linear1_w": _xavier_uniform(ks[4], (dim_feedforward, d_model)),
        "linear1_b": jax.random.uniform(ks[5], (dim_feedforward,), jnp.float32, -0.1, 0.1),
        "linear2_w": _xavier_uniform(ks[6], (d_model, dim_feedforward)),
        "linear2_b": jax.random.uniform(ks[7], (d_model,), jnp.float32, -0.1, 0.1),
        "norm1": ln(), "norm2": ln(), "norm3": ln(),
    }


# ---------------------------------- main ------------------------------------- #

if __name__ == "__main__":
    B, d_model, nhead, dim_ff = 2, 32, 4, 64
    Pq, Pk = 8, 16

    root = jax.random.PRNGKey(0)
    kq, kk, kqp, kkp, kparam = jax.random.split(root, 5)

    query = jax.random.normal(kq, (B, d_model, Pq), jnp.float32)     # B C Pq
    key_f = jax.random.normal(kk, (B, d_model, Pk), jnp.float32)     # B C Pk
    query_pos = jax.random.normal(kqp, (B, Pq, 3), jnp.float32)      # unused (posembed=None)
    key_pos = jax.random.normal(kkp, (B, Pk, 3), jnp.float32)        # unused (posembed=None)

    params = init_params(kparam, d_model, dim_ff)
    prepped = prepare_params(params, nhead=nhead)    # one-time weight prep (hoisted)

    out = transformer_decoder_layer(query, key_f, prepped, nhead=nhead,
                                    query_pos=query_pos, key_pos=key_pos)
    out = jax.block_until_ready(out)
    assert out.shape == (B, d_model, Pq), out.shape
    assert bool(jnp.all(jnp.isfinite(out)))

    ref = _reference(query, key_f, params, nhead)
    max_diff = float(jnp.max(jnp.abs(out - ref)))
    # bf16 MXU operands + approx softmax reciprocal => loosened vs f32 reference
    assert max_diff < 5e-2, f"max |kernel - reference| = {max_diff}"

    print("KERNEL_OK")
</pallas_src>

<mosaic_0001>
module attributes {stable_mosaic.version = 11 : i64} {
  func.func @_decoder_layer_kernel(%arg0: i32, %arg1: memref<1x8x32xf32, #tpu.memory_space<vmem>>, %arg2: memref<1x16x32xf32, #tpu.memory_space<vmem>>, %arg3: memref<32x96xbf16, #tpu.memory_space<vmem>>, %arg4: memref<1x96xf32, #tpu.memory_space<vmem>>, %arg5: memref<32x32xbf16, #tpu.memory_space<vmem>>, %arg6: memref<1x32xf32, #tpu.memory_space<vmem>>, %arg7: memref<1x32xf32, #tpu.memory_space<vmem>>, %arg8: memref<1x32xf32, #tpu.memory_space<vmem>>, %arg9: memref<32x32xbf16, #tpu.memory_space<vmem>>, %arg10: memref<1x32xf32, #tpu.memory_space<vmem>>, %arg11: memref<32x64xbf16, #tpu.memory_space<vmem>>, %arg12: memref<1x64xf32, #tpu.memory_space<vmem>>, %arg13: memref<32x32xbf16, #tpu.memory_space<vmem>>, %arg14: memref<1x32xf32, #tpu.memory_space<vmem>>, %arg15: memref<1x32xf32, #tpu.memory_space<vmem>>, %arg16: memref<1x32xf32, #tpu.memory_space<vmem>>, %arg17: memref<32x64xbf16, #tpu.memory_space<vmem>>, %arg18: memref<1x64xf32, #tpu.memory_space<vmem>>, %arg19: memref<64x32xbf16, #tpu.memory_space<vmem>>, %arg20: memref<1x32xf32, #tpu.memory_space<vmem>>, %arg21: memref<1x32xf32, #tpu.memory_space<vmem>>, %arg22: memref<1x32xf32, #tpu.memory_space<vmem>>, %arg23: memref<1x8x32xf32, #tpu.memory_space<vmem>>) attributes {dimension_semantics = [#tpu.dimension_semantics<parallel>], iteration_bounds = array<i64: 2>, scalar_prefetch = 0 : i64, scratch_operands = 0 : i64, tpu.core_type = #tpu.core_type<tc>, window_params = [{transform_indices = @transform_0, window_bounds = array<i64: 1, 8, 32>}, {transform_indices = @transform_1, window_bounds = array<i64: 1, 16, 32>}, {pipeline_mode = #tpu.pipeline_mode<synchronous>, transform_indices = @transform_2, window_bounds = array<i64: 32, 96>}, {pipeline_mode = #tpu.pipeline_mode<synchronous>, transform_indices = @transform_3, window_bounds = array<i64: 1, 96>}, {pipeline_mode = #tpu.pipeline_mode<synchronous>, transform_indices = @transform_4, window_bounds = array<i64: 32, 32>}, {pipeline_mode = #tpu.pipeline_mode<synchronous>, transform_indices = @transform_5, window_bounds = array<i64: 1, 32>}, {pipeline_mode = #tpu.pipeline_mode<synchronous>, transform_indices = @transform_6, window_bounds = array<i64: 1, 32>}, {pipeline_mode = #tpu.pipeline_mode<synchronous>, transform_indices = @transform_7, window_bounds = array<i64: 1, 32>}, {pipeline_mode = #tpu.pipeline_mode<synchronous>, transform_indices = @transform_8, window_bounds = array<i64: 32, 32>}, {pipeline_mode = #tpu.pipeline_mode<synchronous>, transform_indices = @transform_9, window_bounds = array<i64: 1, 32>}, {pipeline_mode = #tpu.pipeline_mode<synchronous>, transform_indices = @transform_10, window_bounds = array<i64: 32, 64>}, {pipeline_mode = #tpu.pipeline_mode<synchronous>, transform_indices = @transform_11, window_bounds = array<i64: 1, 64>}, {pipeline_mode = #tpu.pipeline_mode<synchronous>, transform_indices = @transform_12, window_bounds = array<i64: 32, 32>}, {pipeline_mode = #tpu.pipeline_mode<synchronous>, transform_indices = @transform_13, window_bounds = array<i64: 1, 32>}, {pipeline_mode = #tpu.pipeline_mode<synchronous>, transform_indices = @transform_14, window_bounds = array<i64: 1, 32>}, {pipeline_mode = #tpu.pipeline_mode<synchronous>, transform_indices = @transform_15, window_bounds = array<i64: 1, 32>}, {pipeline_mode = #tpu.pipeline_mode<synchronous>, transform_indices = @transform_16, window_bounds = array<i64: 32, 64>}, {pipeline_mode = #tpu.pipeline_mode<synchronous>, transform_indices = @transform_17, window_bounds = array<i64: 1, 64>}, {pipeline_mode = #tpu.pipeline_mode<synchronous>, transform_indices = @transform_18, window_bounds = array<i64: 64, 32>}, {pipeline_mode = #tpu.pipeline_mode<synchronous>, transform_indices = @transform_19, window_bounds = array<i64: 1, 32>}, {pipeline_mode = #tpu.pipeline_mode<synchronous>, transform_indices = @transform_20, window_bounds = array<i64: 1, 32>}, {pipeline_mode = #tpu.pipeline_mode<synchronous>, transform_indices = @transform_21, window_bounds = array<i64: 1, 32>}, {transform_indices = @transform_22, window_bounds = array<i64: 1, 8, 32>}]} {
    %c0 = arith.constant 0 : index
    %c0_0 = arith.constant 0 : index
    %c0_1 = arith.constant 0 : index
    %0 = vector.load %arg1[%c0, %c0_0, %c0_1] : memref<1x8x32xf32, #tpu.memory_space<vmem>>, vector<1x8x32xf32>
    %1 = vector.shape_cast %0 : vector<1x8x32xf32> to vector<8x32xf32>
    %c0_2 = arith.constant 0 : index
    %c0_3 = arith.constant 0 : index
    %c0_4 = arith.constant 0 : index
    %2 = vector.load %arg2[%c0_2, %c0_3, %c0_4] : memref<1x16x32xf32, #tpu.memory_space<vmem>>, vector<1x16x32xf32>
    %3 = vector.shape_cast %2 : vector<1x16x32xf32> to vector<16x32xf32>
    %c0_5 = arith.constant 0 : index
    %c0_6 = arith.constant 0 : index
    %4 = vector.load %arg3[%c0_5, %c0_6] : memref<32x96xbf16, #tpu.memory_space<vmem>>, vector<32x96xbf16>
    %5 = arith.truncf %1 : vector<8x32xf32> to vector<8x32xbf16>
    %cst = arith.constant dense<0.000000e+00> : vector<8x96xf32>
    %6 = tpu.matmul %5, %4, %cst {dimension_numbers = #tpu.dot_dimension_numbers<[1], [0], [0], [1], [0, 0, 1, 1], [], []>} : vector<8x32xbf16>, vector<32x96xbf16>, vector<8x96xf32> -> vector<8x96xf32>
    %c0_7 = arith.constant 0 : index
    %c0_8 = arith.constant 0 : index
    %7 = vector.load %arg4[%c0_7, %c0_8] : memref<1x96xf32, #tpu.memory_space<vmem>>, vector<1x96xf32>
    %8 = vector.broadcast %7 : vector<1x96xf32> to vector<8x96xf32>
    %9 = arith.addf %6, %8 : vector<8x96xf32>
    %10 = vector.extract_strided_slice %9 {offsets = [0, 0], sizes = [8, 32], strides = [1, 1]} : vector<8x96xf32> to vector<8x32xf32>
    %11 = vector.extract_strided_slice %9 {offsets = [0, 32], sizes = [8, 32], strides = [1, 1]} : vector<8x96xf32> to vector<8x32xf32>
    %12 = vector.extract_strided_slice %9 {offsets = [0, 64], sizes = [8, 32], strides = [1, 1]} : vector<8x96xf32> to vector<8x32xf32>
    %13 = vector.shape_cast %10 : vector<8x32xf32> to vector<1x8x32xf32>
    %14 = arith.truncf %13 : vector<1x8x32xf32> to vector<1x8x32xbf16>
    %15 = vector.shape_cast %11 : vector<8x32xf32> to vector<1x8x32xf32>
    %16 = arith.truncf %15 : vector<1x8x32xf32> to vector<1x8x32xbf16>
    %17 = vector.shape_cast %12 : vector<8x32xf32> to vector<1x8x32xf32>
    %18 = arith.truncf %17 : vector<1x8x32xf32> to vector<1x8x32xbf16>
    %19 = vector.extract_strided_slice %14 {offsets = [0, 0, 0], sizes = [1, 8, 8], strides = [1, 1, 1]} : vector<1x8x32xbf16> to vector<1x8x8xbf16>
    %20 = vector.extract_strided_slice %16 {offsets = [0, 0, 0], sizes = [1, 8, 8], strides = [1, 1, 1]} : vector<1x8x32xbf16> to vector<1x8x8xbf16>
    %21 = vector.extract_strided_slice %18 {offsets = [0, 0, 0], sizes = [1, 8, 8], strides = [1, 1, 1]} : vector<1x8x32xbf16> to vector<1x8x8xbf16>
    "tpu.trace_start"() <{level = 10 : i32, message = "bqd,bkd->bqk"}> : () -> ()
    %cst_9 = arith.constant dense<0.000000e+00> : vector<1x8x8xf32>
    %22 = tpu.matmul %19, %20, %cst_9 {dimension_numbers = #tpu.dot_dimension_numbers<[2], [2], [1], [1], [0, 0, 0, 1, 1, 1], [0], [0]>} : vector<1x8x8xbf16>, vector<1x8x8xbf16>, vector<1x8x8xf32> -> vector<1x8x8xf32>
    "tpu.trace_stop"() : () -> ()
    %cst_10 = arith.constant dense<0xFF800000> : vector<1x8xf32>
    %23 = vector.multi_reduction <maximumf>, %22, %cst_10 [2] : vector<1x8x8xf32> to vector<1x8xf32>
    %24 = vector.shape_cast %23 : vector<1x8xf32> to vector<1x8x1xf32>
    %25 = vector.broadcast %24 : vector<1x8x1xf32> to vector<1x8x8xf32>
    %26 = arith.subf %22, %25 : vector<1x8x8xf32>
    %27 = math.exp %26 : vector<1x8x8xf32>
    %cst_11 = arith.constant dense<0.000000e+00> : vector<1x8xf32>
    %28 = vector.multi_reduction <add>, %27, %cst_11 [2] : vector<1x8x8xf32> to vector<1x8xf32>
    %29 = vector.shape_cast %28 : vector<1x8xf32> to vector<1x8x1xf32>
    %30 = arith.truncf %27 : vector<1x8x8xf32> to vector<1x8x8xbf16>
    "tpu.trace_start"() <{level = 10 : i32, message = "bqk,bkd->bqd"}> : () -> ()
    %cst_12 = arith.constant dense<0.000000e+00> : vector<1x8x8xf32>
    %31 = tpu.matmul %30, %21, %cst_12 {dimension_numbers = #tpu.dot_dimension_numbers<[2], [1], [1], [2], [0, 0, 0, 1, 1, 2], [0], [0]>} : vector<1x8x8xbf16>, vector<1x8x8xbf16>, vector<1x8x8xf32> -> vector<1x8x8xf32>
    "tpu.trace_stop"() : () -> ()
    %32 = tpu.reciprocal %29 {approx = true} : vector<1x8x1xf32> -> vector<1x8x1xf32>
    %33 = vector.broadcast %32 : vector<1x8x1xf32> to vector<1x8x8xf32>
    %34 = arith.mulf %31, %33 : vector<1x8x8xf32>
    %35 = vector.extract_strided_slice %14 {offsets = [0, 0, 8], sizes = [1, 8, 8], strides = [1, 1, 1]} : vector<1x8x32xbf16> to vector<1x8x8xbf16>
    %36 = vector.extract_strided_slice %16 {offsets = [0, 0, 8], sizes = [1, 8, 8], strides = [1, 1, 1]} : vector<1x8x32xbf16> to vector<1x8x8xbf16>
    %37 = vector.extract_strided_slice %18 {offsets = [0, 0, 8], sizes = [1, 8, 8], strides = [1, 1, 1]} : vector<1x8x32xbf16> to vector<1x8x8xbf16>
    "tpu.trace_start"() <{level = 10 : i32, message = "bqd,bkd->bqk"}> : () -> ()
    %cst_13 = arith.constant dense<0.000000e+00> : vector<1x8x8xf32>
    %38 = tpu.matmul %35, %36, %cst_13 {dimension_numbers = #tpu.dot_dimension_numbers<[2], [2], [1], [1], [0, 0, 0, 1, 1, 1], [0], [0]>} : vector<1x8x8xbf16>, vector<1x8x8xbf16>, vector<1x8x8xf32> -> vector<1x8x8xf32>
    "tpu.trace_stop"() : () -> ()
    %cst_14 = arith.constant dense<0xFF800000> : vector<1x8xf32>
    %39 = vector.multi_reduction <maximumf>, %38, %cst_14 [2] : vector<1x8x8xf32> to vector<1x8xf32>
    %40 = vector.shape_cast %39 : vector<1x8xf32> to vector<1x8x1xf32>
    %41 = vector.broadcast %40 : vector<1x8x1xf32> to vector<1x8x8xf32>
    %42 = arith.subf %38, %41 : vector<1x8x8xf32>
    %43 = math.exp %42 : vector<1x8x8xf32>
    %cst_15 = arith.constant dense<0.000000e+00> : vector<1x8xf32>
    %44 = vector.multi_reduction <add>, %43, %cst_15 [2] : vector<1x8x8xf32> to vector<1x8xf32>
    %45 = vector.shape_cast %44 : vector<1x8xf32> to vector<1x8x1xf32>
    %46 = arith.truncf %43 : vector<1x8x8xf32> to vector<1x8x8xbf16>
    "tpu.trace_start"() <{level = 10 : i32, message = "bqk,bkd->bqd"}> : () -> ()
    %cst_16 = arith.constant dense<0.000000e+00> : vector<1x8x8xf32>
    %47 = tpu.matmul %46, %37, %cst_16 {dimension_numbers = #tpu.dot_dimension_numbers<[2], [1], [1], [2], [0, 0, 0, 1, 1, 2], [0], [0]>} : vector<1x8x8xbf16>, vector<1x8x8xbf16>, vector<1x8x8xf32> -> vector<1x8x8xf32>
    "tpu.trace_stop"() : () -> ()
    %48 = tpu.reciprocal %45 {approx = true} : vector<1x8x1xf32> -> vector<1x8x1xf32>
    %49 = vector.broadcast %48 : vector<1x8x1xf32> to vector<1x8x8xf32>
    %50 = arith.mulf %47, %49 : vector<1x8x8xf32>
    %51 = vector.extract_strided_slice %14 {offsets = [0, 0, 16], sizes = [1, 8, 8], strides = [1, 1, 1]} : vector<1x8x32xbf16> to vector<1x8x8xbf16>
    %52 = vector.extract_strided_slice %16 {offsets = [0, 0, 16], sizes = [1, 8, 8], strides = [1, 1, 1]} : vector<1x8x32xbf16> to vector<1x8x8xbf16>
    %53 = vector.extract_strided_slice %18 {offsets = [0, 0, 16], sizes = [1, 8, 8], strides = [1, 1, 1]} : vector<1x8x32xbf16> to vector<1x8x8xbf16>
    "tpu.trace_start"() <{level = 10 : i32, message = "bqd,bkd->bqk"}> : () -> ()
    %cst_17 = arith.constant dense<0.000000e+00> : vector<1x8x8xf32>
    %54 = tpu.matmul %51, %52, %cst_17 {dimension_numbers = #tpu.dot_dimension_numbers<[2], [2], [1], [1], [0, 0, 0, 1, 1, 1], [0], [0]>} : vector<1x8x8xbf16>, vector<1x8x8xbf16>, vector<1x8x8xf32> -> vector<1x8x8xf32>
    "tpu.trace_stop"() : () -> ()
    %cst_18 = arith.constant dense<0xFF800000> : vector<1x8xf32>
    %55 = vector.multi_reduction <maximumf>, %54, %cst_18 [2] : vector<1x8x8xf32> to vector<1x8xf32>
    %56 = vector.shape_cast %55 : vector<1x8xf32> to vector<1x8x1xf32>
    %57 = vector.broadcast %56 : vector<1x8x1xf32> to vector<1x8x8xf32>
    %58 = arith.subf %54, %57 : vector<1x8x8xf32>
    %59 = math.exp %58 : vector<1x8x8xf32>
    %cst_19 = arith.constant dense<0.000000e+00> : vector<1x8xf32>
    %60 = vector.multi_reduction <add>, %59, %cst_19 [2] : vector<1x8x8xf32> to vector<1x8xf32>
    %61 = vector.shape_cast %60 : vector<1x8xf32> to vector<1x8x1xf32>
    %62 = arith.truncf %59 : vector<1x8x8xf32> to vector<1x8x8xbf16>
    "tpu.trace_start"() <{level = 10 : i32, message = "bqk,bkd->bqd"}> : () -> ()
    %cst_20 = arith.constant dense<0.000000e+00> : vector<1x8x8xf32>
    %63 = tpu.matmul %62, %53, %cst_20 {dimension_numbers = #tpu.dot_dimension_numbers<[2], [1], [1], [2], [0, 0, 0, 1, 1, 2], [0], [0]>} : vector<1x8x8xbf16>, vector<1x8x8xbf16>, vector<1x8x8xf32> -> vector<1x8x8xf32>
    "tpu.trace_stop"() : () -> ()
    %64 = tpu.reciprocal %61 {approx = true} : vector<1x8x1xf32> -> vector<1x8x1xf32>
    %65 = vector.broadcast %64 : vector<1x8x1xf32> to vector<1x8x8xf32>
    %66 = arith.mulf %63, %65 : vector<1x8x8xf32>
    %67 = vector.extract_strided_slice %14 {offsets = [0, 0, 24], sizes = [1, 8, 8], strides = [1, 1, 1]} : vector<1x8x32xbf16> to vector<1x8x8xbf16>
    %68 = vector.extract_strided_slice %16 {offsets = [0, 0, 24], sizes = [1, 8, 8], strides = [1, 1, 1]} : vector<1x8x32xbf16> to vector<1x8x8xbf16>
    %69 = vector.extract_strided_slice %18 {offsets = [0, 0, 24], sizes = [1, 8, 8], strides = [1, 1, 1]} : vector<1x8x32xbf16> to vector<1x8x8xbf16>
    "tpu.trace_start"() <{level = 10 : i32, message = "bqd,bkd->bqk"}> : () -> ()
    %cst_21 = arith.constant dense<0.000000e+00> : vector<1x8x8xf32>
    %70 = tpu.matmul %67, %68, %cst_21 {dimension_numbers = #tpu.dot_dimension_numbers<[2], [2], [1], [1], [0, 0, 0, 1, 1, 1], [0], [0]>} : vector<1x8x8xbf16>, vector<1x8x8xbf16>, vector<1x8x8xf32> -> vector<1x8x8xf32>
    "tpu.trace_stop"() : () -> ()
    %cst_22 = arith.constant dense<0xFF800000> : vector<1x8xf32>
    %71 = vector.multi_reduction <maximumf>, %70, %cst_22 [2] : vector<1x8x8xf32> to vector<1x8xf32>
    %72 = vector.shape_cast %71 : vector<1x8xf32> to vector<1x8x1xf32>
    %73 = vector.broadcast %72 : vector<1x8x1xf32> to vector<1x8x8xf32>
    %74 = arith.subf %70, %73 : vector<1x8x8xf32>
    %75 = math.exp %74 : vector<1x8x8xf32>
    %cst_23 = arith.constant dense<0.000000e+00> : vector<1x8xf32>
    %76 = vector.multi_reduction <add>, %75, %cst_23 [2] : vector<1x8x8xf32> to vector<1x8xf32>
    %77 = vector.shape_cast %76 : vector<1x8xf32> to vector<1x8x1xf32>
    %78 = arith.truncf %75 : vector<1x8x8xf32> to vector<1x8x8xbf16>
    "tpu.trace_start"() <{level = 10 : i32, message = "bqk,bkd->bqd"}> : () -> ()
    %cst_24 = arith.constant dense<0.000000e+00> : vector<1x8x8xf32>
    %79 = tpu.matmul %78, %69, %cst_24 {dimension_numbers = #tpu.dot_dimension_numbers<[2], [1], [1], [2], [0, 0, 0, 1, 1, 2], [0], [0]>} : vector<1x8x8xbf16>, vector<1x8x8xbf16>, vector<1x8x8xf32> -> vector<1x8x8xf32>
    "tpu.trace_stop"() : () -> ()
    %80 = tpu.reciprocal %77 {approx = true} : vector<1x8x1xf32> -> vector<1x8x1xf32>
    %81 = vector.broadcast %80 : vector<1x8x1xf32> to vector<1x8x8xf32>
    %82 = arith.mulf %79, %81 : vector<1x8x8xf32>
    %83 = tpu.concatenate %34, %50, %66, %82 in 2 : vector<1x8x8xf32>, vector<1x8x8xf32>, vector<1x8x8xf32>, vector<1x8x8xf32> -> vector<1x8x32xf32>
    %84 = vector.shape_cast %83 : vector<1x8x32xf32> to vector<8x32xf32>
    %c0_25 = arith.constant 0 : index
    %c0_26 = arith.constant 0 : index
    %85 = vector.load %arg5[%c0_25, %c0_26] : memref<32x32xbf16, #tpu.memory_space<vmem>>, vector<32x32xbf16>
    %86 = arith.truncf %84 : vector<8x32xf32> to vector<8x32xbf16>
    %cst_27 = arith.constant dense<0.000000e+00> : vector<8x32xf32>
    %87 = tpu.matmul %86, %85, %cst_27 {dimension_numbers = #tpu.dot_dimension_numbers<[1], [0], [0], [1], [0, 0, 1, 1], [], []>} : vector<8x32xbf16>, vector<32x32xbf16>, vector<8x32xf32> -> vector<8x32xf32>
    %c0_28 = arith.constant 0 : index
    %c0_29 = arith.constant 0 : index
    %88 = vector.load %arg6[%c0_28, %c0_29] : memref<1x32xf32, #tpu.memory_space<vmem>>, vector<1x32xf32>
    %89 = vector.broadcast %88 : vector<1x32xf32> to vector<8x32xf32>
    %90 = arith.addf %87, %89 : vector<8x32xf32>
    %91 = arith.addf %1, %90 : vector<8x32xf32>
    %cst_30 = arith.constant dense<0.000000e+00> : vector<8xf32>
    %92 = vector.multi_reduction <add>, %91, %cst_30 [1] : vector<8x32xf32> to vector<8xf32>
    %93 = vector.shape_cast %92 : vector<8xf32> to vector<8x1xf32>
    %cst_31 = arith.constant 3.200000e+01 : f32
    %94 = vector.broadcast %cst_31 : f32 to vector<8x1xf32>
    %95 = arith.divf %93, %94 : vector<8x1xf32>
    %96 = vector.broadcast %95 : vector<8x1xf32> to vector<8x32xf32>
    %97 = arith.subf %91, %96 : vector<8x32xf32>
    %98 = arith.mulf %97, %97 : vector<8x32xf32>
    %cst_32 = arith.constant dense<0.000000e+00> : vector<8xf32>
    %99 = vector.multi_reduction <add>, %98, %cst_32 [1] : vector<8x32xf32> to vector<8xf32>
    %100 = vector.shape_cast %99 : vector<8xf32> to vector<8x1xf32>
    %cst_33 = arith.constant 3.200000e+01 : f32
    %101 = vector.broadcast %cst_33 : f32 to vector<8x1xf32>
    %102 = arith.divf %100, %101 : vector<8x1xf32>
    %103 = vector.broadcast %95 : vector<8x1xf32> to vector<8x32xf32>
    %104 = arith.subf %91, %103 : vector<8x32xf32>
    %cst_34 = arith.constant 9.99999974E-6 : f32
    %105 = vector.broadcast %cst_34 : f32 to vector<8x1xf32>
    %106 = arith.addf %102, %105 : vector<8x1xf32>
    %107 = math.rsqrt %106 : vector<8x1xf32>
    %108 = vector.broadcast %107 : vector<8x1xf32> to vector<8x32xf32>
    %109 = arith.mulf %104, %108 : vector<8x32xf32>
    %c0_35 = arith.constant 0 : index
    %c0_36 = arith.constant 0 : index
    %110 = vector.load %arg7[%c0_35, %c0_36] : memref<1x32xf32, #tpu.memory_space<vmem>>, vector<1x32xf32>
    %111 = vector.broadcast %110 : vector<1x32xf32> to vector<8x32xf32>
    %112 = arith.mulf %109, %111 : vector<8x32xf32>
    %c0_37 = arith.constant 0 : index
    %c0_38 = arith.constant 0 : index
    %113 = vector.load %arg8[%c0_37, %c0_38] : memref<1x32xf32, #tpu.memory_space<vmem>>, vector<1x32xf32>
    %114 = vector.broadcast %113 : vector<1x32xf32> to vector<8x32xf32>
    %115 = arith.addf %112, %114 : vector<8x32xf32>
    %c0_39 = arith.constant 0 : index
    %c0_40 = arith.constant 0 : index
    %116 = vector.load %arg9[%c0_39, %c0_40] : memref<32x32xbf16, #tpu.memory_space<vmem>>, vector<32x32xbf16>
    %117 = arith.truncf %115 : vector<8x32xf32> to vector<8x32xbf16>
    %cst_41 = arith.constant dense<0.000000e+00> : vector<8x32xf32>
    %118 = tpu.matmul %117, %116, %cst_41 {dimension_numbers = #tpu.dot_dimension_numbers<[1], [0], [0], [1], [0, 0, 1, 1], [], []>} : vector<8x32xbf16>, vector<32x32xbf16>, vector<8x32xf32> -> vector<8x32xf32>
    %c0_42 = arith.constant 0 : index
    %c0_43 = arith.constant 0 : index
    %119 = vector.load %arg10[%c0_42, %c0_43] : memref<1x32xf32, #tpu.memory_space<vmem>>, vector<1x32xf32>
    %120 = vector.broadcast %119 : vector<1x32xf32> to vector<8x32xf32>
    %121 = arith.addf %118, %120 : vector<8x32xf32>
    %c0_44 = arith.constant 0 : index
    %c0_45 = arith.constant 0 : index
    %122 = vector.load %arg11[%c0_44, %c0_45] : memref<32x64xbf16, #tpu.memory_space<vmem>>, vector<32x64xbf16>
    %123 = arith.truncf %3 : vector<16x32xf32> to vector<16x32xbf16>
    %cst_46 = arith.constant dense<0.000000e+00> : vector<16x64xf32>
    %124 = tpu.matmul %123, %122, %cst_46 {dimension_numbers = #tpu.dot_dimension_numbers<[1], [0], [0], [1], [0, 0, 1, 1], [], []>} : vector<16x32xbf16>, vector<32x64xbf16>, vector<16x64xf32> -> vector<16x64xf32>
    %c0_47 = arith.constant 0 : index
    %c0_48 = arith.constant 0 : index
    %125 = vector.load %arg12[%c0_47, %c0_48] : memref<1x64xf32, #tpu.memory_space<vmem>>, vector<1x64xf32>
    %126 = vector.broadcast %125 : vector<1x64xf32> to vector<16x64xf32>
    %127 = arith.addf %124, %126 : vector<16x64xf32>
    %128 = vector.extract_strided_slice %127 {offsets = [0, 0], sizes = [16, 32], strides = [1, 1]} : vector<16x64xf32> to vector<16x32xf32>
    %129 = vector.extract_strided_slice %127 {offsets = [0, 32], sizes = [16, 32], strides = [1, 1]} : vector<16x64xf32> to vector<16x32xf32>
    %130 = vector.shape_cast %121 : vector<8x32xf32> to vector<1x8x32xf32>
    %131 = arith.truncf %130 : vector<1x8x32xf32> to vector<1x8x32xbf16>
    %132 = vector.shape_cast %128 : vector<16x32xf32> to vector<1x16x32xf32>
    %133 = arith.truncf %132 : vector<1x16x32xf32> to vector<1x16x32xbf16>
    %134 = vector.shape_cast %129 : vector<16x32xf32> to vector<1x16x32xf32>
    %135 = arith.truncf %134 : vector<1x16x32xf32> to vector<1x16x32xbf16>
    %136 = vector.extract_strided_slice %131 {offsets = [0, 0, 0], sizes = [1, 8, 8], strides = [1, 1, 1]} : vector<1x8x32xbf16> to vector<1x8x8xbf16>
    %137 = vector.extract_strided_slice %133 {offsets = [0, 0, 0], sizes = [1, 16, 8], strides = [1, 1, 1]} : vector<1x16x32xbf16> to vector<1x16x8xbf16>
    %138 = vector.extract_strided_slice %135 {offsets = [0, 0, 0], sizes = [1, 16, 8], strides = [1, 1, 1]} : vector<1x16x32xbf16> to vector<1x16x8xbf16>
    "tpu.trace_start"() <{level = 10 : i32, message = "bqd,bkd->bqk"}> : () -> ()
    %cst_49 = arith.constant dense<0.000000e+00> : vector<1x8x16xf32>
    %139 = tpu.matmul %136, %137, %cst_49 {dimension_numbers = #tpu.dot_dimension_numbers<[2], [2], [1], [1], [0, 0, 0, 1, 1, 1], [0], [0]>} : vector<1x8x8xbf16>, vector<1x16x8xbf16>, vector<1x8x16xf32> -> vector<1x8x16xf32>
    "tpu.trace_stop"() : () -> ()
    %cst_50 = arith.constant dense<0xFF800000> : vector<1x8xf32>
    %140 = vector.multi_reduction <maximumf>, %139, %cst_50 [2] : vector<1x8x16xf32> to vector<1x8xf32>
    %141 = vector.shape_cast %140 : vector<1x8xf32> to vector<1x8x1xf32>
    %142 = vector.broadcast %141 : vector<1x8x1xf32> to vector<1x8x16xf32>
    %143 = arith.subf %139, %142 : vector<1x8x16xf32>
    %144 = math.exp %143 : vector<1x8x16xf32>
    %cst_51 = arith.constant dense<0.000000e+00> : vector<1x8xf32>
    %145 = vector.multi_reduction <add>, %144, %cst_51 [2] : vector<1x8x16xf32> to vector<1x8xf32>
    %146 = vector.shape_cast %145 : vector<1x8xf32> to vector<1x8x1xf32>
    %147 = arith.truncf %144 : vector<1x8x16xf32> to vector<1x8x16xbf16>
    "tpu.trace_start"() <{level = 10 : i32, message = "bqk,bkd->bqd"}> : () -> ()
    %cst_52 = arith.constant dense<0.000000e+00> : vector<1x8x8xf32>
    %148 = tpu.matmul %147, %138, %cst_52 {dimension_numbers = #tpu.dot_dimension_numbers<[2], [1], [1], [2], [0, 0, 0, 1, 1, 2], [0], [0]>} : vector<1x8x16xbf16>, vector<1x16x8xbf16>, vector<1x8x8xf32> -> vector<1x8x8xf32>
    "tpu.trace_stop"() : () -> ()
    %149 = tpu.reciprocal %146 {approx = true} : vector<1x8x1xf32> -> vector<1x8x1xf32>
    %150 = vector.broadcast %149 : vector<1x8x1xf32> to vector<1x8x8xf32>
    %151 = arith.mulf %148, %150 : vector<1x8x8xf32>
    %152 = vector.extract_strided_slice %131 {offsets = [0, 0, 8], sizes = [1, 8, 8], strides = [1, 1, 1]} : vector<1x8x32xbf16> to vector<1x8x8xbf16>
    %153 = vector.extract_strided_slice %133 {offsets = [0, 0, 8], sizes = [1, 16, 8], strides = [1, 1, 1]} : vector<1x16x32xbf16> to vector<1x16x8xbf16>
    %154 = vector.extract_strided_slice %135 {offsets = [0, 0, 8], sizes = [1, 16, 8], strides = [1, 1, 1]} : vector<1x16x32xbf16> to vector<1x16x8xbf16>
    "tpu.trace_start"() <{level = 10 : i32, message = "bqd,bkd->bqk"}> : () -> ()
    %cst_53 = arith.constant dense<0.000000e+00> : vector<1x8x16xf32>
    %155 = tpu.matmul %152, %153, %cst_53 {dimension_numbers = #tpu.dot_dimension_numbers<[2], [2], [1], [1], [0, 0, 0, 1, 1, 1], [0], [0]>} : vector<1x8x8xbf16>, vector<1x16x8xbf16>, vector<1x8x16xf32> -> vector<1x8x16xf32>
    "tpu.trace_stop"() : () -> ()
    %cst_54 = arith.constant dense<0xFF800000> : vector<1x8xf32>
    %156 = vector.multi_reduction <maximumf>, %155, %cst_54 [2] : vector<1x8x16xf32> to vector<1x8xf32>
    %157 = vector.shape_cast %156 : vector<1x8xf32> to vector<1x8x1xf32>
    %158 = vector.broadcast %157 : vector<1x8x1xf32> to vector<1x8x16xf32>
    %159 = arith.subf %155, %158 : vector<1x8x16xf32>
    %160 = math.exp %159 : vector<1x8x16xf32>
    %cst_55 = arith.constant dense<0.000000e+00> : vector<1x8xf32>
    %161 = vector.multi_reduction <add>, %160, %cst_55 [2] : vector<1x8x16xf32> to vector<1x8xf32>
    %162 = vector.shape_cast %161 : vector<1x8xf32> to vector<1x8x1xf32>
    %163 = arith.truncf %160 : vector<1x8x16xf32> to vector<1x8x16xbf16>
    "tpu.trace_start"() <{level = 10 : i32, message = "bqk,bkd->bqd"}> : () -> ()
    %cst_56 = arith.constant dense<0.000000e+00> : vector<1x8x8xf32>
    %164 = tpu.matmul %163, %154, %cst_56 {dimension_numbers = #tpu.dot_dimension_numbers<[2], [1], [1], [2], [0, 0, 0, 1, 1, 2], [0], [0]>} : vector<1x8x16xbf16>, vector<1x16x8xbf16>, vector<1x8x8xf32> -> vector<1x8x8xf32>
    "tpu.trace_stop"() : () -> ()
    %165 = tpu.reciprocal %162 {approx = true} : vector<1x8x1xf32> -> vector<1x8x1xf32>
    %166 = vector.broadcast %165 : vector<1x8x1xf32> to vector<1x8x8xf32>
    %167 = arith.mulf %164, %166 : vector<1x8x8xf32>
    %168 = vector.extract_strided_slice %131 {offsets = [0, 0, 16], sizes = [1, 8, 8], strides = [1, 1, 1]} : vector<1x8x32xbf16> to vector<1x8x8xbf16>
    %169 = vector.extract_strided_slice %133 {offsets = [0, 0, 16], sizes = [1, 16, 8], strides = [1, 1, 1]} : vector<1x16x32xbf16> to vector<1x16x8xbf16>
    %170 = vector.extract_strided_slice %135 {offsets = [0, 0, 16], sizes = [1, 16, 8], strides = [1, 1, 1]} : vector<1x16x32xbf16> to vector<1x16x8xbf16>
    "tpu.trace_start"() <{level = 10 : i32, message = "bqd,bkd->bqk"}> : () -> ()
    %cst_57 = arith.constant dense<0.000000e+00> : vector<1x8x16xf32>
    %171 = tpu.matmul %168, %169, %cst_57 {dimension_numbers = #tpu.dot_dimension_numbers<[2], [2], [1], [1], [0, 0, 0, 1, 1, 1], [0], [0]>} : vector<1x8x8xbf16>, vector<1x16x8xbf16>, vector<1x8x16xf32> -> vector<1x8x16xf32>
    "tpu.trace_stop"() : () -> ()
    %cst_58 = arith.constant dense<0xFF800000> : vector<1x8xf32>
    %172 = vector.multi_reduction <maximumf>, %171, %cst_58 [2] : vector<1x8x16xf32> to vector<1x8xf32>
    %173 = vector.shape_cast %172 : vector<1x8xf32> to vector<1x8x1xf32>
    %174 = vector.broadcast %173 : vector<1x8x1xf32> to vector<1x8x16xf32>
    %175 = arith.subf %171, %174 : vector<1x8x16xf32>
    %176 = math.exp %175 : vector<1x8x16xf32>
    %cst_59 = arith.constant dense<0.000000e+00> : vector<1x8xf32>
    %177 = vector.multi_reduction <add>, %176, %cst_59 [2] : vector<1x8x16xf32> to vector<1x8xf32>
    %178 = vector.shape_cast %177 : vector<1x8xf32> to vector<1x8x1xf32>
    %179 = arith.truncf %176 : vector<1x8x16xf32> to vector<1x8x16xbf16>
    "tpu.trace_start"() <{level = 10 : i32, message = "bqk,bkd->bqd"}> : () -> ()
    %cst_60 = arith.constant dense<0.000000e+00> : vector<1x8x8xf32>
    %180 = tpu.matmul %179, %170, %cst_60 {dimension_numbers = #tpu.dot_dimension_numbers<[2], [1], [1], [2], [0, 0, 0, 1, 1, 2], [0], [0]>} : vector<1x8x16xbf16>, vector<1x16x8xbf16>, vector<1x8x8xf32> -> vector<1x8x8xf32>
    "tpu.trace_stop"() : () -> ()
    %181 = tpu.reciprocal %178 {approx = true} : vector<1x8x1xf32> -> vector<1x8x1xf32>
    %182 = vector.broadcast %181 : vector<1x8x1xf32> to vector<1x8x8xf32>
    %183 = arith.mulf %180, %182 : vector<1x8x8xf32>
    %184 = vector.extract_strided_slice %131 {offsets = [0, 0, 24], sizes = [1, 8, 8], strides = [1, 1, 1]} : vector<1x8x32xbf16> to vector<1x8x8xbf16>
    %185 = vector.extract_strided_slice %133 {offsets = [0, 0, 24], sizes = [1, 16, 8], strides = [1, 1, 1]} : vector<1x16x32xbf16> to vector<1x16x8xbf16>
    %186 = vector.extract_strided_slice %135 {offsets = [0, 0, 24], sizes = [1, 16, 8], strides = [1, 1, 1]} : vector<1x16x32xbf16> to vector<1x16x8xbf16>
    "tpu.trace_start"() <{level = 10 : i32, message = "bqd,bkd->bqk"}> : () -> ()
    %cst_61 = arith.constant dense<0.000000e+00> : vector<1x8x16xf32>
    %187 = tpu.matmul %184, %185, %cst_61 {dimension_numbers = #tpu.dot_dimension_numbers<[2], [2], [1], [1], [0, 0, 0, 1, 1, 1], [0], [0]>} : vector<1x8x8xbf16>, vector<1x16x8xbf16>, vector<1x8x16xf32> -> vector<1x8x16xf32>
    "tpu.trace_stop"() : () -> ()
    %cst_62 = arith.constant dense<0xFF800000> : vector<1x8xf32>
    %188 = vector.multi_reduction <maximumf>, %187, %cst_62 [2] : vector<1x8x16xf32> to vector<1x8xf32>
    %189 = vector.shape_cast %188 : vector<1x8xf32> to vector<1x8x1xf32>
    %190 = vector.broadcast %189 : vector<1x8x1xf32> to vector<1x8x16xf32>
    %191 = arith.subf %187, %190 : vector<1x8x16xf32>
    %192 = math.exp %191 : vector<1x8x16xf32>
    %cst_63 = arith.constant dense<0.000000e+00> : vector<1x8xf32>
    %193 = vector.multi_reduction <add>, %192, %cst_63 [2] : vector<1x8x16xf32> to vector<1x8xf32>
    %194 = vector.shape_cast %193 : vector<1x8xf32> to vector<1x8x1xf32>
    %195 = arith.truncf %192 : vector<1x8x16xf32> to vector<1x8x16xbf16>
    "tpu.trace_start"() <{level = 10 : i32, message = "bqk,bkd->bqd"}> : () -> ()
    %cst_64 = arith.constant dense<0.000000e+00> : vector<1x8x8xf32>
    %196 = tpu.matmul %195, %186, %cst_64 {dimension_numbers = #tpu.dot_dimension_numbers<[2], [1], [1], [2], [0, 0, 0, 1, 1, 2], [0], [0]>} : vector<1x8x16xbf16>, vector<1x16x8xbf16>, vector<1x8x8xf32> -> vector<1x8x8xf32>
    "tpu.trace_stop"() : () -> ()
    %197 = tpu.reciprocal %194 {approx = true} : vector<1x8x1xf32> -> vector<1x8x1xf32>
    %198 = vector.broadcast %197 : vector<1x8x1xf32> to vector<1x8x8xf32>
    %199 = arith.mulf %196, %198 : vector<1x8x8xf32>
    %200 = tpu.concatenate %151, %167, %183, %199 in 2 : vector<1x8x8xf32>, vector<1x8x8xf32>, vector<1x8x8xf32>, vector<1x8x8xf32> -> vector<1x8x32xf32>
    %201 = vector.shape_cast %200 : vector<1x8x32xf32> to vector<8x32xf32>
    %c0_65 = arith.constant 0 : index
    %c0_66 = arith.constant 0 : index
    %202 = vector.load %arg13[%c0_65, %c0_66] : memref<32x32xbf16, #tpu.memory_space<vmem>>, vector<32x32xbf16>
    %203 = arith.truncf %201 : vector<8x32xf32> to vector<8x32xbf16>
    %cst_67 = arith.constant dense<0.000000e+00> : vector<8x32xf32>
    %204 = tpu.matmul %203, %202, %cst_67 {dimension_numbers = #tpu.dot_dimension_numbers<[1], [0], [0], [1], [0, 0, 1, 1], [], []>} : vector<8x32xbf16>, vector<32x32xbf16>, vector<8x32xf32> -> vector<8x32xf32>
    %c0_68 = arith.constant 0 : index
    %c0_69 = arith.constant 0 : index
    %205 = vector.load %arg14[%c0_68, %c0_69] : memref<1x32xf32, #tpu.memory_space<vmem>>, vector<1x32xf32>
    %206 = vector.broadcast %205 : vector<1x32xf32> to vector<8x32xf32>
    %207 = arith.addf %204, %206 : vector<8x32xf32>
    %208 = arith.addf %115, %207 : vector<8x32xf32>
    %cst_70 = arith.constant dense<0.000000e+00> : vector<8xf32>
    %209 = vector.multi_reduction <add>, %208, %cst_70 [1] : vector<8x32xf32> to vector<8xf32>
    %210 = vector.shape_cast %209 : vector<8xf32> to vector<8x1xf32>
    %cst_71 = arith.constant 3.200000e+01 : f32
    %211 = vector.broadcast %cst_71 : f32 to vector<8x1xf32>
    %212 = arith.divf %210, %211 : vector<8x1xf32>
    %213 = vector.broadcast %212 : vector<8x1xf32> to vector<8x32xf32>
    %214 = arith.subf %208, %213 : vector<8x32xf32>
    %215 = arith.mulf %214, %214 : vector<8x32xf32>
    %cst_72 = arith.constant dense<0.000000e+00> : vector<8xf32>
    %216 = vector.multi_reduction <add>, %215, %cst_72 [1] : vector<8x32xf32> to vector<8xf32>
    %217 = vector.shape_cast %216 : vector<8xf32> to vector<8x1xf32>
    %cst_73 = arith.constant 3.200000e+01 : f32
    %218 = vector.broadcast %cst_73 : f32 to vector<8x1xf32>
    %219 = arith.divf %217, %218 : vector<8x1xf32>
    %220 = vector.broadcast %212 : vector<8x1xf32> to vector<8x32xf32>
    %221 = arith.subf %208, %220 : vector<8x32xf32>
    %cst_74 = arith.constant 9.99999974E-6 : f32
    %222 = vector.broadcast %cst_74 : f32 to vector<8x1xf32>
    %223 = arith.addf %219, %222 : vector<8x1xf32>
    %224 = math.rsqrt %223 : vector<8x1xf32>
    %225 = vector.broadcast %224 : vector<8x1xf32> to vector<8x32xf32>
    %226 = arith.mulf %221, %225 : vector<8x32xf32>
    %c0_75 = arith.constant 0 : index
    %c0_76 = arith.constant 0 : index
    %227 = vector.load %arg15[%c0_75, %c0_76] : memref<1x32xf32, #tpu.memory_space<vmem>>, vector<1x32xf32>
    %228 = vector.broadcast %227 : vector<1x32xf32> to vector<8x32xf32>
    %229 = arith.mulf %226, %228 : vector<8x32xf32>
    %c0_77 = arith.constant 0 : index
    %c0_78 = arith.constant 0 : index
    %230 = vector.load %arg16[%c0_77, %c0_78] : memref<1x32xf32, #tpu.memory_space<vmem>>, vector<1x32xf32>
    %231 = vector.broadcast %230 : vector<1x32xf32> to vector<8x32xf32>
    %232 = arith.addf %229, %231 : vector<8x32xf32>
    %c0_79 = arith.constant 0 : index
    %c0_80 = arith.constant 0 : index
    %233 = vector.load %arg17[%c0_79, %c0_80] : memref<32x64xbf16, #tpu.memory_space<vmem>>, vector<32x64xbf16>
    %234 = arith.truncf %232 : vector<8x32xf32> to vector<8x32xbf16>
    %cst_81 = arith.constant dense<0.000000e+00> : vector<8x64xf32>
    %235 = tpu.matmul %234, %233, %cst_81 {dimension_numbers = #tpu.dot_dimension_numbers<[1], [0], [0], [1], [0, 0, 1, 1], [], []>} : vector<8x32xbf16>, vector<32x64xbf16>, vector<8x64xf32> -> vector<8x64xf32>
    %c0_82 = arith.constant 0 : index
    %c0_83 = arith.constant 0 : index
    %236 = vector.load %arg18[%c0_82, %c0_83] : memref<1x64xf32, #tpu.memory_space<vmem>>, vector<1x64xf32>
    %237 = vector.broadcast %236 : vector<1x64xf32> to vector<8x64xf32>
    %238 = arith.addf %235, %237 : vector<8x64xf32>
    %cst_84 = arith.constant 0.000000e+00 : f32
    %239 = vector.broadcast %cst_84 : f32 to vector<8x64xf32>
    %240 = arith.maximumf %238, %239 : vector<8x64xf32>
    %c0_85 = arith.constant 0 : index
    %c0_86 = arith.constant 0 : index
    %241 = vector.load %arg19[%c0_85, %c0_86] : memref<64x32xbf16, #tpu.memory_space<vmem>>, vector<64x32xbf16>
    %242 = arith.truncf %240 : vector<8x64xf32> to vector<8x64xbf16>
    %cst_87 = arith.constant dense<0.000000e+00> : vector<8x32xf32>
    %243 = tpu.matmul %242, %241, %cst_87 {dimension_numbers = #tpu.dot_dimension_numbers<[1], [0], [0], [1], [0, 0, 1, 1], [], []>} : vector<8x64xbf16>, vector<64x32xbf16>, vector<8x32xf32> -> vector<8x32xf32>
    %c0_88 = arith.constant 0 : index
    %c0_89 = arith.constant 0 : index
    %244 = vector.load %arg20[%c0_88, %c0_89] : memref<1x32xf32, #tpu.memory_space<vmem>>, vector<1x32xf32>
    %245 = vector.broadcast %244 : vector<1x32xf32> to vector<8x32xf32>
    %246 = arith.addf %243, %245 : vector<8x32xf32>
    %247 = arith.addf %232, %246 : vector<8x32xf32>
    %cst_90 = arith.constant dense<0.000000e+00> : vector<8xf32>
    %248 = vector.multi_reduction <add>, %247, %cst_90 [1] : vector<8x32xf32> to vector<8xf32>
    %249 = vector.shape_cast %248 : vector<8xf32> to vector<8x1xf32>
    %cst_91 = arith.constant 3.200000e+01 : f32
    %250 = vector.broadcast %cst_91 : f32 to vector<8x1xf32>
    %251 = arith.divf %249, %250 : vector<8x1xf32>
    %252 = vector.broadcast %251 : vector<8x1xf32> to vector<8x32xf32>
    %253 = arith.subf %247, %252 : vector<8x32xf32>
    %254 = arith.mulf %253, %253 : vector<8x32xf32>
    %cst_92 = arith.constant dense<0.000000e+00> : vector<8xf32>
    %255 = vector.multi_reduction <add>, %254, %cst_92 [1] : vector<8x32xf32> to vector<8xf32>
    %256 = vector.shape_cast %255 : vector<8xf32> to vector<8x1xf32>
    %cst_93 = arith.constant 3.200000e+01 : f32
    %257 = vector.broadcast %cst_93 : f32 to vector<8x1xf32>
    %258 = arith.divf %256, %257 : vector<8x1xf32>
    %259 = vector.broadcast %251 : vector<8x1xf32> to vector<8x32xf32>
    %260 = arith.subf %247, %259 : vector<8x32xf32>
    %cst_94 = arith.constant 9.99999974E-6 : f32
    %261 = vector.broadcast %cst_94 : f32 to vector<8x1xf32>
    %262 = arith.addf %258, %261 : vector<8x1xf32>
    %263 = math.rsqrt %262 : vector<8x1xf32>
    %264 = vector.broadcast %263 : vector<8x1xf32> to vector<8x32xf32>
    %265 = arith.mulf %260, %264 : vector<8x32xf32>
    %c0_95 = arith.constant 0 : index
    %c0_96 = arith.constant 0 : index
    %266 = vector.load %arg21[%c0_95, %c0_96] : memref<1x32xf32, #tpu.memory_space<vmem>>, vector<1x32xf32>
    %267 = vector.broadcast %266 : vector<1x32xf32> to vector<8x32xf32>
    %268 = arith.mulf %265, %267 : vector<8x32xf32>
    %c0_97 = arith.constant 0 : index
    %c0_98 = arith.constant 0 : index
    %269 = vector.load %arg22[%c0_97, %c0_98] : memref<1x32xf32, #tpu.memory_space<vmem>>, vector<1x32xf32>
    %270 = vector.broadcast %269 : vector<1x32xf32> to vector<8x32xf32>
    %271 = arith.addf %268, %270 : vector<8x32xf32>
    %272 = vector.shape_cast %271 : vector<8x32xf32> to vector<1x8x32xf32>
    %c0_99 = arith.constant 0 : index
    %c0_100 = arith.constant 0 : index
    %c0_101 = arith.constant 0 : index
    %273 = vector.load %arg23[%c0_99, %c0_100, %c0_101] : memref<1x8x32xf32, #tpu.memory_space<vmem>>, vector<1x8x32xf32>
    tpu.vector_store %arg23[%c0_99, %c0_100, %c0_101], %272 {strides = array<i32>} : memref<1x8x32xf32, #tpu.memory_space<vmem>>, vector<1x8x32xf32>,
    return
  }
  func.func @transform_0(%arg0: i32) -> (i32, i32, i32) {
    %c0_i32 = arith.constant 0 : i32
    %c0_i32_0 = arith.constant 0 : i32
    %c0_i32_1 = arith.constant 0 : i32
    return %arg0, %c0_i32, %c0_i32_0 : i32, i32, i32
  }
  func.func @transform_1(%arg0: i32) -> (i32, i32, i32) {
    %c0_i32 = arith.constant 0 : i32
    %c0_i32_0 = arith.constant 0 : i32
    %c0_i32_1 = arith.constant 0 : i32
    return %arg0, %c0_i32, %c0_i32_0 : i32, i32, i32
  }
  func.func @transform_2(%arg0: i32) -> (i32, i32) {
    %c0_i32 = arith.constant 0 : i32
    %c0_i32_0 = arith.constant 0 : i32
    %c0_i32_1 = arith.constant 0 : i32
    return %c0_i32, %c0_i32_0 : i32, i32
  }
  func.func @transform_3(%arg0: i32) -> (i32, i32) {
    %c0_i32 = arith.constant 0 : i32
    %c0_i32_0 = arith.constant 0 : i32
    %c0_i32_1 = arith.constant 0 : i32
    return %c0_i32, %c0_i32_0 : i32, i32
  }
  func.func @transform_4(%arg0: i32) -> (i32, i32) {
    %c0_i32 = arith.constant 0 : i32
    %c0_i32_0 = arith.constant 0 : i32
    %c0_i32_1 = arith.constant 0 : i32
    return %c0_i32, %c0_i32_0 : i32, i32
  }
  func.func @transform_5(%arg0: i32) -> (i32, i32) {
    %c0_i32 = arith.constant 0 : i32
    %c0_i32_0 = arith.constant 0 : i32
    %c0_i32_1 = arith.constant 0 : i32
    return %c0_i32, %c0_i32_0 : i32, i32
  }
  func.func @transform_6(%arg0: i32) -> (i32, i32) {
    %c0_i32 = arith.constant 0 : i32
    %c0_i32_0 = arith.constant 0 : i32
    %c0_i32_1 = arith.constant 0 : i32
    return %c0_i32, %c0_i32_0 : i32, i32
  }
  func.func @transform_7(%arg0: i32) -> (i32, i32) {
    %c0_i32 = arith.constant 0 : i32
    %c0_i32_0 = arith.constant 0 : i32
    %c0_i32_1 = arith.constant 0 : i32
    return %c0_i32, %c0_i32_0 : i32, i32
  }
  func.func @transform_8(%arg0: i32) -> (i32, i32) {
    %c0_i32 = arith.constant 0 : i32
    %c0_i32_0 = arith.constant 0 : i32
    %c0_i32_1 = arith.constant 0 : i32
    return %c0_i32, %c0_i32_0 : i32, i32
  }
  func.func @transform_9(%arg0: i32) -> (i32, i32) {
    %c0_i32 = arith.constant 0 : i32
    %c0_i32_0 = arith.constant 0 : i32
    %c0_i32_1 = arith.constant 0 : i32
    return %c0_i32, %c0_i32_0 : i32, i32
  }
  func.func @transform_10(%arg0: i32) -> (i32, i32) {
    %c0_i32 = arith.constant 0 : i32
    %c0_i32_0 = arith.constant 0 : i32
    %c0_i32_1 = arith.constant 0 : i32
    return %c0_i32, %c0_i32_0 : i32, i32
  }
  func.func @transform_11(%arg0: i32) -> (i32, i32) {
    %c0_i32 = arith.constant 0 : i32
    %c0_i32_0 = arith.constant 0 : i32
    %c0_i32_1 = arith.constant 0 : i32
    return %c0_i32, %c0_i32_0 : i32, i32
  }
  func.func @transform_12(%arg0: i32) -> (i32, i32) {
    %c0_i32 = arith.constant 0 : i32
    %c0_i32_0 = arith.constant 0 : i32
    %c0_i32_1 = arith.constant 0 : i32
    return %c0_i32, %c0_i32_0 : i32, i32
  }
  func.func @transform_13(%arg0: i32) -> (i32, i32) {
    %c0_i32 = arith.constant 0 : i32
    %c0_i32_0 = arith.constant 0 : i32
    %c0_i32_1 = arith.constant 0 : i32
    return %c0_i32, %c0_i32_0 : i32, i32
  }
  func.func @transform_14(%arg0: i32) -> (i32, i32) {
    %c0_i32 = arith.constant 0 : i32
    %c0_i32_0 = arith.constant 0 : i32
    %c0_i32_1 = arith.constant 0 : i32
    return %c0_i32, %c0_i32_0 : i32, i32
  }
  func.func @transform_15(%arg0: i32) -> (i32, i32) {
    %c0_i32 = arith.constant 0 : i32
    %c0_i32_0 = arith.constant 0 : i32
    %c0_i32_1 = arith.constant 0 : i32
    return %c0_i32, %c0_i32_0 : i32, i32
  }
  func.func @transform_16(%arg0: i32) -> (i32, i32) {
    %c0_i32 = arith.constant 0 : i32
    %c0_i32_0 = arith.constant 0 : i32
    %c0_i32_1 = arith.constant 0 : i32
    return %c0_i32, %c0_i32_0 : i32, i32
  }
  func.func @transform_17(%arg0: i32) -> (i32, i32) {
    %c0_i32 = arith.constant 0 : i32
    %c0_i32_0 = arith.constant 0 : i32
    %c0_i32_1 = arith.constant 0 : i32
    return %c0_i32, %c0_i32_0 : i32, i32
  }
  func.func @transform_18(%arg0: i32) -> (i32, i32) {
    %c0_i32 = arith.constant 0 : i32
    %c0_i32_0 = arith.constant 0 : i32
    %c0_i32_1 = arith.constant 0 : i32
    return %c0_i32, %c0_i32_0 : i32, i32
  }
  func.func @transform_19(%arg0: i32) -> (i32, i32) {
    %c0_i32 = arith.constant 0 : i32
    %c0_i32_0 = arith.constant 0 : i32
    %c0_i32_1 = arith.constant 0 : i32
    return %c0_i32, %c0_i32_0 : i32, i32
  }
  func.func @transform_20(%arg0: i32) -> (i32, i32) {
    %c0_i32 = arith.constant 0 : i32
    %c0_i32_0 = arith.constant 0 : i32
    %c0_i32_1 = arith.constant 0 : i32
    return %c0_i32, %c0_i32_0 : i32, i32
  }
  func.func @transform_21(%arg0: i32) -> (i32, i32) {
    %c0_i32 = arith.constant 0 : i32
    %c0_i32_0 = arith.constant 0 : i32
    %c0_i32_1 = arith.constant 0 : i32
    return %c0_i32, %c0_i32_0 : i32, i32
  }
  func.func @transform_22(%arg0: i32) -> (i32, i32, i32) {
    %c0_i32 = arith.constant 0 : i32
    %c0_i32_0 = arith.constant 0 : i32
    %c0_i32_1 = arith.constant 0 : i32
    return %arg0, %c0_i32, %c0_i32_0 : i32, i32, i32
  }
}

</mosaic_0001>

<llo_original>
// kernel: transformer_decoder_layer.1
$region0: #{transformer_decoder_layer.1}
  #allocation0 [shape = 'u32[]', space=smem, size = 0x4, offset = 0x4, fixed_abs, tag = 'smem constant byte address 0x4 - core index']
  #allocation1 [shape = 'u32[144,128]{1,0:T(1,128)}', space=vmem, size = 0x12000, scoped, tag = 'internal scratch']
  %s0 = inlined_call_operand.vmem [shape: f32[2,8,32], index: 0, kind: input, shape index: {}]
  %s1 = inlined_call_operand.vmem [shape: f32[2,16,32], index: 1, kind: input, shape index: {}]
  %s2 = inlined_call_operand.hbm [shape: bf16[32,96], index: 2, kind: input, shape index: {}]
  %s3 = inlined_call_operand.hbm [shape: f32[1,96], index: 3, kind: input, shape index: {}]
  %s4 = inlined_call_operand.hbm [shape: bf16[32,32], index: 4, kind: input, shape index: {}]
  %s5 = inlined_call_operand.hbm [shape: f32[1,32], index: 5, kind: input, shape index: {}]
  %s6 = inlined_call_operand.hbm [shape: f32[1,32], index: 6, kind: input, shape index: {}]
  %s7 = inlined_call_operand.hbm [shape: f32[1,32], index: 7, kind: input, shape index: {}]
  %s8 = inlined_call_operand.vmem [shape: bf16[32,32], index: 8, kind: input, shape index: {}]
  %s9 = inlined_call_operand.hbm [shape: f32[1,32], index: 9, kind: input, shape index: {}]
  %s10 = inlined_call_operand.hbm [shape: bf16[32,64], index: 10, kind: input, shape index: {}]
  %s11 = inlined_call_operand.hbm [shape: f32[1,64], index: 11, kind: input, shape index: {}]
  %s12 = inlined_call_operand.hbm [shape: bf16[32,32], index: 12, kind: input, shape index: {}]
  %s13 = inlined_call_operand.hbm [shape: f32[1,32], index: 13, kind: input, shape index: {}]
  %s14 = inlined_call_operand.hbm [shape: f32[1,32], index: 14, kind: input, shape index: {}]
  %s15 = inlined_call_operand.hbm [shape: f32[1,32], index: 15, kind: input, shape index: {}]
  %s16 = inlined_call_operand.hbm [shape: bf16[32,64], index: 16, kind: input, shape index: {}]
  %s17 = inlined_call_operand.vmem [shape: f32[1,64], index: 17, kind: input, shape index: {}]
  %s18 = inlined_call_operand.vmem [shape: bf16[64,32], index: 18, kind: input, shape index: {}]
  %s19 = inlined_call_operand.vmem [shape: f32[1,32], index: 19, kind: input, shape index: {}]
  %s20 = inlined_call_operand.vmem [shape: f32[1,32], index: 20, kind: input, shape index: {}]
  %s21 = inlined_call_operand.vmem [shape: f32[1,32], index: 21, kind: input, shape index: {}]
  %s22 = inlined_call_operand.hbm [shape: f32[2,8,32], index: 22, kind: output, shape index: {}]
  %s23 = sld [smem:[#allocation0]]
  $region177: #{transformer_decoder_layer.1} parent=0
    _
  %s25 = ssub.s32 1, %s23
  %s26 = scalar_select 0, %s25, %s23
  $region1: #{transformer_decoder_layer.1} parent=0
    #allocation2 [shape = 'u8[8192]{0}', space=vmem, size = 0x2000, scoped, tag = 'input window, operand 2, single buffered']
    #allocation3 [shape = 's32[2]{0}', space=sflag, size = 0x8, scoped, tag = 'scoped memory for transformer_decoder_layer.1']
    #allocation4 [shape = 's32[2]{0}', space=sflag, size = 0x8, scoped, tag = 'scoped memory for transformer_decoder_layer.1']
    #allocation5 [shape = 'u8[512]{0}', space=vmem, size = 0x400, scoped, tag = 'input window, operand 3, single buffered']
    #allocation6 [shape = 's32[1]{0}', space=sflag, size = 0x4, scoped, tag = 'scoped memory for transformer_decoder_layer.1']
    #allocation7 [shape = 'u8[8192]{0}', space=vmem, size = 0x2000, scoped, tag = 'input window, operand 4, single buffered']
    #allocation8 [shape = 'u8[512]{0}', space=vmem, size = 0x400, scoped, tag = 'input window, operand 5, single buffered']
    #allocation9 [shape = 's32[1]{0}', space=sflag, size = 0x4, scoped, tag = 'scoped memory for transformer_decoder_layer.1']
    #allocation10 [shape = 'u8[512]{0}', space=vmem, size = 0x400, scoped, tag = 'input window, operand 6, single buffered']
    #allocation11 [shape = 'u8[512]{0}', space=vmem, size = 0x400, scoped, tag = 'input window, operand 7, single buffered']
    #allocation12 [shape = 's32[1]{0}', space=sflag, size = 0x4, scoped, tag = 'scoped memory for transformer_decoder_layer.1']
    #allocation13 [shape = 'u8[512]{0}', space=vmem, size = 0x400, scoped, tag = 'input window, operand 9, single buffered']
    #allocation14 [shape = 'u8[8192]{0}', space=vmem, size = 0x2000, scoped, tag = 'input window, operand 10, single buffered']
    #allocation15 [shape = 's32[1]{0}', space=sflag, size = 0x4, scoped, tag = 'scoped memory for transformer_decoder_layer.1']
    #allocation16 [shape = 'u8[512]{0}', space=vmem, size = 0x400, scoped, tag = 'input window, operand 11, single buffered']
    #allocation17 [shape = 'u8[8192]{0}', space=vmem, size = 0x2000, scoped, tag = 'input window, operand 12, single buffered']
    #allocation18 [shape = 's32[1]{0}', space=sflag, size = 0x4, scoped, tag = 'scoped memory for transformer_decoder_layer.1']
    #allocation19 [shape = 'u8[512]{0}', space=vmem, size = 0x400, scoped, tag = 'input window, operand 13, single buffered']
    #allocation20 [shape = 'u8[512]{0}', space=vmem, size = 0x400, scoped, tag = 'input window, operand 14, single buffered']
    #allocation21 [shape = 's32[1]{0}', space=sflag, size = 0x4, scoped, tag = 'scoped memory for transformer_decoder_layer.1']
    #allocation22 [shape = 'u8[512]{0}', space=vmem, size = 0x400, scoped, tag = 'input window, operand 15, single buffered']
    #allocation23 [shape = 'u8[8192]{0}', space=vmem, size = 0x2000, scoped, tag = 'input window, operand 16, single buffered']
    #allocation24 [shape = 's32[1]{0}', space=sflag, size = 0x4, scoped, tag = 'scoped memory for transformer_decoder_layer.1']
    #allocation25 [shape = 'u8[8192]{0}', space=vmem, size = 0x2000, scoped, tag = 'output window, operand 0']
    %27 = vsyncpa [#allocation3], 0
    %28 = vsyncpa [#allocation6], 0
    %29 = vsyncpa [#allocation9], 0
    %30 = vsyncpa [#allocation12], 0
    %31 = vsyncpa [#allocation15], 0
    %32 = vsyncpa [#allocation18], 0
    %33 = vsyncpa [#allocation21], 0
    %34 = vsyncpa [#allocation24], 0
    %35 = vsyncpa [#allocation4], 0
    %s36 = scalar_lea.sflag [#allocation4], 1
    %37 = vsyncpa %s36, 0
    loop: start=0, step=1, limit=4
    $region2: #{transformer_decoder_layer.1} parent=1 // loop_pre_header
      _
    $region3: #{transformer_decoder_layer.1} parent=1 // loop_header
      %s39 = sphi 0, %s43
      %p40 = scmp.ge.s32.totalorder %s39, 4
      %s49 = sphi 0, %s51
      %s52 = sphi 0, %s49
      %s53 = sphi 0, %s52
      %s69 = sphi 0, %s53
      %s75 = sphi 0, %s77
      %s78 = sphi 0, %s75
      %s79 = sphi 0, %s78
      %s95 = sphi 0, %s79
      %s99 = sphi 0, %s99
      %s101 = sphi 0, %s99
      %s102 = sphi 0, %s101
      %s116 = sphi 0, %s102
      %s120 = sphi 0, %s120
      %s122 = sphi 0, %s120
      %s123 = sphi 0, %s122
      %s137 = sphi 0, %s123
      %s141 = sphi 0, %s141
      %s143 = sphi 0, %s141
      %s144 = sphi 0, %s143
      %s158 = sphi 0, %s144
      %s162 = sphi 0, %s162
      %s164 = sphi 0, %s162
      %s165 = sphi 0, %s164
      %s179 = sphi 0, %s165
      %s183 = sphi 0, %s183
      %s185 = sphi 0, %s183
      %s186 = sphi 0, %s185
      %s200 = sphi 0, %s186
      %s204 = sphi 0, %s204
      %s206 = sphi 0, %s204
      %s207 = sphi 0, %s206
      %s221 = sphi 0, %s207
      %s225 = sphi 0, %s225
      %s227 = sphi 0, %s225
      %s228 = sphi 0, %s227
      %s242 = sphi 0, %s228
      %s246 = sphi 0, %s246
      %s248 = sphi 0, %s246
      %s249 = sphi 0, %s248
      %s263 = sphi 0, %s249
      %s267 = sphi 0, %s267
      %s269 = sphi 0, %s267
      %s270 = sphi 0, %s269
      %s284 = sphi 0, %s270
      %s288 = sphi 0, %s288
      %s290 = sphi 0, %s288
      %s291 = sphi 0, %s290
      %s305 = sphi 0, %s291
      %s309 = sphi 0, %s309
      %s311 = sphi 0, %s309
      %s312 = sphi 0, %s311
      %s326 = sphi 0, %s312
      %s330 = sphi 0, %s330
      %s332 = sphi 0, %s330
      %s333 = sphi 0, %s332
      %s347 = sphi 0, %s333
      %s351 = sphi 0, %s351
      %s353 = sphi 0, %s351
      %s354 = sphi 0, %s353
      %s368 = sphi 0, %s354
      %s372 = sphi 0, %s372
      %s374 = sphi 0, %s372
      %s375 = sphi 0, %s374
      %s389 = sphi 0, %s375
      %s393 = sphi 0, %s393
      %s395 = sphi 0, %s393
      %s396 = sphi 0, %s395
      %s410 = sphi 0, %s396
      %s414 = sphi 0, %s414
      %s416 = sphi 0, %s414
      %s417 = sphi 0, %s416
      %s431 = sphi 0, %s417
      %s435 = sphi 0, %s435
      %s437 = sphi 0, %s435
      %s438 = sphi 0, %s437
      %s452 = sphi 0, %s438
      %s456 = sphi 0, %s456
      %s458 = sphi 0, %s456
      %s459 = sphi 0, %s458
      %s473 = sphi 0, %s459
      %s477 = sphi 0, %s477
      %s479 = sphi 0, %s477
      %s480 = sphi 0, %s479
      %s494 = sphi 0, %s480
      %s498 = sphi 0, %s498
      %s500 = sphi 0, %s498
      %s501 = sphi 0, %s500
      %s515 = sphi 0, %s501
      %s521 = sphi 0, %s523
      %s524 = sphi 0, %s521
      %s525 = sphi 0, %s524
      %s541 = sphi 0, %s525
    $region4: #{transformer_decoder_layer.1} parent=1 // loop_header_branch
      %42 = sbr.rel (%p40) target = $region8
    $region5: #{transformer_decoder_layer.1} parent=1 // loop_body
      %s44 = ssub.s32 %s39, 1
      %s45 = ssub.s32 %s39, 2
      %s46 = sadd.s32 %s39, 1
      %s47 = ssub.s32 %s39, %s46
      %p48 = scmp.eq.s32.totalorder %s47, 0
      %s50 = sadd.s32 %s49, 1
      %s51 = scalar_select %p48, %s49, %s50
      %p54 = pneg %p48
      %p55 = scmp.eq.s32.totalorder %s39, 1
      %p56 = por %p54, %p55
      %p57 = scmp.ne.s32.totalorder %s49, %s52
      %p58 = scmp.eq.s32.totalorder %s39, 0
      %p59 = por %p57, %p58
      %p60 = scmp.ne.s32.totalorder %s49, %s52
      %p61 = scmp.eq.s32.totalorder %s44, 1
      %p62 = por %p60, %p61
      %p63 = scmp.ne.s32.totalorder %s52, %s53
      %p64 = scmp.eq.s32.totalorder %s44, 0
      %p65 = por %p63, %p64
      %p66 = scmp.ne.s32.totalorder %s52, %s53
      %p67 = scmp.eq.s32.totalorder %s45, 1
      %p68 = por %p66, %p67
      %p70 = scmp.ne.s32.totalorder %s53, %s69
      %p71 = scmp.eq.s32.totalorder %s45, 0
      %p72 = por %p70, %p71
      %s73 = ssub.s32 %s39, %s46
      %p74 = scmp.eq.s32.totalorder %s73, 0
      %s76 = sadd.s32 %s75, 1
      %s77 = scalar_select %p74, %s75, %s76
      %p80 = pneg %p74
      %p81 = scmp.eq.s32.totalorder %s39, 1
      %p82 = por %p80, %p81
      %p83 = scmp.ne.s32.totalorder %s75, %s78
      %p84 = scmp.eq.s32.totalorder %s39, 0
      %p85 = por %p83, %p84
      %p86 = scmp.ne.s32.totalorder %s75, %s78
      %p87 = scmp.eq.s32.totalorder %s44, 1
      %p88 = por %p86, %p87
      %p89 = scmp.ne.s32.totalorder %s78, %s79
      %p90 = scmp.eq.s32.totalorder %s44, 0
      %p91 = por %p89, %p90
      %p92 = scmp.ne.s32.totalorder %s78, %s79
      %p93 = scmp.eq.s32.totalorder %s45, 1
      %p94 = por %p92, %p93
      %p96 = scmp.ne.s32.totalorder %s79, %s95
      %p97 = scmp.eq.s32.totalorder %s45, 0
      %p98 = por %p96, %p97
      %s100 = sadd.s32 %s99, 1
      %p103 = scmp.eq.s32.totalorder %s39, 1
      %p104 = scmp.ne.s32.totalorder %s99, %s101
      %p105 = scmp.eq.s32.totalorder %s39, 0
      %p106 = por %p104, %p105
      %p107 = scmp.ne.s32.totalorder %s99, %s101
      %p108 = scmp.eq.s32.totalorder %s44, 1
      %p109 = por %p107, %p108
      %p110 = scmp.ne.s32.totalorder %s101, %s102
      %p111 = scmp.eq.s32.totalorder %s44, 0
      %p112 = por %p110, %p111
      %p113 = scmp.ne.s32.totalorder %s101, %s102
      %p114 = scmp.eq.s32.totalorder %s45, 1
      %p115 = por %p113, %p114
      %p117 = scmp.ne.s32.totalorder %s102, %s116
      %p118 = scmp.eq.s32.totalorder %s45, 0
      %p119 = por %p117, %p118
      %s121 = sadd.s32 %s120, 1
      %p124 = scmp.eq.s32.totalorder %s39, 1
      %p125 = scmp.ne.s32.totalorder %s120, %s122
      %p126 = scmp.eq.s32.totalorder %s39, 0
      %p127 = por %p125, %p126
      %p128 = scmp.ne.s32.totalorder %s120, %s122
      %p129 = scmp.eq.s32.totalorder %s44, 1
      %p130 = por %p128, %p129
      %p131 = scmp.ne.s32.totalorder %s122, %s123
      %p132 = scmp.eq.s32.totalorder %s44, 0
      %p133 = por %p131, %p132
      %p134 = scmp.ne.s32.totalorder %s122, %s123
      %p135 = scmp.eq.s32.totalorder %s45, 1
      %p136 = por %p134, %p135
      %p138 = scmp.ne.s32.totalorder %s123, %s137
      %p139 = scmp.eq.s32.totalorder %s45, 0
      %p140 = por %p138, %p139
      %s142 = sadd.s32 %s141, 1
      %p145 = scmp.eq.s32.totalorder %s39, 1
      %p146 = scmp.ne.s32.totalorder %s141, %s143
      %p147 = scmp.eq.s32.totalorder %s39, 0
      %p148 = por %p146, %p147
      %p149 = scmp.ne.s32.totalorder %s141, %s143
      %p150 = scmp.eq.s32.totalorder %s44, 1
      %p151 = por %p149, %p150
      %p152 = scmp.ne.s32.totalorder %s143, %s144
      %p153 = scmp.eq.s32.totalorder %s44, 0
      %p154 = por %p152, %p153
      %p155 = scmp.ne.s32.totalorder %s143, %s144
      %p156 = scmp.eq.s32.totalorder %s45, 1
      %p157 = por %p155, %p156
      %p159 = scmp.ne.s32.totalorder %s144, %s158
      %p160 = scmp.eq.s32.totalorder %s45, 0
      %p161 = por %p159, %p160
      %s163 = sadd.s32 %s162, 1
      %p166 = scmp.eq.s32.totalorder %s39, 1
      %p167 = scmp.ne.s32.totalorder %s162, %s164
      %p168 = scmp.eq.s32.totalorder %s39, 0
      %p169 = por %p167, %p168
      %p170 = scmp.ne.s32.totalorder %s162, %s164
      %p171 = scmp.eq.s32.totalorder %s44, 1
      %p172 = por %p170, %p171
      %p173 = scmp.ne.s32.totalorder %s164, %s165
      %p174 = scmp.eq.s32.totalorder %s44, 0
      %p175 = por %p173, %p174
      %p176 = scmp.ne.s32.totalorder %s164, %s165
      %p177 = scmp.eq.s32.totalorder %s45, 1
      %p178 = por %p176, %p177
      %p180 = scmp.ne.s32.totalorder %s165, %s179
      %p181 = scmp.eq.s32.totalorder %s45, 0
      %p182 = por %p180, %p181
      %s184 = sadd.s32 %s183, 1
      %p187 = scmp.eq.s32.totalorder %s39, 1
      %p188 = scmp.ne.s32.totalorder %s183, %s185
      %p189 = scmp.eq.s32.totalorder %s39, 0
      %p190 = por %p188, %p189
      %p191 = scmp.ne.s32.totalorder %s183, %s185
      %p192 = scmp.eq.s32.totalorder %s44, 1
      %p193 = por %p191, %p192
      %p194 = scmp.ne.s32.totalorder %s185, %s186
      %p195 = scmp.eq.s32.totalorder %s44, 0
      %p196 = por %p194, %p195
      %p197 = scmp.ne.s32.totalorder %s185, %s186
      %p198 = scmp.eq.s32.totalorder %s45, 1
      %p199 = por %p197, %p198
      %p201 = scmp.ne.s32.totalorder %s186, %s200
      %p202 = scmp.eq.s32.totalorder %s45, 0
      %p203 = por %p201, %p202
      %s205 = sadd.s32 %s204, 1
      %p208 = scmp.eq.s32.totalorder %s39, 1
      %p209 = scmp.ne.s32.totalorder %s204, %s206
      %p210 = scmp.eq.s32.totalorder %s39, 0
      %p211 = por %p209, %p210
      %p212 = scmp.ne.s32.totalorder %s204, %s206
      %p213 = scmp.eq.s32.totalorder %s44, 1
      %p214 = por %p212, %p213
      %p215 = scmp.ne.s32.totalorder %s206, %s207
      %p216 = scmp.eq.s32.totalorder %s44, 0
      %p217 = por %p215, %p216
      %p218 = scmp.ne.s32.totalorder %s206, %s207
      %p219 = scmp.eq.s32.totalorder %s45, 1
      %p220 = por %p218, %p219
      %p222 = scmp.ne.s32.totalorder %s207, %s221
      %p223 = scmp.eq.s32.totalorder %s45, 0
      %p224 = por %p222, %p223
      %s226 = sadd.s32 %s225, 1
      %p229 = scmp.eq.s32.totalorder %s39, 1
      %p230 = scmp.ne.s32.totalorder %s225, %s227
      %p231 = scmp.eq.s32.totalorder %s39, 0
      %p232 = por %p230, %p231
      %p233 = scmp.ne.s32.totalorder %s225, %s227
      %p234 = scmp.eq.s32.totalorder %s44, 1
      %p235 = por %p233, %p234
      %p236 = scmp.ne.s32.totalorder %s227, %s228
      %p237 = scmp.eq.s32.totalorder %s44, 0
      %p238 = por %p236, %p237
      %p239 = scmp.ne.s32.totalorder %s227, %s228
      %p240 = scmp.eq.s32.totalorder %s45, 1
      %p241 = por %p239, %p240
      %p243 = scmp.ne.s32.totalorder %s228, %s242
      %p244 = scmp.eq.s32.totalorder %s45, 0
      %p245 = por %p243, %p244
      %s247 = sadd.s32 %s246, 1
      %p250 = scmp.eq.s32.totalorder %s39, 1
      %p251 = scmp.ne.s32.totalorder %s246, %s248
      %p252 = scmp.eq.s32.totalorder %s39, 0
      %p253 = por %p251, %p252
      %p254 = scmp.ne.s32.totalorder %s246, %s248
      %p255 = scmp.eq.s32.totalorder %s44, 1
      %p256 = por %p254, %p255
      %p257 = scmp.ne.s32.totalorder %s248, %s249
      %p258 = scmp.eq.s32.totalorder %s44, 0
      %p259 = por %p257, %p258
      %p260 = scmp.ne.s32.totalorder %s248, %s249
      %p261 = scmp.eq.s32.totalorder %s45, 1
      %p262 = por %p260, %p261
      %p264 = scmp.ne.s32.totalorder %s249, %s263
      %p265 = scmp.eq.s32.totalorder %s45, 0
      %p266 = por %p264, %p265
      %s268 = sadd.s32 %s267, 1
      %p271 = scmp.eq.s32.totalorder %s39, 1
      %p272 = scmp.ne.s32.totalorder %s267, %s269
      %p273 = scmp.eq.s32.totalorder %s39, 0
      %p274 = por %p272, %p273
      %p275 = scmp.ne.s32.totalorder %s267, %s269
      %p276 = scmp.eq.s32.totalorder %s44, 1
      %p277 = por %p275, %p276
      %p278 = scmp.ne.s32.totalorder %s269, %s270
      %p279 = scmp.eq.s32.totalorder %s44, 0
      %p280 = por %p278, %p279
      %p281 = scmp.ne.s32.totalorder %s269, %s270
      %p282 = scmp.eq.s32.totalorder %s45, 1
      %p283 = por %p281, %p282
      %p285 = scmp.ne.s32.totalorder %s270, %s284
      %p286 = scmp.eq.s32.totalorder %s45, 0
      %p287 = por %p285, %p286
      %s289 = sadd.s32 %s288, 1
      %p292 = scmp.eq.s32.totalorder %s39, 1
      %p293 = scmp.ne.s32.totalorder %s288, %s290
      %p294 = scmp.eq.s32.totalorder %s39, 0
      %p295 = por %p293, %p294
      %p296 = scmp.ne.s32.totalorder %s288, %s290
      %p297 = scmp.eq.s32.totalorder %s44, 1
      %p298 = por %p296, %p297
      %p299 = scmp.ne.s32.totalorder %s290, %s291
      %p300 = scmp.eq.s32.totalorder %s44, 0
      %p301 = por %p299, %p300
      %p302 = scmp.ne.s32.totalorder %s290, %s291
      %p303 = scmp.eq.s32.totalorder %s45, 1
      %p304 = por %p302, %p303
      %p306 = scmp.ne.s32.totalorder %s291, %s305
      %p307 = scmp.eq.s32.totalorder %s45, 0
      %p308 = por %p306, %p307
      %s310 = sadd.s32 %s309, 1
      %p313 = scmp.eq.s32.totalorder %s39, 1
      %p314 = scmp.ne.s32.totalorder %s309, %s311
      %p315 = scmp.eq.s32.totalorder %s39, 0
      %p316 = por %p314, %p315
      %p317 = scmp.ne.s32.totalorder %s309, %s311
      %p318 = scmp.eq.s32.totalorder %s44, 1
      %p319 = por %p317, %p318
      %p320 = scmp.ne.s32.totalorder %s311, %s312
      %p321 = scmp.eq.s32.totalorder %s44, 0
      %p322 = por %p320, %p321
      %p323 = scmp.ne.s32.totalorder %s311, %s312
      %p324 = scmp.eq.s32.totalorder %s45, 1
      %p325 = por %p323, %p324
      %p327 = scmp.ne.s32.totalorder %s312, %s326
      %p328 = scmp.eq.s32.totalorder %s45, 0
      %p329 = por %p327, %p328
      %s331 = sadd.s32 %s330, 1
      %p334 = scmp.eq.s32.totalorder %s39, 1
      %p335 = scmp.ne.s32.totalorder %s330, %s332
      %p336 = scmp.eq.s32.totalorder %s39, 0
      %p337 = por %p335, %p336
      %p338 = scmp.ne.s32.totalorder %s330, %s332
      %p339 = scmp.eq.s32.totalorder %s44, 1
      %p340 = por %p338, %p339
      %p341 = scmp.ne.s32.totalorder %s332, %s333
      %p342 = scmp.eq.s32.totalorder %s44, 0
      %p343 = por %p341, %p342
      %p344 = scmp.ne.s32.totalorder %s332, %s333
      %p345 = scmp.eq.s32.totalorder %s45, 1
      %p346 = por %p344, %p345
      %p348 = scmp.ne.s32.totalorder %s333, %s347
      %p349 = scmp.eq.s32.totalorder %s45, 0
      %p350 = por %p348, %p349
      %s352 = sadd.s32 %s351, 1
      %p355 = scmp.eq.s32.totalorder %s39, 1
      %p356 = scmp.ne.s32.totalorder %s351, %s353
      %p357 = scmp.eq.s32.totalorder %s39, 0
      %p358 = por %p356, %p357
      %p359 = scmp.ne.s32.totalorder %s351, %s353
      %p360 = scmp.eq.s32.totalorder %s44, 1
      %p361 = por %p359, %p360
      %p362 = scmp.ne.s32.totalorder %s353, %s354
      %p363 = scmp.eq.s32.totalorder %s44, 0
      %p364 = por %p362, %p363
      %p365 = scmp.ne.s32.totalorder %s353, %s354
      %p366 = scmp.eq.s32.totalorder %s45, 1
      %p367 = por %p365, %p366
      %p369 = scmp.ne.s32.totalorder %s354, %s368
      %p370 = scmp.eq.s32.totalorder %s45, 0
      %p371 = por %p369, %p370
      %s373 = sadd.s32 %s372, 1
      %p376 = scmp.eq.s32.totalorder %s39, 1
      %p377 = scmp.ne.s32.totalorder %s372, %s374
      %p378 = scmp.eq.s32.totalorder %s39, 0
      %p379 = por %p377, %p378
      %p380 = scmp.ne.s32.totalorder %s372, %s374
      %p381 = scmp.eq.s32.totalorder %s44, 1
      %p382 = por %p380, %p381
      %p383 = scmp.ne.s32.totalorder %s374, %s375
      %p384 = scmp.eq.s32.totalorder %s44, 0
      %p385 = por %p383, %p384
      %p386 = scmp.ne.s32.totalorder %s374, %s375
      %p387 = scmp.eq.s32.totalorder %s45, 1
      %p388 = por %p386, %p387
      %p390 = scmp.ne.s32.totalorder %s375, %s389
      %p391 = scmp.eq.s32.totalorder %s45, 0
      %p392 = por %p390, %p391
      %s394 = sadd.s32 %s393, 1
      %p397 = scmp.eq.s32.totalorder %s39, 1
      %p398 = scmp.ne.s32.totalorder %s393, %s395
      %p399 = scmp.eq.s32.totalorder %s39, 0
      %p400 = por %p398, %p399
      %p401 = scmp.ne.s32.totalorder %s393, %s395
      %p402 = scmp.eq.s32.totalorder %s44, 1
      %p403 = por %p401, %p402
      %p404 = scmp.ne.s32.totalorder %s395, %s396
      %p405 = scmp.eq.s32.totalorder %s44, 0
      %p406 = por %p404, %p405
      %p407 = scmp.ne.s32.totalorder %s395, %s396
      %p408 = scmp.eq.s32.totalorder %s45, 1
      %p409 = por %p407, %p408
      %p411 = scmp.ne.s32.totalorder %s396, %s410
      %p412 = scmp.eq.s32.totalorder %s45, 0
      %p413 = por %p411, %p412
      %s415 = sadd.s32 %s414, 1
      %p418 = scmp.eq.s32.totalorder %s39, 1
      %p419 = scmp.ne.s32.totalorder %s414, %s416
      %p420 = scmp.eq.s32.totalorder %s39, 0
      %p421 = por %p419, %p420
      %p422 = scmp.ne.s32.totalorder %s414, %s416
      %p423 = scmp.eq.s32.totalorder %s44, 1
      %p424 = por %p422, %p423
      %p425 = scmp.ne.s32.totalorder %s416, %s417
      %p426 = scmp.eq.s32.totalorder %s44, 0
      %p427 = por %p425, %p426
      %p428 = scmp.ne.s32.totalorder %s416, %s417
      %p429 = scmp.eq.s32.totalorder %s45, 1
      %p430 = por %p428, %p429
      %p432 = scmp.ne.s32.totalorder %s417, %s431
      %p433 = scmp.eq.s32.totalorder %s45, 0
      %p434 = por %p432, %p433
      %s436 = sadd.s32 %s435, 1
      %p439 = scmp.eq.s32.totalorder %s39, 1
      %p440 = scmp.ne.s32.totalorder %s435, %s437
      %p441 = scmp.eq.s32.totalorder %s39, 0
      %p442 = por %p440, %p441
      %p443 = scmp.ne.s32.totalorder %s435, %s437
      %p444 = scmp.eq.s32.totalorder %s44, 1
      %p445 = por %p443, %p444
      %p446 = scmp.ne.s32.totalorder %s437, %s438
      %p447 = scmp.eq.s32.totalorder %s44, 0
      %p448 = por %p446, %p447
      %p449 = scmp.ne.s32.totalorder %s437, %s438
      %p450 = scmp.eq.s32.totalorder %s45, 1
      %p451 = por %p449, %p450
      %p453 = scmp.ne.s32.totalorder %s438, %s452
      %p454 = scmp.eq.s32.totalorder %s45, 0
      %p455 = por %p453, %p454
      %s457 = sadd.s32 %s456, 1
      %p460 = scmp.eq.s32.totalorder %s39, 1
      %p461 = scmp.ne.s32.totalorder %s456, %s458
      %p462 = scmp.eq.s32.totalorder %s39, 0
      %p463 = por %p461, %p462
      %p464 = scmp.ne.s32.totalorder %s456, %s458
      %p465 = scmp.eq.s32.totalorder %s44, 1
      %p466 = por %p464, %p465
      %p467 = scmp.ne.s32.totalorder %s458, %s459
      %p468 = scmp.eq.s32.totalorder %s44, 0
      %p469 = por %p467, %p468
      %p470 = scmp.ne.s32.totalorder %s458, %s459
      %p471 = scmp.eq.s32.totalorder %s45, 1
      %p472 = por %p470, %p471
      %p474 = scmp.ne.s32.totalorder %s459, %s473
      %p475 = scmp.eq.s32.totalorder %s45, 0
      %p476 = por %p474, %p475
      %s478 = sadd.s32 %s477, 1
      %p481 = scmp.eq.s32.totalorder %s39, 1
      %p482 = scmp.ne.s32.totalorder %s477, %s479
      %p483 = scmp.eq.s32.totalorder %s39, 0
      %p484 = por %p482, %p483
      %p485 = scmp.ne.s32.totalorder %s477, %s479
      %p486 = scmp.eq.s32.totalorder %s44, 1
      %p487 = por %p485, %p486
      %p488 = scmp.ne.s32.totalorder %s479, %s480
      %p489 = scmp.eq.s32.totalorder %s44, 0
      %p490 = por %p488, %p489
      %p491 = scmp.ne.s32.totalorder %s479, %s480
      %p492 = scmp.eq.s32.totalorder %s45, 1
      %p493 = por %p491, %p492
      %p495 = scmp.ne.s32.totalorder %s480, %s494
      %p496 = scmp.eq.s32.totalorder %s45, 0
      %p497 = por %p495, %p496
      %s499 = sadd.s32 %s498, 1
      %p502 = scmp.eq.s32.totalorder %s39, 1
      %p503 = scmp.ne.s32.totalorder %s498, %s500
      %p504 = scmp.eq.s32.totalorder %s39, 0
      %p505 = por %p503, %p504
      %p506 = scmp.ne.s32.totalorder %s498, %s500
      %p507 = scmp.eq.s32.totalorder %s44, 1
      %p508 = por %p506, %p507
      %p509 = scmp.ne.s32.totalorder %s500, %s501
      %p510 = scmp.eq.s32.totalorder %s44, 0
      %p511 = por %p509, %p510
      %p512 = scmp.ne.s32.totalorder %s500, %s501
      %p513 = scmp.eq.s32.totalorder %s45, 1
      %p514 = por %p512, %p513
      %p516 = scmp.ne.s32.totalorder %s501, %s515
      %p517 = scmp.eq.s32.totalorder %s45, 0
      %p518 = por %p516, %p517
      %s519 = ssub.s32 %s39, %s46
      %p520 = scmp.eq.s32.totalorder %s519, 0
      %s522 = sadd.s32 %s521, 1
      %s523 = scalar_select %p520, %s521, %s522
      %p526 = pneg %p520
      %p527 = scmp.eq.s32.totalorder %s39, 1
      %p528 = por %p526, %p527
      %p529 = scmp.ne.s32.totalorder %s521, %s524
      %p530 = scmp.eq.s32.totalorder %s39, 0
      %p531 = por %p529, %p530
      %p532 = scmp.ne.s32.totalorder %s521, %s524
      %p533 = scmp.eq.s32.totalorder %s44, 1
      %p534 = por %p532, %p533
      %p535 = scmp.ne.s32.totalorder %s524, %s525
      %p536 = scmp.eq.s32.totalorder %s44, 0
      %p537 = por %p535, %p536
      %p538 = scmp.ne.s32.totalorder %s524, %s525
      %p539 = scmp.eq.s32.totalorder %s45, 1
      %p540 = por %p538, %p539
      %p542 = scmp.ne.s32.totalorder %s525, %s541
      %p543 = scmp.eq.s32.totalorder %s45, 0
      %p544 = por %p542, %p543
      %p545 = scmp.le.s32.totalorder 1, %s39
      %p546 = scmp.lt.s32.totalorder %s39, 3
      %p547 = pnand %p545, %p546
      %p548 = pneg %p547
      // Predicated region
      $region9: #{transformer_decoder_layer.1} parent=5 // pred_check
        _
      $region10: #{transformer_decoder_layer.1} parent=5 // pred_check_branch
        %550 = sbr.rel (%p547) target = $region12
      $region11: #{transformer_decoder_layer.1} parent=5 // pred_region
        %s551 = ssub.s32 %s39, 1
        // Predicated region
        $region13: #{transformer_decoder_layer.1} parent=11 // pred_check
          %p552 = pneg %p112
        $region14: #{transformer_decoder_layer.1} parent=11 // pred_check_branch
          %554 = sbr.rel (%p552) target = $region16
        $region15: #{transformer_decoder_layer.1} parent=11 // pred_region
          %s556 = ssub.s32 256, 256
          %557 = vsyncadd [#allocation3], %s556
          %s558 = sshll.u32 [#allocation2], 4
          %s559 = int_to_ptr.vmem [resolvable:$true] %s558
          %564 = dma.hbm_to_vmem [thread:$0]  %s2, 256, %s559, [#allocation3], 64, 64, 4
        $region16: #{transformer_decoder_layer.1} parent=11 // pred_fallthru
          _
        // Predicated region
        $region17: #{transformer_decoder_layer.1} parent=11 // pred_check
          %p565 = pneg %p133
        $region18: #{transformer_decoder_layer.1} parent=11 // pred_check_branch
          %567 = sbr.rel (%p565) target = $region20
        $region19: #{transformer_decoder_layer.1} parent=11 // pred_region
          %s569 = ssub.s32 16, 16
          %570 = vsyncadd [#allocation6], %s569
          %s572 = sshll.u32 [#allocation5], 4
          %s573 = int_to_ptr.vmem [resolvable:$true] %s572
          %575 = dma.hbm_to_vmem [thread:$0]  %s3, 16, %s573, [#allocation6]
        $region20: #{transformer_decoder_layer.1} parent=11 // pred_fallthru
          _
        // Predicated region
        $region21: #{transformer_decoder_layer.1} parent=11 // pred_check
          %p576 = pneg %p154
        $region22: #{transformer_decoder_layer.1} parent=11 // pred_check_branch
          %578 = sbr.rel (%p576) target = $region24
        $region23: #{transformer_decoder_layer.1} parent=11 // pred_region
          %s580 = ssub.s32 256, 256
          %581 = vsyncadd [#allocation6], %s580
          %s582 = sshll.u32 [#allocation7], 4
          %s583 = int_to_ptr.vmem [resolvable:$true] %s582
          %588 = dma.hbm_to_vmem [thread:$0]  %s4, 256, %s583, [#allocation6], 64, 64, 4
        $region24: #{transformer_decoder_layer.1} parent=11 // pred_fallthru
          _
        // Predicated region
        $region25: #{transformer_decoder_layer.1} parent=11 // pred_check
          %p589 = pneg %p175
        $region26: #{transformer_decoder_layer.1} parent=11 // pred_check_branch
          %591 = sbr.rel (%p589) target = $region28
        $region27: #{transformer_decoder_layer.1} parent=11 // pred_region
          %s593 = ssub.s32 16, 16
          %594 = vsyncadd [#allocation9], %s593
          %s596 = sshll.u32 [#allocation8], 4
          %s597 = int_to_ptr.vmem [resolvable:$true] %s596
          %599 = dma.hbm_to_vmem [thread:$0]  %s5, 16, %s597, [#allocation9]
        $region28: #{transformer_decoder_layer.1} parent=11 // pred_fallthru
          _
        // Predicated region
        $region29: #{transformer_decoder_layer.1} parent=11 // pred_check
          %p600 = pneg %p196
        $region30: #{transformer_decoder_layer.1} parent=11 // pred_check_branch
          %602 = sbr.rel (%p600) target = $region32
        $region31: #{transformer_decoder_layer.1} parent=11 // pred_region
          %s604 = ssub.s32 16, 16
          %605 = vsyncadd [#allocation9], %s604
          %s607 = sshll.u32 [#allocation10], 4
          %s608 = int_to_ptr.vmem [resolvable:$true] %s607
          %610 = dma.hbm_to_vmem [thread:$0]  %s6, 16, %s608, [#allocation9]
        $region32: #{transformer_decoder_layer.1} parent=11 // pred_fallthru
          _
        // Predicated region
        $region33: #{transformer_decoder_layer.1} parent=11 // pred_check
          %p611 = pneg %p217
        $region34: #{transformer_decoder_layer.1} parent=11 // pred_check_branch
          %613 = sbr.rel (%p611) target = $region36
        $region35: #{transformer_decoder_layer.1} parent=11 // pred_region
          %s615 = ssub.s32 16, 16
          %616 = vsyncadd [#allocation12], %s615
          %s618 = sshll.u32 [#allocation11], 4
          %s619 = int_to_ptr.vmem [resolvable:$true] %s618
          %621 = dma.hbm_to_vmem [thread:$0]  %s7, 16, %s619, [#allocation12]
        $region36: #{transformer_decoder_layer.1} parent=11 // pred_fallthru
          _
        // Predicated region
        $region37: #{transformer_decoder_layer.1} parent=11 // pred_check
          %p622 = pneg %p238
        $region38: #{transformer_decoder_layer.1} parent=11 // pred_check_branch
          %624 = sbr.rel (%p622) target = $region40
        $region39: #{transformer_decoder_layer.1} parent=11 // pred_region
          _
        $region40: #{transformer_decoder_layer.1} parent=11 // pred_fallthru
          _
        // Predicated region
        $region41: #{transformer_decoder_layer.1} parent=11 // pred_check
          %p625 = pneg %p259
        $region42: #{transformer_decoder_layer.1} parent=11 // pred_check_branch
          %627 = sbr.rel (%p625) target = $region44
        $region43: #{transformer_decoder_layer.1} parent=11 // pred_region
          %s629 = ssub.s32 16, 16
          %630 = vsyncadd [#allocation12], %s629
          %s632 = sshll.u32 [#allocation13], 4
          %s633 = int_to_ptr.vmem [resolvable:$true] %s632
          %635 = dma.hbm_to_vmem [thread:$0]  %s9, 16, %s633, [#allocation12]
        $region44: #{transformer_decoder_layer.1} parent=11 // pred_fallthru
          _
        // Predicated region
        $region45: #{transformer_decoder_layer.1} parent=11 // pred_check
          %p636 = pneg %p280
        $region46: #{transformer_decoder_layer.1} parent=11 // pred_check_branch
          %638 = sbr.rel (%p636) target = $region48
        $region47: #{transformer_decoder_layer.1} parent=11 // pred_region
          %s640 = ssub.s32 256, 256
          %641 = vsyncadd [#allocation15], %s640
          %s642 = sshll.u32 [#allocation14], 4
          %s643 = int_to_ptr.vmem [resolvable:$true] %s642
          %648 = dma.hbm_to_vmem [thread:$0]  %s10, 256, %s643, [#allocation15], 64, 64, 4
        $region48: #{transformer_decoder_layer.1} parent=11 // pred_fallthru
          _
        // Predicated region
        $region49: #{transformer_decoder_layer.1} parent=11 // pred_check
          %p649 = pneg %p301
        $region50: #{transformer_decoder_layer.1} parent=11 // pred_check_branch
          %651 = sbr.rel (%p649) target = $region52
        $region51: #{transformer_decoder_layer.1} parent=11 // pred_region
          %s653 = ssub.s32 16, 16
          %654 = vsyncadd [#allocation15], %s653
          %s656 = sshll.u32 [#allocation16], 4
          %s657 = int_to_ptr.vmem [resolvable:$true] %s656
          %659 = dma.hbm_to_vmem [thread:$0]  %s11, 16, %s657, [#allocation15]
        $region52: #{transformer_decoder_layer.1} parent=11 // pred_fallthru
          _
        // Predicated region
        $region53: #{transformer_decoder_layer.1} parent=11 // pred_check
          %p660 = pneg %p322
        $region54: #{transformer_decoder_layer.1} parent=11 // pred_check_branch
          %662 = sbr.rel (%p660) target = $region56
        $region55: #{transformer_decoder_layer.1} parent=11 // pred_region
          %s664 = ssub.s32 256, 256
          %665 = vsyncadd [#allocation18], %s664
          %s666 = sshll.u32 [#allocation17], 4
          %s667 = int_to_ptr.vmem [resolvable:$true] %s666
          %672 = dma.hbm_to_vmem [thread:$0]  %s12, 256, %s667, [#allocation18], 64, 64, 4
        $region56: #{transformer_decoder_layer.1} parent=11 // pred_fallthru
          _
        // Predicated region
        $region57: #{transformer_decoder_layer.1} parent=11 // pred_check
          %p673 = pneg %p343
        $region58: #{transformer_decoder_layer.1} parent=11 // pred_check_branch
          %675 = sbr.rel (%p673) target = $region60
        $region59: #{transformer_decoder_layer.1} parent=11 // pred_region
          %s677 = ssub.s32 16, 16
          %678 = vsyncadd [#allocation18], %s677
          %s680 = sshll.u32 [#allocation19], 4
          %s681 = int_to_ptr.vmem [resolvable:$true] %s680
          %683 = dma.hbm_to_vmem [thread:$0]  %s13, 16, %s681, [#allocation18]
        $region60: #{transformer_decoder_layer.1} parent=11 // pred_fallthru
          _
        // Predicated region
        $region61: #{transformer_decoder_layer.1} parent=11 // pred_check
          %p684 = pneg %p364
        $region62: #{transformer_decoder_layer.1} parent=11 // pred_check_branch
          %686 = sbr.rel (%p684) target = $region64
        $region63: #{transformer_decoder_layer.1} parent=11 // pred_region
          %s688 = ssub.s32 16, 16
          %689 = vsyncadd [#allocation21], %s688
          %s691 = sshll.u32 [#allocation20], 4
          %s692 = int_to_ptr.vmem [resolvable:$true] %s691
          %694 = dma.hbm_to_vmem [thread:$0]  %s14, 16, %s692, [#allocation21]
        $region64: #{transformer_decoder_layer.1} parent=11 // pred_fallthru
          _
        // Predicated region
        $region65: #{transformer_decoder_layer.1} parent=11 // pred_check
          %p695 = pneg %p385
        $region66: #{transformer_decoder_layer.1} parent=11 // pred_check_branch
          %697 = sbr.rel (%p695) target = $region68
        $region67: #{transformer_decoder_layer.1} parent=11 // pred_region
          %s699 = ssub.s32 16, 16
          %700 = vsyncadd [#allocation21], %s699
          %s702 = sshll.u32 [#allocation22], 4
          %s703 = int_to_ptr.vmem [resolvable:$true] %s702
          %705 = dma.hbm_to_vmem [thread:$0]  %s15, 16, %s703, [#allocation21]
        $region68: #{transformer_decoder_layer.1} parent=11 // pred_fallthru
          _
        // Predicated region
        $region69: #{transformer_decoder_layer.1} parent=11 // pred_check
          %p706 = pneg %p406
        $region70: #{transformer_decoder_layer.1} parent=11 // pred_check_branch
          %708 = sbr.rel (%p706) target = $region72
        $region71: #{transformer_decoder_layer.1} parent=11 // pred_region
          %s710 = ssub.s32 256, 256
          %711 = vsyncadd [#allocation24], %s710
          %s712 = sshll.u32 [#allocation23], 4
          %s713 = int_to_ptr.vmem [resolvable:$true] %s712
          %718 = dma.hbm_to_vmem [thread:$0]  %s16, 256, %s713, [#allocation24], 64, 64, 4
        $region72: #{transformer_decoder_layer.1} parent=11 // pred_fallthru
          _
        // Predicated region
        $region73: #{transformer_decoder_layer.1} parent=11 // pred_check
          %p719 = pneg %p427
        $region74: #{transformer_decoder_layer.1} parent=11 // pred_check_branch
          %721 = sbr.rel (%p719) target = $region76
        $region75: #{transformer_decoder_layer.1} parent=11 // pred_region
          _
        $region76: #{transformer_decoder_layer.1} parent=11 // pred_fallthru
          _
        // Predicated region
        $region77: #{transformer_decoder_layer.1} parent=11 // pred_check
          %p722 = pneg %p448
        $region78: #{transformer_decoder_layer.1} parent=11 // pred_check_branch
          %724 = sbr.rel (%p722) target = $region80
        $region79: #{transformer_decoder_layer.1} parent=11 // pred_region
          _
        $region80: #{transformer_decoder_layer.1} parent=11 // pred_fallthru
          _
        // Predicated region
        $region81: #{transformer_decoder_layer.1} parent=11 // pred_check
          %p725 = pneg %p469
        $region82: #{transformer_decoder_layer.1} parent=11 // pred_check_branch
          %727 = sbr.rel (%p725) target = $region84
        $region83: #{transformer_decoder_layer.1} parent=11 // pred_region
          _
        $region84: #{transformer_decoder_layer.1} parent=11 // pred_fallthru
          _
        // Predicated region
        $region85: #{transformer_decoder_layer.1} parent=11 // pred_check
          %p728 = pneg %p490
        $region86: #{transformer_decoder_layer.1} parent=11 // pred_check_branch
          %730 = sbr.rel (%p728) target = $region88
        $region87: #{transformer_decoder_layer.1} parent=11 // pred_region
          _
        $region88: #{transformer_decoder_layer.1} parent=11 // pred_fallthru
          _
        // Predicated region
        $region89: #{transformer_decoder_layer.1} parent=11 // pred_check
          %p731 = pneg %p511
        $region90: #{transformer_decoder_layer.1} parent=11 // pred_check_branch
          %733 = sbr.rel (%p731) target = $region92
        $region91: #{transformer_decoder_layer.1} parent=11 // pred_region
          _
        $region92: #{transformer_decoder_layer.1} parent=11 // pred_fallthru
          _
      $region12: #{transformer_decoder_layer.1} parent=5 // pred_fallthru
        _
      %p734 = scmp.lt.s32.totalorder %s39, 2
      // Predicated region
      $region93: #{transformer_decoder_layer.1} parent=5 // pred_check
        %p735 = pneg %p734
      $region94: #{transformer_decoder_layer.1} parent=5 // pred_check_branch
        %737 = sbr.rel (%p735) target = $region96
      $region95: #{transformer_decoder_layer.1} parent=5 // pred_region
        // Predicated region
        $region97: #{transformer_decoder_layer.1} parent=95 // pred_check
          %p738 = pneg %p59
        $region98: #{transformer_decoder_layer.1} parent=95 // pred_check_branch
          %740 = sbr.rel (%p738) target = $region100
        $region99: #{transformer_decoder_layer.1} parent=95 // pred_region
          %p741 = scmp.lt.s32.totalorder %s39, 1
          %s742 = scalar_select %p741, %s39, 1
          %s743 = smul.addr %s742, 8
          %s744 = scalar_lea.vmem %s0, %s743
        $region100: #{transformer_decoder_layer.1} parent=95 // pred_fallthru
          _
        // Predicated region
        $region101: #{transformer_decoder_layer.1} parent=95 // pred_check
          %p745 = pneg %p85
        $region102: #{transformer_decoder_layer.1} parent=95 // pred_check_branch
          %747 = sbr.rel (%p745) target = $region104
        $region103: #{transformer_decoder_layer.1} parent=95 // pred_region
          %p748 = scmp.lt.s32.totalorder %s39, 1
          %s749 = scalar_select %p748, %s39, 1
          %s750 = smul.addr %s749, 2
          %s751 = smul.addr %s750, 8
          %s752 = scalar_lea.vmem %s1, %s751
        $region104: #{transformer_decoder_layer.1} parent=95 // pred_fallthru
          _
      $region96: #{transformer_decoder_layer.1} parent=5 // pred_fallthru
        _
      %p753 = scmp.le.s32.totalorder 1, %s39
      %p754 = scmp.lt.s32.totalorder %s39, 3
      %p755 = pnand %p753, %p754
      %p756 = pneg %p755
      // Predicated region
      $region105: #{transformer_decoder_layer.1} parent=5 // pred_check
        _
      $region106: #{transformer_decoder_layer.1} parent=5 // pred_check_branch
        %758 = sbr.rel (%p755) target = $region108
      $region107: #{transformer_decoder_layer.1} parent=5 // pred_region
        %s759 = ssub.s32 %s39, 1
        // Predicated region
        $region109: #{transformer_decoder_layer.1} parent=107 // pred_check
          %p760 = pneg %p112
        $region110: #{transformer_decoder_layer.1} parent=107 // pred_check_branch
          %762 = sbr.rel (%p760) target = $region112
        $region111: #{transformer_decoder_layer.1} parent=107 // pred_region
          %763 = dma.done [#allocation3], 256
        $region112: #{transformer_decoder_layer.1} parent=107 // pred_fallthru
          _
        // Predicated region
        $region113: #{transformer_decoder_layer.1} parent=107 // pred_check
          %p764 = pneg %p133
        $region114: #{transformer_decoder_layer.1} parent=107 // pred_check_branch
          %766 = sbr.rel (%p764) target = $region116
        $region115: #{transformer_decoder_layer.1} parent=107 // pred_region
          %767 = dma.done [#allocation6], 16
        $region116: #{transformer_decoder_layer.1} parent=107 // pred_fallthru
          _
        // Predicated region
        $region117: #{transformer_decoder_layer.1} parent=107 // pred_check
          %p768 = pneg %p154
        $region118: #{transformer_decoder_layer.1} parent=107 // pred_check_branch
          %770 = sbr.rel (%p768) target = $region120
        $region119: #{transformer_decoder_layer.1} parent=107 // pred_region
          %771 = dma.done [#allocation6], 256
        $region120: #{transformer_decoder_layer.1} parent=107 // pred_fallthru
          _
        // Predicated region
        $region121: #{transformer_decoder_layer.1} parent=107 // pred_check
          %p772 = pneg %p175
        $region122: #{transformer_decoder_layer.1} parent=107 // pred_check_branch
          %774 = sbr.rel (%p772) target = $region124
        $region123: #{transformer_decoder_layer.1} parent=107 // pred_region
          %775 = dma.done [#allocation9], 16
        $region124: #{transformer_decoder_layer.1} parent=107 // pred_fallthru
          _
        // Predicated region
        $region125: #{transformer_decoder_layer.1} parent=107 // pred_check
          %p776 = pneg %p196
        $region126: #{transformer_decoder_layer.1} parent=107 // pred_check_branch
          %778 = sbr.rel (%p776) target = $region128
        $region127: #{transformer_decoder_layer.1} parent=107 // pred_region
          %779 = dma.done [#allocation9], 16
        $region128: #{transformer_decoder_layer.1} parent=107 // pred_fallthru
          _
        // Predicated region
        $region129: #{transformer_decoder_layer.1} parent=107 // pred_check
          %p780 = pneg %p217
        $region130: #{transformer_decoder_layer.1} parent=107 // pred_check_branch
          %782 = sbr.rel (%p780) target = $region132
        $region131: #{transformer_decoder_layer.1} parent=107 // pred_region
          %783 = dma.done [#allocation12], 16
        $region132: #{transformer_decoder_layer.1} parent=107 // pred_fallthru
          _
        // Predicated region
        $region133: #{transformer_decoder_layer.1} parent=107 // pred_check
          %p784 = pneg %p259
        $region134: #{transformer_decoder_layer.1} parent=107 // pred_check_branch
          %786 = sbr.rel (%p784) target = $region136
        $region135: #{transformer_decoder_layer.1} parent=107 // pred_region
          %787 = dma.done [#allocation12], 16
        $region136: #{transformer_decoder_layer.1} parent=107 // pred_fallthru
          _
        // Predicated region
        $region137: #{transformer_decoder_layer.1} parent=107 // pred_check
          %p788 = pneg %p280
        $region138: #{transformer_decoder_layer.1} parent=107 // pred_check_branch
          %790 = sbr.rel (%p788) target = $region140
        $region139: #{transformer_decoder_layer.1} parent=107 // pred_region
          %791 = dma.done [#allocation15], 256
        $region140: #{transformer_decoder_layer.1} parent=107 // pred_fallthru
          _
        // Predicated region
        $region141: #{transformer_decoder_layer.1} parent=107 // pred_check
          %p792 = pneg %p301
        $region142: #{transformer_decoder_layer.1} parent=107 // pred_check_branch
          %794 = sbr.rel (%p792) target = $region144
        $region143: #{transformer_decoder_layer.1} parent=107 // pred_region
          %795 = dma.done [#allocation15], 16
        $region144: #{transformer_decoder_layer.1} parent=107 // pred_fallthru
          _
        // Predicated region
        $region145: #{transformer_decoder_layer.1} parent=107 // pred_check
          %p796 = pneg %p322
        $region146: #{transformer_decoder_layer.1} parent=107 // pred_check_branch
          %798 = sbr.rel (%p796) target = $region148
        $region147: #{transformer_decoder_layer.1} parent=107 // pred_region
          %799 = dma.done [#allocation18], 256
        $region148: #{transformer_decoder_layer.1} parent=107 // pred_fallthru
          _
        // Predicated region
        $region149: #{transformer_decoder_layer.1} parent=107 // pred_check
          %p800 = pneg %p343
        $region150: #{transformer_decoder_layer.1} parent=107 // pred_check_branch
          %802 = sbr.rel (%p800) target = $region152
        $region151: #{transformer_decoder_layer.1} parent=107 // pred_region
          %803 = dma.done [#allocation18], 16
        $region152: #{transformer_decoder_layer.1} parent=107 // pred_fallthru
          _
        // Predicated region
        $region153: #{transformer_decoder_layer.1} parent=107 // pred_check
          %p804 = pneg %p364
        $region154: #{transformer_decoder_layer.1} parent=107 // pred_check_branch
          %806 = sbr.rel (%p804) target = $region156
        $region155: #{transformer_decoder_layer.1} parent=107 // pred_region
          %807 = dma.done [#allocation21], 16
        $region156: #{transformer_decoder_layer.1} parent=107 // pred_fallthru
          _
        // Predicated region
        $region157: #{transformer_decoder_layer.1} parent=107 // pred_check
          %p808 = pneg %p385
        $region158: #{transformer_decoder_layer.1} parent=107 // pred_check_branch
          %810 = sbr.rel (%p808) target = $region160
        $region159: #{transformer_decoder_layer.1} parent=107 // pred_region
          %811 = dma.done [#allocation21], 16
        $region160: #{transformer_decoder_layer.1} parent=107 // pred_fallthru
          _
        // Predicated region
        $region161: #{transformer_decoder_layer.1} parent=107 // pred_check
          %p812 = pneg %p406
        $region162: #{transformer_decoder_layer.1} parent=107 // pred_check_branch
          %814 = sbr.rel (%p812) target = $region164
        $region163: #{transformer_decoder_layer.1} parent=107 // pred_region
          %815 = dma.done [#allocation24], 256
        $region164: #{transformer_decoder_layer.1} parent=107 // pred_fallthru
          _
        %p816 = scmp.lt.s32.totalorder %s44, 1
        %s817 = scalar_select %p816, %s44, 1
        %s818 = smul.addr %s817, 8
        %s819 = scalar_lea.vmem %s0, %s818
        %p820 = pneg %p65
        %p821 = pneg %p62
        %p822 = scmp.lt.s32.totalorder %s44, 1
        %s823 = scalar_select %p822, %s44, 1
        %s824 = smul.addr %s823, 2
        %s825 = smul.addr %s824, 8
        %s826 = scalar_lea.vmem %s1, %s825
        %p827 = pneg %p91
        %p828 = pneg %p88
        %p829 = pneg %p112
        %p830 = pneg %p109
        %p831 = pneg %p133
        %p832 = pneg %p130
        %p833 = pneg %p154
        %p834 = pneg %p151
        %p835 = pneg %p175
        %p836 = pneg %p172
        %p837 = pneg %p196
        %p838 = pneg %p193
        %p839 = pneg %p217
        %p840 = pneg %p214
        %p841 = pneg %p238
        %p842 = pneg %p235
        %p843 = pneg %p259
        %p844 = pneg %p256
        %p845 = pneg %p280
        %p846 = pneg %p277
        %p847 = pneg %p301
        %p848 = pneg %p298
        %p849 = pneg %p322
        %p850 = pneg %p319
        %p851 = pneg %p343
        %p852 = pneg %p340
        %p853 = pneg %p364
        %p854 = pneg %p361
        %p855 = pneg %p385
        %p856 = pneg %p382
        %p857 = pneg %p406
        %p858 = pneg %p403
        %p859 = pneg %p427
        %p860 = pneg %p424
        %p861 = pneg %p448
        %p862 = pneg %p445
        %p863 = pneg %p469
        %p864 = pneg %p466
        %p865 = pneg %p490
        %p866 = pneg %p487
        %p867 = pneg %p511
        %p868 = pneg %p508
        %p869 = pneg %p537
        %p870 = pneg %p534
        %s871 = sand.u32 %s524, 1
        %s872 = scalar_lea.sflag [#allocation4], %s871
        %s873 = sand.u32 %s524, 1
        %s874 = smul.addr %s873, 8
        %s875 = scalar_lea.vmem [#allocation25], %s874
        %p876 = scmp.lt.s32.totalorder %s44, 1
        %s877 = scalar_select %p876, %s44, 1
        %s878 = smul.addr %s877, 8
        %s879 = scalar_lea.vmem %s0, %s878
        %p880 = scmp.lt.s32.totalorder %s44, 1
        %s881 = scalar_select %p880, %s44, 1
        %s882 = smul.addr %s881, 2
        %s883 = smul.addr %s882, 8
        %s884 = scalar_lea.vmem %s1, %s883
        %v886 = vld [vmem:[%s879] sm:$0xff]
        %v887 = vld [vmem:[%s884] sm:$0xff]
        %v888 = vld [vmem:[%s884 + $0x8] sm:$0xff]
        %v889 = vld [vmem:[#allocation2] sm:$0xf]
        %v890 = vld [vmem:[#allocation2 + $0x4] sm:$0xf]
        %v891 = vld [vmem:[#allocation2 + $0x8] sm:$0xf]
        %v892 = vld [vmem:[#allocation2 + $0xc] sm:$0xf]
        %v893 = vpack.c.bf16 %v886, %v886
        %v894 = vld [vmem:[#allocation5] sm:$0x1]
        %v896 = vlaneseq
        %v897 = vshrl.u32 %v896, 7
        %v898 = vsub.s32 0, %v897
        %v899 = vrot.slane %v894, %v898
        %v905 = vunpack.c.l.b16 %v889
        %v906 = vunpack.c.l.b16 %v890
        %v907 = vunpack.c.l.b16 %v891
        %v908 = vunpack.c.l.b16 %v892
        %v909 = vpack.c.b16 %v906, %v905
        %v910 = vpack.c.b16 %v908, %v907
        %vm913 = vcmask 261120
        %v915 = vsel %vm913, %v893, 0
        %917 = vmatprep.subr.bf16.mxu0 0
        %918 = vmatpush1.bf16.msra.mxu0 0
        %919 = vmatprep.subr.bf16.mxu0 0
        %920 = vmatpush1.bf16.msra.mxu0 0
        %921 = vmatprep.subr.bf16.mxu0 0
        %922 = vmatpush1.bf16.msra.mxu0 0
        %923 = vmatprep.subr.bf16.mxu0 0
        %924 = vmatpush1.bf16.msra.mxu0 0
        %925 = vmatprep.subr.bf16.mxu0 0
        %926 = vmatpush1.bf16.msra.mxu0 0
        %927 = vmatprep.subr.bf16.mxu0 0
        %928 = vmatpush1.bf16.msra.mxu0 0
        %929 = vmatprep.subr.bf16.mxu0 0
        %930 = vmatpush1.bf16.msra.mxu0 %v910
        %931 = vmatprep.subr.bf16.mxu0 0
        %932 = vmatpush1.bf16.msra.mxu0 %v909
        %933 = vmatprep.subr.bf16.mxu0 0
        %934 = vmatpush2.bf16.msra.mxu0 0
        %935 = vmatprep.subr.bf16.mxu0 0
        %936 = vmatpush2.bf16.msra.mxu0 0
        %937 = vmatprep.subr.bf16.mxu0 0
        %938 = vmatpush2.bf16.msra.mxu0 0
        %939 = vmatprep.subr.bf16.mxu0 0
        %940 = vmatpush2.bf16.msra.mxu0 0
        %941 = vmatprep.subr.bf16.mxu0 0
        %942 = vmatpush2.bf16.msra.mxu0 0
        %943 = vmatprep.subr.bf16.mxu0 0
        %944 = vmatpush2.bf16.msra.mxu0 0
        %945 = vmatprep.subr.bf16.mxu0 0
        %946 = vmatpush2.bf16.msra.mxu0 0
        %947 = vmatprep.subr.bf16.mxu0 0
        %948 = vmatpush2.bf16.msra.mxu0 0
        %949 = vmatprep.mubr.bf16.mxu0 0
        %950 = vmatmul.mubr.bf16.gmra.mxu0 %v915
        %v951 = vpop.f32.mrf.mxu0
        %v952 = vadd.f32 %v899, %v951
        %v953 = vpop.f32.mrf.mxu0
        %v954 = vpop.f32.mrf.mxu0
        %v955 = vpop.f32.mrf.mxu0
        %956 = vdwg.mxu0
        %v957 = vpack.c.bf16 %v952, %v952
        %959 = vrot.lane.b32.xlu0 %v957, 96
        %v960 = vpop.permute.xlu0 %959
        %vm961 = vcmask 64512
        %v963 = vsel %vm961, %v957, 0
        %v966 = vsel %vm961, %v960, 0
        %968 = vmatprep.subr.bf16.mxu0 0
        %969 = vmatpush1.bf16.xpose.msra.mxu0 0
        %970 = vmatprep.subr.bf16.mxu0 0
        %971 = vmatpush1.bf16.xpose.msra.mxu0 0
        %972 = vmatprep.subr.bf16.mxu0 0
        %973 = vmatpush1.bf16.xpose.msra.mxu0 0
        %974 = vmatprep.subr.bf16.mxu0 0
        %975 = vmatpush1.bf16.xpose.msra.mxu0 0
        %976 = vmatprep.subr.bf16.mxu0 0
        %977 = vmatpush1.bf16.xpose.msra.mxu0 0
        %978 = vmatprep.subr.bf16.mxu0 0
        %979 = vmatpush1.bf16.xpose.msra.mxu0 0
        %980 = vmatprep.subr.bf16.mxu0 0
        %981 = vmatpush1.bf16.xpose.msra.mxu0 0
        %982 = vmatprep.subr.bf16.mxu0 0
        %983 = vmatpush1.bf16.xpose.msra.mxu0 %v966
        %984 = vmatprep.subr.bf16.mxu0 0
        %985 = vmatpush2.bf16.xpose.msra.mxu0 0
        %986 = vmatprep.subr.bf16.mxu0 0
        %987 = vmatpush2.bf16.xpose.msra.mxu0 0
        %988 = vmatprep.subr.bf16.mxu0 0
        %989 = vmatpush2.bf16.xpose.msra.mxu0 0
        %990 = vmatprep.subr.bf16.mxu0 0
        %991 = vmatpush2.bf16.xpose.msra.mxu0 0
        %992 = vmatprep.subr.bf16.mxu0 0
        %993 = vmatpush2.bf16.xpose.msra.mxu0 0
        %994 = vmatprep.subr.bf16.mxu0 0
        %995 = vmatpush2.bf16.xpose.msra.mxu0 0
        %996 = vmatprep.subr.bf16.mxu0 0
        %997 = vmatpush2.bf16.xpose.msra.mxu0 0
        %998 = vmatprep.subr.bf16.mxu0 0
        %999 = vmatpush2.bf16.xpose.msra.mxu0 0
        %1000 = vmatprep.mubr.bf16.mxu0 0
        %1001 = vmatmul.mubr.bf16.gmra.mxu0 %v963
        %v1002 = vpop.f32.mrf.mxu0
        %v1003 = vadd.f32 0.0, %v1002
        %v1004 = vpop.f32.mrf.mxu0
        %v1005 = vpop.f32.mrf.mxu0
        %v1006 = vpop.f32.mrf.mxu0
        %1007 = vdwg.mxu0
        %v1008 = vsel %vm961, %v1003, -inf
        %1009 = vmax.xlane.f32.xlu0 %v1008
        %v1010 = vpop.xlane.xlu0 %1009
        %v1011 = vsub.f32 %v1003, %v1010
        %v1012 = vmul.f32 %v1011, 1.442695
        %v1013 = vpow.pop %v1012
        %v1014 = vsel %vm961, %v1013, 0.0
        %1015 = vadd.xlane.f32.xlu0 %v1014
        %v1016 = vpop.xlane.xlu0 %1015
        %v1017 = vpack.c.bf16 %v1013, %v1013
        %1018 = vrot.lane.b32.xlu0 %v957, 64
        %v1019 = vpop.permute.xlu0 %1018
        %v1021 = vsel %vm961, %v1017, 0
        %vm1023 = vcmask 1043456
        %v1025 = vsel %vm1023, %v1019, 0
        %1027 = vmatprep.subr.bf16.mxu0 0
        %1028 = vmatpush1.bf16.msra.mxu0 0
        %1029 = vmatprep.subr.bf16.mxu0 0
        %1030 = vmatpush1.bf16.msra.mxu0 0
        %1031 = vmatprep.subr.bf16.mxu0 0
        %1032 = vmatpush1.bf16.msra.mxu0 0
        %1033 = vmatprep.subr.bf16.mxu0 0
        %1034 = vmatpush1.bf16.msra.mxu0 0
        %1035 = vmatprep.subr.bf16.mxu0 0
        %1036 = vmatpush1.bf16.msra.mxu0 0
        %1037 = vmatprep.subr.bf16.mxu0 0
        %1038 = vmatpush1.bf16.msra.mxu0 0
        %1039 = vmatprep.subr.bf16.mxu0 0
        %1040 = vmatpush1.bf16.msra.mxu0 0
        %1041 = vmatprep.subr.bf16.mxu0 0
        %1042 = vmatpush1.bf16.msra.mxu0 %v1025
        %1043 = vmatprep.subr.bf16.mxu0 0
        %1044 = vmatpush2.bf16.msra.mxu0 0
        %1045 = vmatprep.subr.bf16.mxu0 0
        %1046 = vmatpush2.bf16.msra.mxu0 0
        %1047 = vmatprep.subr.bf16.mxu0 0
        %1048 = vmatpush2.bf16.msra.mxu0 0
        %1049 = vmatprep.subr.bf16.mxu0 0
        %1050 = vmatpush2.bf16.msra.mxu0 0
        %1051 = vmatprep.subr.bf16.mxu0 0
        %1052 = vmatpush2.bf16.msra.mxu0 0
        %1053 = vmatprep.subr.bf16.mxu0 0
        %1054 = vmatpush2.bf16.msra.mxu0 0
        %1055 = vmatprep.subr.bf16.mxu0 0
        %1056 = vmatpush2.bf16.msra.mxu0 0
        %1057 = vmatprep.subr.bf16.mxu0 0
        %1058 = vmatpush2.bf16.msra.mxu0 0
        %1059 = vmatprep.mubr.bf16.mxu0 0
        %1060 = vmatmul.mubr.bf16.gmra.mxu0 %v1021
        %v1061 = vpop.f32.mrf.mxu0
        %v1062 = vadd.f32 0.0, %v1061
        %v1063 = vpop.f32.mrf.mxu0
        %v1064 = vpop.f32.mrf.mxu0
        %v1065 = vpop.f32.mrf.mxu0
        %1066 = vdwg.mxu0
        %v1067 = vrcp.pop %v1016
        %v1068 = vmul.f32 %v1062, %v1067
        %1069 = vrot.lane.b32.xlu0 %v957, 120
        %v1070 = vpop.permute.xlu0 %1069
        %1071 = vrot.lane.b32.xlu0 %v957, 88
        %v1072 = vpop.permute.xlu0 %1071
        %v1074 = vsel %vm961, %v1070, 0
        %v1077 = vsel %vm961, %v1072, 0
        %1079 = vmatprep.subr.bf16.mxu0 0
        %1080 = vmatpush1.bf16.xpose.msra.mxu0 0
        %1081 = vmatprep.subr.bf16.mxu0 0
        %1082 = vmatpush1.bf16.xpose.msra.mxu0 0
        %1083 = vmatprep.subr.bf16.mxu0 0
        %1084 = vmatpush1.bf16.xpose.msra.mxu0 0
        %1085 = vmatprep.subr.bf16.mxu0 0
        %1086 = vmatpush1.bf16.xpose.msra.mxu0 0
        %1087 = vmatprep.subr.bf16.mxu0 0
        %1088 = vmatpush1.bf16.xpose.msra.mxu0 0
        %1089 = vmatprep.subr.bf16.mxu0 0
        %1090 = vmatpush1.bf16.xpose.msra.mxu0 0
        %1091 = vmatprep.subr.bf16.mxu0 0
        %1092 = vmatpush1.bf16.xpose.msra.mxu0 0
        %1093 = vmatprep.subr.bf16.mxu0 0
        %1094 = vmatpush1.bf16.xpose.msra.mxu0 %v1077
        %1095 = vmatprep.subr.bf16.mxu0 0
        %1096 = vmatpush2.bf16.xpose.msra.mxu0 0
        %1097 = vmatprep.subr.bf16.mxu0 0
        %1098 = vmatpush2.bf16.xpose.msra.mxu0 0
        %1099 = vmatprep.subr.bf16.mxu0 0
        %1100 = vmatpush2.bf16.xpose.msra.mxu0 0
        %1101 = vmatprep.subr.bf16.mxu0 0
        %1102 = vmatpush2.bf16.xpose.msra.mxu0 0
        %1103 = vmatprep.subr.bf16.mxu0 0
        %1104 = vmatpush2.bf16.xpose.msra.mxu0 0
        %1105 = vmatprep.subr.bf16.mxu0 0
        %1106 = vmatpush2.bf16.xpose.msra.mxu0 0
        %1107 = vmatprep.subr.bf16.mxu0 0
        %1108 = vmatpush2.bf16.xpose.msra.mxu0 0
        %1109 = vmatprep.subr.bf16.mxu0 0
        %1110 = vmatpush2.bf16.xpose.msra.mxu0 0
        %1111 = vmatprep.mubr.bf16.mxu0 0
        %1112 = vmatmul.mubr.bf16.gmra.mxu0 %v1074
        %v1113 = vpop.f32.mrf.mxu0
        %v1114 = vadd.f32 0.0, %v1113
        %v1115 = vpop.f32.mrf.mxu0
        %v1116 = vpop.f32.mrf.mxu0
        %v1117 = vpop.f32.mrf.mxu0
        %1118 = vdwg.mxu0
        %v1119 = vsel %vm961, %v1114, -inf
        %1120 = vmax.xlane.f32.xlu0 %v1119
        %v1121 = vpop.xlane.xlu0 %1120
        %v1122 = vsub.f32 %v1114, %v1121
        %v1123 = vmul.f32 %v1122, 1.442695
        %v1124 = vpow.pop %v1123
        %v1125 = vsel %vm961, %v1124, 0.0
        %1126 = vadd.xlane.f32.xlu0 %v1125
        %v1127 = vpop.xlane.xlu0 %1126
        %v1128 = vpack.c.bf16 %v1124, %v1124
        %1129 = vrot.lane.b32.xlu0 %v957, 56
        %v1130 = vpop.permute.xlu0 %1129
        %v1132 = vsel %vm961, %v1128, 0
        %v1135 = vsel %vm1023, %v1130, 0
        %1137 = vmatprep.subr.bf16.mxu0 0
        %1138 = vmatpush1.bf16.msra.mxu0 0
        %1139 = vmatprep.subr.bf16.mxu0 0
        %1140 = vmatpush1.bf16.msra.mxu0 0
        %1141 = vmatprep.subr.bf16.mxu0 0
        %1142 = vmatpush1.bf16.msra.mxu0 0
        %1143 = vmatprep.subr.bf16.mxu0 0
        %1144 = vmatpush1.bf16.msra.mxu0 0
        %1145 = vmatprep.subr.bf16.mxu0 0
        %1146 = vmatpush1.bf16.msra.mxu0 0
        %1147 = vmatprep.subr.bf16.mxu0 0
        %1148 = vmatpush1.bf16.msra.mxu0 0
        %1149 = vmatprep.subr.bf16.mxu0 0
        %1150 = vmatpush1.bf16.msra.mxu0 0
        %1151 = vmatprep.subr.bf16.mxu0 0
        %1152 = vmatpush1.bf16.msra.mxu0 %v1135
        %1153 = vmatprep.subr.bf16.mxu0 0
        %1154 = vmatpush2.bf16.msra.mxu0 0
        %1155 = vmatprep.subr.bf16.mxu0 0
        %1156 = vmatpush2.bf16.msra.mxu0 0
        %1157 = vmatprep.subr.bf16.mxu0 0
        %1158 = vmatpush2.bf16.msra.mxu0 0
        %1159 = vmatprep.subr.bf16.mxu0 0
        %1160 = vmatpush2.bf16.msra.mxu0 0
        %1161 = vmatprep.subr.bf16.mxu0 0
        %1162 = vmatpush2.bf16.msra.mxu0 0
        %1163 = vmatprep.subr.bf16.mxu0 0
        %1164 = vmatpush2.bf16.msra.mxu0 0
        %1165 = vmatprep.subr.bf16.mxu0 0
        %1166 = vmatpush2.bf16.msra.mxu0 0
        %1167 = vmatprep.subr.bf16.mxu0 0
        %1168 = vmatpush2.bf16.msra.mxu0 0
        %1169 = vmatprep.mubr.bf16.mxu0 0
        %1170 = vmatmul.mubr.bf16.gmra.mxu0 %v1132
        %v1171 = vpop.f32.mrf.mxu0
        %v1172 = vadd.f32 0.0, %v1171
        %v1173 = vpop.f32.mrf.mxu0
        %v1174 = vpop.f32.mrf.mxu0
        %v1175 = vpop.f32.mrf.mxu0
        %1176 = vdwg.mxu0
        %v1177 = vrcp.pop %v1127
        %v1178 = vmul.f32 %v1172, %v1177
        %1179 = vrot.lane.b32.xlu0 %v957, 112
        %v1180 = vpop.permute.xlu0 %1179
        %1181 = vrot.lane.b32.xlu0 %v957, 80
        %v1182 = vpop.permute.xlu0 %1181
        %v1184 = vsel %vm961, %v1180, 0
        %v1187 = vsel %vm961, %v1182, 0
        %1189 = vmatprep.subr.bf16.mxu0 0
        %1190 = vmatpush1.bf16.xpose.msra.mxu0 0
        %1191 = vmatprep.subr.bf16.mxu0 0
        %1192 = vmatpush1.bf16.xpose.msra.mxu0 0
        %1193 = vmatprep.subr.bf16.mxu0 0
        %1194 = vmatpush1.bf16.xpose.msra.mxu0 0
        %1195 = vmatprep.subr.bf16.mxu0 0
        %1196 = vmatpush1.bf16.xpose.msra.mxu0 0
        %1197 = vmatprep.subr.bf16.mxu0 0
        %1198 = vmatpush1.bf16.xpose.msra.mxu0 0
        %1199 = vmatprep.subr.bf16.mxu0 0
        %1200 = vmatpush1.bf16.xpose.msra.mxu0 0
        %1201 = vmatprep.subr.bf16.mxu0 0
        %1202 = vmatpush1.bf16.xpose.msra.mxu0 0
        %1203 = vmatprep.subr.bf16.mxu0 0
        %1204 = vmatpush1.bf16.xpose.msra.mxu0 %v1187
        %1205 = vmatprep.subr.bf16.mxu0 0
        %1206 = vmatpush2.bf16.xpose.msra.mxu0 0
        %1207 = vmatprep.subr.bf16.mxu0 0
        %1208 = vmatpush2.bf16.xpose.msra.mxu0 0
        %1209 = vmatprep.subr.bf16.mxu0 0
        %1210 = vmatpush2.bf16.xpose.msra.mxu0 0
        %1211 = vmatprep.subr.bf16.mxu0 0
        %1212 = vmatpush2.bf16.xpose.msra.mxu0 0
        %1213 = vmatprep.subr.bf16.mxu0 0
        %1214 = vmatpush2.bf16.xpose.msra.mxu0 0
        %1215 = vmatprep.subr.bf16.mxu0 0
        %1216 = vmatpush2.bf16.xpose.msra.mxu0 0
        %1217 = vmatprep.subr.bf16.mxu0 0
        %1218 = vmatpush2.bf16.xpose.msra.mxu0 0
        %1219 = vmatprep.subr.bf16.mxu0 0
        %1220 = vmatpush2.bf16.xpose.msra.mxu0 0
        %1221 = vmatprep.mubr.bf16.mxu0 0
        %1222 = vmatmul.mubr.bf16.gmra.mxu0 %v1184
        %v1223 = vpop.f32.mrf.mxu0
        %v1224 = vadd.f32 0.0, %v1223
        %v1225 = vpop.f32.mrf.mxu0
        %v1226 = vpop.f32.mrf.mxu0
        %v1227 = vpop.f32.mrf.mxu0
        %1228 = vdwg.mxu0
        %v1229 = vsel %vm961, %v1224, -inf
        %1230 = vmax.xlane.f32.xlu0 %v1229
        %v1231 = vpop.xlane.xlu0 %1230
        %v1232 = vsub.f32 %v1224, %v1231
        %v1233 = vmul.f32 %v1232, 1.442695
        %v1234 = vpow.pop %v1233
        %v1235 = vsel %vm961, %v1234, 0.0
        %1236 = vadd.xlane.f32.xlu0 %v1235
        %v1237 = vpop.xlane.xlu0 %1236
        %v1238 = vpack.c.bf16 %v1234, %v1234
        %1239 = vrot.lane.b32.xlu0 %v957, 48
        %v1240 = vpop.permute.xlu0 %1239
        %v1242 = vsel %vm961, %v1238, 0
        %v1245 = vsel %vm1023, %v1240, 0
        %1247 = vmatprep.subr.bf16.mxu0 0
        %1248 = vmatpush1.bf16.msra.mxu0 0
        %1249 = vmatprep.subr.bf16.mxu0 0
        %1250 = vmatpush1.bf16.msra.mxu0 0
        %1251 = vmatprep.subr.bf16.mxu0 0
        %1252 = vmatpush1.bf16.msra.mxu0 0
        %1253 = vmatprep.subr.bf16.mxu0 0
        %1254 = vmatpush1.bf16.msra.mxu0 0
        %1255 = vmatprep.subr.bf16.mxu0 0
        %1256 = vmatpush1.bf16.msra.mxu0 0
        %1257 = vmatprep.subr.bf16.mxu0 0
        %1258 = vmatpush1.bf16.msra.mxu0 0
        %1259 = vmatprep.subr.bf16.mxu0 0
        %1260 = vmatpush1.bf16.msra.mxu0 0
        %1261 = vmatprep.subr.bf16.mxu0 0
        %1262 = vmatpush1.bf16.msra.mxu0 %v1245
        %1263 = vmatprep.subr.bf16.mxu0 0
        %1264 = vmatpush2.bf16.msra.mxu0 0
        %1265 = vmatprep.subr.bf16.mxu0 0
        %1266 = vmatpush2.bf16.msra.mxu0 0
        %1267 = vmatprep.subr.bf16.mxu0 0
        %1268 = vmatpush2.bf16.msra.mxu0 0
        %1269 = vmatprep.subr.bf16.mxu0 0
        %1270 = vmatpush2.bf16.msra.mxu0 0
        %1271 = vmatprep.subr.bf16.mxu0 0
        %1272 = vmatpush2.bf16.msra.mxu0 0
        %1273 = vmatprep.subr.bf16.mxu0 0
        %1274 = vmatpush2.bf16.msra.mxu0 0
        %1275 = vmatprep.subr.bf16.mxu0 0
        %1276 = vmatpush2.bf16.msra.mxu0 0
        %1277 = vmatprep.subr.bf16.mxu0 0
        %1278 = vmatpush2.bf16.msra.mxu0 0
        %1279 = vmatprep.mubr.bf16.mxu0 0
        %1280 = vmatmul.mubr.bf16.gmra.mxu0 %v1242
        %v1281 = vpop.f32.mrf.mxu0
        %v1282 = vadd.f32 0.0, %v1281
        %v1283 = vpop.f32.mrf.mxu0
        %v1284 = vpop.f32.mrf.mxu0
        %v1285 = vpop.f32.mrf.mxu0
        %1286 = vdwg.mxu0
        %v1287 = vrcp.pop %v1237
        %v1288 = vmul.f32 %v1282, %v1287
        %1289 = vrot.lane.b32.xlu0 %v957, 104
        %v1290 = vpop.permute.xlu0 %1289
        %1291 = vrot.lane.b32.xlu0 %v957, 72
        %v1292 = vpop.permute.xlu0 %1291
        %v1294 = vsel %vm961, %v1290, 0
        %v1297 = vsel %vm961, %v1292, 0
        %1299 = vmatprep.subr.bf16.mxu0 0
        %1300 = vmatpush1.bf16.xpose.msra.mxu0 0
        %1301 = vmatprep.subr.bf16.mxu0 0
        %1302 = vmatpush1.bf16.xpose.msra.mxu0 0
        %1303 = vmatprep.subr.bf16.mxu0 0
        %1304 = vmatpush1.bf16.xpose.msra.mxu0 0
        %1305 = vmatprep.subr.bf16.mxu0 0
        %1306 = vmatpush1.bf16.xpose.msra.mxu0 0
        %1307 = vmatprep.subr.bf16.mxu0 0
        %1308 = vmatpush1.bf16.xpose.msra.mxu0 0
        %1309 = vmatprep.subr.bf16.mxu0 0
        %1310 = vmatpush1.bf16.xpose.msra.mxu0 0
        %1311 = vmatprep.subr.bf16.mxu0 0
        %1312 = vmatpush1.bf16.xpose.msra.mxu0 0
        %1313 = vmatprep.subr.bf16.mxu0 0
        %1314 = vmatpush1.bf16.xpose.msra.mxu0 %v1297
        %1315 = vmatprep.subr.bf16.mxu0 0
        %1316 = vmatpush2.bf16.xpose.msra.mxu0 0
        %1317 = vmatprep.subr.bf16.mxu0 0
        %1318 = vmatpush2.bf16.xpose.msra.mxu0 0
        %1319 = vmatprep.subr.bf16.mxu0 0
        %1320 = vmatpush2.bf16.xpose.msra.mxu0 0
        %1321 = vmatprep.subr.bf16.mxu0 0
        %1322 = vmatpush2.bf16.xpose.msra.mxu0 0
        %1323 = vmatprep.subr.bf16.mxu0 0
        %1324 = vmatpush2.bf16.xpose.msra.mxu0 0
        %1325 = vmatprep.subr.bf16.mxu0 0
        %1326 = vmatpush2.bf16.xpose.msra.mxu0 0
        %1327 = vmatprep.subr.bf16.mxu0 0
        %1328 = vmatpush2.bf16.xpose.msra.mxu0 0
        %1329 = vmatprep.subr.bf16.mxu0 0
        %1330 = vmatpush2.bf16.xpose.msra.mxu0 0
        %1331 = vmatprep.mubr.bf16.mxu0 0
        %1332 = vmatmul.mubr.bf16.gmra.mxu0 %v1294
        %v1333 = vpop.f32.mrf.mxu0
        %v1334 = vadd.f32 0.0, %v1333
        %v1335 = vpop.f32.mrf.mxu0
        %v1336 = vpop.f32.mrf.mxu0
        %v1337 = vpop.f32.mrf.mxu0
        %1338 = vdwg.mxu0
        %v1339 = vsel %vm961, %v1334, -inf
        %1340 = vmax.xlane.f32.xlu0 %v1339
        %v1341 = vpop.xlane.xlu0 %1340
        %v1342 = vsub.f32 %v1334, %v1341
        %v1343 = vmul.f32 %v1342, 1.442695
        %v1344 = vpow.pop %v1343
        %v1345 = vsel %vm961, %v1344, 0.0
        %1346 = vadd.xlane.f32.xlu0 %v1345
        %v1347 = vpop.xlane.xlu0 %1346
        %v1348 = vpack.c.bf16 %v1344, %v1344
        %1349 = vrot.lane.b32.xlu0 %v957, 40
        %v1350 = vpop.permute.xlu0 %1349
        %v1352 = vsel %vm961, %v1348, 0
        %v1355 = vsel %vm1023, %v1350, 0
        %1357 = vmatprep.subr.bf16.mxu0 0
        %1358 = vmatpush1.bf16.msra.mxu0 0
        %1359 = vmatprep.subr.bf16.mxu0 0
        %1360 = vmatpush1.bf16.msra.mxu0 0
        %1361 = vmatprep.subr.bf16.mxu0 0
        %1362 = vmatpush1.bf16.msra.mxu0 0
        %1363 = vmatprep.subr.bf16.mxu0 0
        %1364 = vmatpush1.bf16.msra.mxu0 0
        %1365 = vmatprep.subr.bf16.mxu0 0
        %1366 = vmatpush1.bf16.msra.mxu0 0
        %1367 = vmatprep.subr.bf16.mxu0 0
        %1368 = vmatpush1.bf16.msra.mxu0 0
        %1369 = vmatprep.subr.bf16.mxu0 0
        %1370 = vmatpush1.bf16.msra.mxu0 0
        %1371 = vmatprep.subr.bf16.mxu0 0
        %1372 = vmatpush1.bf16.msra.mxu0 %v1355
        %1373 = vmatprep.subr.bf16.mxu0 0
        %1374 = vmatpush2.bf16.msra.mxu0 0
        %1375 = vmatprep.subr.bf16.mxu0 0
        %1376 = vmatpush2.bf16.msra.mxu0 0
        %1377 = vmatprep.subr.bf16.mxu0 0
        %1378 = vmatpush2.bf16.msra.mxu0 0
        %1379 = vmatprep.subr.bf16.mxu0 0
        %1380 = vmatpush2.bf16.msra.mxu0 0
        %1381 = vmatprep.subr.bf16.mxu0 0
        %1382 = vmatpush2.bf16.msra.mxu0 0
        %1383 = vmatprep.subr.bf16.mxu0 0
        %1384 = vmatpush2.bf16.msra.mxu0 0
        %1385 = vmatprep.subr.bf16.mxu0 0
        %1386 = vmatpush2.bf16.msra.mxu0 0
        %1387 = vmatprep.subr.bf16.mxu0 0
        %1388 = vmatpush2.bf16.msra.mxu0 0
        %1389 = vmatprep.mubr.bf16.mxu0 0
        %1390 = vmatmul.mubr.bf16.gmra.mxu0 %v1352
        %v1391 = vpop.f32.mrf.mxu0
        %v1392 = vadd.f32 0.0, %v1391
        %v1393 = vpop.f32.mrf.mxu0
        %v1394 = vpop.f32.mrf.mxu0
        %v1395 = vpop.f32.mrf.mxu0
        %1396 = vdwg.mxu0
        %v1397 = vrcp.pop %v1347
        %v1398 = vmul.f32 %v1392, %v1397
        %1400 = vrot.lane.b32.xlu0 %v1178, 8
        %v1401 = vpop.permute.xlu0 %1400
        %1404 = vrot.lane.b32.xlu0 %v1288, 16
        %v1405 = vpop.permute.xlu0 %1404
        %1408 = vrot.lane.b32.xlu0 %v1398, 24
        %v1409 = vpop.permute.xlu0 %1408
        %v1411 = vsel %vm961, %v1068, %v1401
        %vm1412 = vcmask 130048
        %v1413 = vsel %vm1412, %v1411, %v1405
        %vm1414 = vcmask 195584
        %v1415 = vsel %vm1414, %v1413, %v1409
        %v1416 = vld [vmem:[#allocation7] sm:$0xf]
        %v1417 = vld [vmem:[#allocation7 + $0x4] sm:$0xf]
        %v1418 = vld [vmem:[#allocation7 + $0x8] sm:$0xf]
        %v1419 = vld [vmem:[#allocation7 + $0xc] sm:$0xf]
        %v1420 = vpack.c.bf16 %v1415, %v1415
        %v1421 = vld [vmem:[#allocation8] sm:$0x1]
        %v1423 = vlaneseq
        %v1424 = vshrl.u32 %v1423, 7
        %v1425 = vsub.s32 0, %v1424
        %v1426 = vrot.slane %v1421, %v1425
        %v1432 = vunpack.c.l.b16 %v1416
        %v1433 = vunpack.c.l.b16 %v1417
        %v1434 = vunpack.c.l.b16 %v1418
        %v1435 = vunpack.c.l.b16 %v1419
        %v1436 = vpack.c.b16 %v1433, %v1432
        %v1437 = vpack.c.b16 %v1435, %v1434
        %v1441 = vsel %vm913, %v1420, 0
        %1443 = vmatprep.subr.bf16.mxu0 0
        %1444 = vmatpush1.bf16.msra.mxu0 0
        %1445 = vmatprep.subr.bf16.mxu0 0
        %1446 = vmatpush1.bf16.msra.mxu0 0
        %1447 = vmatprep.subr.bf16.mxu0 0
        %1448 = vmatpush1.bf16.msra.mxu0 0
        %1449 = vmatprep.subr.bf16.mxu0 0
        %1450 = vmatpush1.bf16.msra.mxu0 0
        %1451 = vmatprep.subr.bf16.mxu0 0
        %1452 = vmatpush1.bf16.msra.mxu0 0
        %1453 = vmatprep.subr.bf16.mxu0 0
        %1454 = vmatpush1.bf16.msra.mxu0 0
        %1455 = vmatprep.subr.bf16.mxu0 0
        %1456 = vmatpush1.bf16.msra.mxu0 %v1437
        %1457 = vmatprep.subr.bf16.mxu0 0
        %1458 = vmatpush1.bf16.msra.mxu0 %v1436
        %1459 = vmatprep.subr.bf16.mxu0 0
        %1460 = vmatpush2.bf16.msra.mxu0 0
        %1461 = vmatprep.subr.bf16.mxu0 0
        %1462 = vmatpush2.bf16.msra.mxu0 0
        %1463 = vmatprep.subr.bf16.mxu0 0
        %1464 = vmatpush2.bf16.msra.mxu0 0
        %1465 = vmatprep.subr.bf16.mxu0 0
        %1466 = vmatpush2.bf16.msra.mxu0 0
        %1467 = vmatprep.subr.bf16.mxu0 0
        %1468 = vmatpush2.bf16.msra.mxu0 0
        %1469 = vmatprep.subr.bf16.mxu0 0
        %1470 = vmatpush2.bf16.msra.mxu0 0
        %1471 = vmatprep.subr.bf16.mxu0 0
        %1472 = vmatpush2.bf16.msra.mxu0 0
        %1473 = vmatprep.subr.bf16.mxu0 0
        %1474 = vmatpush2.bf16.msra.mxu0 0
        %1475 = vmatprep.mubr.bf16.mxu0 0
        %1476 = vmatmul.mubr.bf16.gmra.mxu0 %v1441
        %v1477 = vpop.f32.mrf.mxu0
        %v1478 = vadd.f32 %v1426, %v1477
        %v1479 = vpop.f32.mrf.mxu0
        %v1480 = vpop.f32.mrf.mxu0
        %v1481 = vpop.f32.mrf.mxu0
        %1482 = vdwg.mxu0
        %v1483 = vadd.f32 %v886, %v1478
        %v1484 = vsel %vm913, %v1483, 0.0
        %1485 = vadd.xlane.f32.xlu0 %v1484
        %v1486 = vpop.xlane.xlu0 %1485
        %v1487 = vrcp.pop 32.0
        %v1488 = vmul.f32 %v1486, %v1487
        %v1489 = vsub.f32 %v1483, %v1488
        %v1490 = vmul.f32 %v1489, %v1489
        %v1491 = vsel %vm913, %v1490, 0.0
        %1492 = vadd.xlane.f32.xlu0 %v1491
        %v1493 = vpop.xlane.xlu0 %1492
        %v1494 = vmul.f32 %v1493, %v1487
        %v1495 = vadd.f32 %v1494, 1e-05
        %v1496 = vrsqrt.pop %v1495
        %v1497 = vmul.f32 %v1489, %v1496
        %v1498 = vld [vmem:[#allocation10] sm:$0x1]
        %v1500 = vlaneseq
        %v1501 = vshrl.u32 %v1500, 7
        %v1502 = vsub.s32 0, %v1501
        %v1503 = vrot.slane %v1498, %v1502
        %v1505 = vmul.f32 %v1497, %v1503
        %v1506 = vld [vmem:[#allocation11] sm:$0x1]
        %v1508 = vlaneseq
        %v1509 = vshrl.u32 %v1508, 7
        %v1510 = vsub.s32 0, %v1509
        %v1511 = vrot.slane %v1506, %v1510
        %v1513 = vadd.f32 %v1505, %v1511
        %v1514 = vld [vmem:[%s8] sm:$0xf]
        %v1515 = vld [vmem:[%s8 + $0x4] sm:$0xf]
        %v1516 = vld [vmem:[%s8 + $0x8] sm:$0xf]
        %v1517 = vld [vmem:[%s8 + $0xc] sm:$0xf]
        %v1518 = vpack.c.bf16 %v1513, %v1513
        %v1519 = vld [vmem:[#allocation13] sm:$0x1]
        %v1521 = vlaneseq
        %v1522 = vshrl.u32 %v1521, 7
        %v1523 = vsub.s32 0, %v1522
        %v1524 = vrot.slane %v1519, %v1523
        %v1530 = vunpack.c.l.b16 %v1514
        %v1531 = vunpack.c.l.b16 %v1515
        %v1532 = vunpack.c.l.b16 %v1516
        %v1533 = vunpack.c.l.b16 %v1517
        %v1534 = vpack.c.b16 %v1531, %v1530
        %v1535 = vpack.c.b16 %v1533, %v1532
        %v1539 = vsel %vm913, %v1518, 0
        %1541 = vmatprep.subr.bf16.mxu0 0
        %1542 = vmatpush1.bf16.msra.mxu0 0
        %1543 = vmatprep.subr.bf16.mxu0 0
        %1544 = vmatpush1.bf16.msra.mxu0 0
        %1545 = vmatprep.subr.bf16.mxu0 0
        %1546 = vmatpush1.bf16.msra.mxu0 0
        %1547 = vmatprep.subr.bf16.mxu0 0
        %1548 = vmatpush1.bf16.msra.mxu0 0
        %1549 = vmatprep.subr.bf16.mxu0 0
        %1550 = vmatpush1.bf16.msra.mxu0 0
        %1551 = vmatprep.subr.bf16.mxu0 0
        %1552 = vmatpush1.bf16.msra.mxu0 0
        %1553 = vmatprep.subr.bf16.mxu0 0
        %1554 = vmatpush1.bf16.msra.mxu0 %v1535
        %1555 = vmatprep.subr.bf16.mxu0 0
        %1556 = vmatpush1.bf16.msra.mxu0 %v1534
        %1557 = vmatprep.subr.bf16.mxu0 0
        %1558 = vmatpush2.bf16.msra.mxu0 0
        %1559 = vmatprep.subr.bf16.mxu0 0
        %1560 = vmatpush2.bf16.msra.mxu0 0
        %1561 = vmatprep.subr.bf16.mxu0 0
        %1562 = vmatpush2.bf16.msra.mxu0 0
        %1563 = vmatprep.subr.bf16.mxu0 0
        %1564 = vmatpush2.bf16.msra.mxu0 0
        %1565 = vmatprep.subr.bf16.mxu0 0
        %1566 = vmatpush2.bf16.msra.mxu0 0
        %1567 = vmatprep.subr.bf16.mxu0 0
        %1568 = vmatpush2.bf16.msra.mxu0 0
        %1569 = vmatprep.subr.bf16.mxu0 0
        %1570 = vmatpush2.bf16.msra.mxu0 0
        %1571 = vmatprep.subr.bf16.mxu0 0
        %1572 = vmatpush2.bf16.msra.mxu0 0
        %1573 = vmatprep.mubr.bf16.mxu0 0
        %1574 = vmatmul.mubr.bf16.gmra.mxu0 %v1539
        %v1575 = vpop.f32.mrf.mxu0
        %v1576 = vadd.f32 %v1524, %v1575
        %v1577 = vpop.f32.mrf.mxu0
        %v1578 = vpop.f32.mrf.mxu0
        %v1579 = vpop.f32.mrf.mxu0
        %1580 = vdwg.mxu0
        %v1581 = vld [vmem:[#allocation14] sm:$0xf]
        %v1582 = vld [vmem:[#allocation14 + $0x4] sm:$0xf]
        %v1583 = vld [vmem:[#allocation14 + $0x8] sm:$0xf]
        %v1584 = vld [vmem:[#allocation14 + $0xc] sm:$0xf]
        %v1585 = vpack.c.bf16 %v888, %v887
        %v1586 = vld [vmem:[#allocation16] sm:$0x1]
        %v1588 = vlaneseq
        %v1589 = vshrl.u32 %v1588, 7
        %v1590 = vsub.s32 0, %v1589
        %v1591 = vrot.slane %v1586, %v1590
        %v1597 = vunpack.c.l.b16 %v1581
        %v1598 = vunpack.c.l.b16 %v1582
        %v1599 = vunpack.c.l.b16 %v1583
        %v1600 = vunpack.c.l.b16 %v1584
        %v1601 = vpack.c.b16 %v1598, %v1597
        %v1602 = vpack.c.b16 %v1600, %v1599
        %v1606 = vsel %vm913, %v1585, 0
        %1608 = vmatprep.subr.bf16.mxu0 0
        %1609 = vmatpush1.bf16.msra.mxu0 0
        %1610 = vmatprep.subr.bf16.mxu0 0
        %1611 = vmatpush1.bf16.msra.mxu0 0
        %1612 = vmatprep.subr.bf16.mxu0 0
        %1613 = vmatpush1.bf16.msra.mxu0 0
        %1614 = vmatprep.subr.bf16.mxu0 0
        %1615 = vmatpush1.bf16.msra.mxu0 0
        %1616 = vmatprep.subr.bf16.mxu0 0
        %1617 = vmatpush1.bf16.msra.mxu0 0
        %1618 = vmatprep.subr.bf16.mxu0 0
        %1619 = vmatpush1.bf16.msra.mxu0 0
        %1620 = vmatprep.subr.bf16.mxu0 0
        %1621 = vmatpush1.bf16.msra.mxu0 %v1602
        %1622 = vmatprep.subr.bf16.mxu0 0
        %1623 = vmatpush1.bf16.msra.mxu0 %v1601
        %1624 = vmatprep.subr.bf16.mxu0 0
        %1625 = vmatpush2.bf16.msra.mxu0 0
        %1626 = vmatprep.subr.bf16.mxu0 0
        %1627 = vmatpush2.bf16.msra.mxu0 0
        %1628 = vmatprep.subr.bf16.mxu0 0
        %1629 = vmatpush2.bf16.msra.mxu0 0
        %1630 = vmatprep.subr.bf16.mxu0 0
        %1631 = vmatpush2.bf16.msra.mxu0 0
        %1632 = vmatprep.subr.bf16.mxu0 0
        %1633 = vmatpush2.bf16.msra.mxu0 0
        %1634 = vmatprep.subr.bf16.mxu0 0
        %1635 = vmatpush2.bf16.msra.mxu0 0
        %1636 = vmatprep.subr.bf16.mxu0 0
        %1637 = vmatpush2.bf16.msra.mxu0 0
        %1638 = vmatprep.subr.bf16.mxu0 0
        %1639 = vmatpush2.bf16.msra.mxu0 0
        %1640 = vmatprep.mubr.bf16.mxu0 0
        %1641 = vmatmul.mubr.bf16.gmra.mxu0 %v1606
        %v1642 = vpop.f32.mrf.mxu0
        %v1643 = vadd.f32 %v1591, %v1642
        %v1644 = vpop.f32.mrf.mxu0
        %v1645 = vpop.f32.mrf.mxu0
        %v1646 = vadd.f32 %v1591, %v1645
        %v1647 = vpop.f32.mrf.mxu0
        %1648 = vdwg.mxu0
        %v1649 = vpack.c.bf16 %v1576, %v1576
        %v1650 = vpack.c.bf16 %v1646, %v1643
        %v1652 = vsel %vm961, %v1649, 0
        %v1655 = vsel %vm961, %v1650, 0
        %1657 = vmatprep.subr.bf16.mxu0 0
        %1658 = vmatpush1.bf16.xpose.msra.mxu0 0
        %1659 = vmatprep.subr.bf16.mxu0 0
        %1660 = vmatpush1.bf16.xpose.msra.mxu0 0
        %1661 = vmatprep.subr.bf16.mxu0 0
        %1662 = vmatpush1.bf16.xpose.msra.mxu0 0
        %1663 = vmatprep.subr.bf16.mxu0 0
        %1664 = vmatpush1.bf16.xpose.msra.mxu0 0
        %1665 = vmatprep.subr.bf16.mxu0 0
        %1666 = vmatpush1.bf16.xpose.msra.mxu0 0
        %1667 = vmatprep.subr.bf16.mxu0 0
        %1668 = vmatpush1.bf16.xpose.msra.mxu0 0
        %1669 = vmatprep.subr.bf16.mxu0 0
        %1670 = vmatpush1.bf16.xpose.msra.mxu0 0
        %1671 = vmatprep.subr.bf16.mxu0 0
        %1672 = vmatpush1.bf16.xpose.msra.mxu0 %v1655
        %1673 = vmatprep.subr.bf16.mxu0 0
        %1674 = vmatpush2.bf16.xpose.msra.mxu0 0
        %1675 = vmatprep.subr.bf16.mxu0 0
        %1676 = vmatpush2.bf16.xpose.msra.mxu0 0
        %1677 = vmatprep.subr.bf16.mxu0 0
        %1678 = vmatpush2.bf16.xpose.msra.mxu0 0
        %1679 = vmatprep.subr.bf16.mxu0 0
        %1680 = vmatpush2.bf16.xpose.msra.mxu0 0
        %1681 = vmatprep.subr.bf16.mxu0 0
        %1682 = vmatpush2.bf16.xpose.msra.mxu0 0
        %1683 = vmatprep.subr.bf16.mxu0 0
        %1684 = vmatpush2.bf16.xpose.msra.mxu0 0
        %1685 = vmatprep.subr.bf16.mxu0 0
        %1686 = vmatpush2.bf16.xpose.msra.mxu0 0
        %1687 = vmatprep.subr.bf16.mxu0 0
        %1688 = vmatpush2.bf16.xpose.msra.mxu0 0
        %1689 = vmatprep.mubr.bf16.mxu0 0
        %1690 = vmatmul.mubr.bf16.gmra.mxu0 %v1652
        %v1691 = vpop.f32.mrf.mxu0
        %v1692 = vadd.f32 0.0, %v1691
        %v1693 = vpop.f32.mrf.mxu0
        %v1694 = vpop.f32.mrf.mxu0
        %v1695 = vpop.f32.mrf.mxu0
        %1696 = vdwg.mxu0
        %v1697 = vsel %vm1412, %v1692, -inf
        %1698 = vmax.xlane.f32.xlu0 %v1697
        %v1699 = vpop.xlane.xlu0 %1698
        %v1700 = vsub.f32 %v1692, %v1699
        %v1701 = vmul.f32 %v1700, 1.442695
        %v1702 = vpow.pop %v1701
        %v1703 = vsel %vm1412, %v1702, 0.0
        %1704 = vadd.xlane.f32.xlu0 %v1703
        %v1705 = vpop.xlane.xlu0 %1704
        %v1706 = vpack.c.bf16 %v1702, %v1702
        %1708 = vrot.lane.b32.xlu0 %v1650, 96
        %v1709 = vpop.permute.xlu0 %1708
        %v1712 = vsel %vm1412, %v1706, 0
        %1714 = vmatprep.subr.bf16.mxu0 0
        %1715 = vmatpush1.bf16.msra.mxu0 0
        %1716 = vmatprep.subr.bf16.mxu0 0
        %1717 = vmatpush1.bf16.msra.mxu0 0
        %1718 = vmatprep.subr.bf16.mxu0 0
        %1719 = vmatpush1.bf16.msra.mxu0 0
        %1720 = vmatprep.subr.bf16.mxu0 0
        %1721 = vmatpush1.bf16.msra.mxu0 0
        %1722 = vmatprep.subr.bf16.mxu0 0
        %1723 = vmatpush1.bf16.msra.mxu0 0
        %1724 = vmatprep.subr.bf16.mxu0 0
        %1725 = vmatpush1.bf16.msra.mxu0 0
        %1726 = vmatprep.subr.bf16.mxu0 0
        %1727 = vmatpush1.bf16.msra.mxu0 0
        %1728 = vmatprep.subr.bf16.mxu0 0
        %1729 = vmatpush1.bf16.msra.mxu0 %v1709
        %1730 = vmatprep.subr.bf16.mxu0 0
        %1731 = vmatpush2.bf16.msra.mxu0 0
        %1732 = vmatprep.subr.bf16.mxu0 0
        %1733 = vmatpush2.bf16.msra.mxu0 0
        %1734 = vmatprep.subr.bf16.mxu0 0
        %1735 = vmatpush2.bf16.msra.mxu0 0
        %1736 = vmatprep.subr.bf16.mxu0 0
        %1737 = vmatpush2.bf16.msra.mxu0 0
        %1738 = vmatprep.subr.bf16.mxu0 0
        %1739 = vmatpush2.bf16.msra.mxu0 0
        %1740 = vmatprep.subr.bf16.mxu0 0
        %1741 = vmatpush2.bf16.msra.mxu0 0
        %1742 = vmatprep.subr.bf16.mxu0 0
        %1743 = vmatpush2.bf16.msra.mxu0 0
        %1744 = vmatprep.subr.bf16.mxu0 0
        %1745 = vmatpush2.bf16.msra.mxu0 0
        %1746 = vmatprep.mubr.bf16.mxu0 0
        %1747 = vmatmul.mubr.bf16.gmra.mxu0 %v1712
        %v1748 = vpop.f32.mrf.mxu0
        %v1749 = vadd.f32 0.0, %v1748
        %v1750 = vpop.f32.mrf.mxu0
        %v1751 = vpop.f32.mrf.mxu0
        %v1752 = vpop.f32.mrf.mxu0
        %1753 = vdwg.mxu0
        %v1754 = vrcp.pop %v1705
        %v1755 = vmul.f32 %v1749, %v1754
        %1757 = vrot.lane.b32.xlu0 %v1649, 120
        %v1758 = vpop.permute.xlu0 %1757
        %1759 = vrot.lane.b32.xlu0 %v1650, 120
        %v1760 = vpop.permute.xlu0 %1759
        %v1762 = vsel %vm961, %v1758, 0
        %v1765 = vsel %vm961, %v1760, 0
        %1767 = vmatprep.subr.bf16.mxu0 0
        %1768 = vmatpush1.bf16.xpose.msra.mxu0 0
        %1769 = vmatprep.subr.bf16.mxu0 0
        %1770 = vmatpush1.bf16.xpose.msra.mxu0 0
        %1771 = vmatprep.subr.bf16.mxu0 0
        %1772 = vmatpush1.bf16.xpose.msra.mxu0 0
        %1773 = vmatprep.subr.bf16.mxu0 0
        %1774 = vmatpush1.bf16.xpose.msra.mxu0 0
        %1775 = vmatprep.subr.bf16.mxu0 0
        %1776 = vmatpush1.bf16.xpose.msra.mxu0 0
        %1777 = vmatprep.subr.bf16.mxu0 0
        %1778 = vmatpush1.bf16.xpose.msra.mxu0 0
        %1779 = vmatprep.subr.bf16.mxu0 0
        %1780 = vmatpush1.bf16.xpose.msra.mxu0 0
        %1781 = vmatprep.subr.bf16.mxu0 0
        %1782 = vmatpush1.bf16.xpose.msra.mxu0 %v1765
        %1783 = vmatprep.subr.bf16.mxu0 0
        %1784 = vmatpush2.bf16.xpose.msra.mxu0 0
        %1785 = vmatprep.subr.bf16.mxu0 0
        %1786 = vmatpush2.bf16.xpose.msra.mxu0 0
        %1787 = vmatprep.subr.bf16.mxu0 0
        %1788 = vmatpush2.bf16.xpose.msra.mxu0 0
        %1789 = vmatprep.subr.bf16.mxu0 0
        %1790 = vmatpush2.bf16.xpose.msra.mxu0 0
        %1791 = vmatprep.subr.bf16.mxu0 0
        %1792 = vmatpush2.bf16.xpose.msra.mxu0 0
        %1793 = vmatprep.subr.bf16.mxu0 0
        %1794 = vmatpush2.bf16.xpose.msra.mxu0 0
        %1795 = vmatprep.subr.bf16.mxu0 0
        %1796 = vmatpush2.bf16.xpose.msra.mxu0 0
        %1797 = vmatprep.subr.bf16.mxu0 0
        %1798 = vmatpush2.bf16.xpose.msra.mxu0 0
        %1799 = vmatprep.mubr.bf16.mxu0 0
        %1800 = vmatmul.mubr.bf16.gmra.mxu0 %v1762
        %v1801 = vpop.f32.mrf.mxu0
        %v1802 = vadd.f32 0.0, %v1801
        %v1803 = vpop.f32.mrf.mxu0
        %v1804 = vpop.f32.mrf.mxu0
        %v1805 = vpop.f32.mrf.mxu0
        %1806 = vdwg.mxu0
        %v1807 = vsel %vm1412, %v1802, -inf
        %1808 = vmax.xlane.f32.xlu0 %v1807
        %v1809 = vpop.xlane.xlu0 %1808
        %v1810 = vsub.f32 %v1802, %v1809
        %v1811 = vmul.f32 %v1810, 1.442695
        %v1812 = vpow.pop %v1811
        %v1813 = vsel %vm1412, %v1812, 0.0
        %1814 = vadd.xlane.f32.xlu0 %v1813
        %v1815 = vpop.xlane.xlu0 %1814
        %v1816 = vpack.c.bf16 %v1812, %v1812
        %1817 = vrot.lane.b32.xlu0 %v1650, 88
        %v1818 = vpop.permute.xlu0 %1817
        %v1821 = vsel %vm1412, %v1816, 0
        %1823 = vmatprep.subr.bf16.mxu0 0
        %1824 = vmatpush1.bf16.msra.mxu0 0
        %1825 = vmatprep.subr.bf16.mxu0 0
        %1826 = vmatpush1.bf16.msra.mxu0 0
        %1827 = vmatprep.subr.bf16.mxu0 0
        %1828 = vmatpush1.bf16.msra.mxu0 0
        %1829 = vmatprep.subr.bf16.mxu0 0
        %1830 = vmatpush1.bf16.msra.mxu0 0
        %1831 = vmatprep.subr.bf16.mxu0 0
        %1832 = vmatpush1.bf16.msra.mxu0 0
        %1833 = vmatprep.subr.bf16.mxu0 0
        %1834 = vmatpush1.bf16.msra.mxu0 0
        %1835 = vmatprep.subr.bf16.mxu0 0
        %1836 = vmatpush1.bf16.msra.mxu0 0
        %1837 = vmatprep.subr.bf16.mxu0 0
        %1838 = vmatpush1.bf16.msra.mxu0 %v1818
        %1839 = vmatprep.subr.bf16.mxu0 0
        %1840 = vmatpush2.bf16.msra.mxu0 0
        %1841 = vmatprep.subr.bf16.mxu0 0
        %1842 = vmatpush2.bf16.msra.mxu0 0
        %1843 = vmatprep.subr.bf16.mxu0 0
        %1844 = vmatpush2.bf16.msra.mxu0 0
        %1845 = vmatprep.subr.bf16.mxu0 0
        %1846 = vmatpush2.bf16.msra.mxu0 0
        %1847 = vmatprep.subr.bf16.mxu0 0
        %1848 = vmatpush2.bf16.msra.mxu0 0
        %1849 = vmatprep.subr.bf16.mxu0 0
        %1850 = vmatpush2.bf16.msra.mxu0 0
        %1851 = vmatprep.subr.bf16.mxu0 0
        %1852 = vmatpush2.bf16.msra.mxu0 0
        %1853 = vmatprep.subr.bf16.mxu0 0
        %1854 = vmatpush2.bf16.msra.mxu0 0
        %1855 = vmatprep.mubr.bf16.mxu0 0
        %1856 = vmatmul.mubr.bf16.gmra.mxu0 %v1821
        %v1857 = vpop.f32.mrf.mxu0
        %v1858 = vadd.f32 0.0, %v1857
        %v1859 = vpop.f32.mrf.mxu0
        %v1860 = vpop.f32.mrf.mxu0
        %v1861 = vpop.f32.mrf.mxu0
        %1862 = vdwg.mxu0
        %v1863 = vrcp.pop %v1815
        %v1864 = vmul.f32 %v1858, %v1863
        %1865 = vrot.lane.b32.xlu0 %v1649, 112
        %v1866 = vpop.permute.xlu0 %1865
        %1867 = vrot.lane.b32.xlu0 %v1650, 112
        %v1868 = vpop.permute.xlu0 %1867
        %v1870 = vsel %vm961, %v1866, 0
        %v1873 = vsel %vm961, %v1868, 0
        %1875 = vmatprep.subr.bf16.mxu0 0
        %1876 = vmatpush1.bf16.xpose.msra.mxu0 0
        %1877 = vmatprep.subr.bf16.mxu0 0
        %1878 = vmatpush1.bf16.xpose.msra.mxu0 0
        %1879 = vmatprep.subr.bf16.mxu0 0
        %1880 = vmatpush1.bf16.xpose.msra.mxu0 0
        %1881 = vmatprep.subr.bf16.mxu0 0
        %1882 = vmatpush1.bf16.xpose.msra.mxu0 0
        %1883 = vmatprep.subr.bf16.mxu0 0
        %1884 = vmatpush1.bf16.xpose.msra.mxu0 0
        %1885 = vmatprep.subr.bf16.mxu0 0
        %1886 = vmatpush1.bf16.xpose.msra.mxu0 0
        %1887 = vmatprep.subr.bf16.mxu0 0
        %1888 = vmatpush1.bf16.xpose.msra.mxu0 0
        %1889 = vmatprep.subr.bf16.mxu0 0
        %1890 = vmatpush1.bf16.xpose.msra.mxu0 %v1873
        %1891 = vmatprep.subr.bf16.mxu0 0
        %1892 = vmatpush2.bf16.xpose.msra.mxu0 0
        %1893 = vmatprep.subr.bf16.mxu0 0
        %1894 = vmatpush2.bf16.xpose.msra.mxu0 0
        %1895 = vmatprep.subr.bf16.mxu0 0
        %1896 = vmatpush2.bf16.xpose.msra.mxu0 0
        %1897 = vmatprep.subr.bf16.mxu0 0
        %1898 = vmatpush2.bf16.xpose.msra.mxu0 0
        %1899 = vmatprep.subr.bf16.mxu0 0
        %1900 = vmatpush2.bf16.xpose.msra.mxu0 0
        %1901 = vmatprep.subr.bf16.mxu0 0
        %1902 = vmatpush2.bf16.xpose.msra.mxu0 0
        %1903 = vmatprep.subr.bf16.mxu0 0
        %1904 = vmatpush2.bf16.xpose.msra.mxu0 0
        %1905 = vmatprep.subr.bf16.mxu0 0
        %1906 = vmatpush2.bf16.xpose.msra.mxu0 0
        %1907 = vmatprep.mubr.bf16.mxu0 0
        %1908 = vmatmul.mubr.bf16.gmra.mxu0 %v1870
        %v1909 = vpop.f32.mrf.mxu0
        %v1910 = vadd.f32 0.0, %v1909
        %v1911 = vpop.f32.mrf.mxu0
        %v1912 = vpop.f32.mrf.mxu0
        %v1913 = vpop.f32.mrf.mxu0
        %1914 = vdwg.mxu0
        %v1915 = vsel %vm1412, %v1910, -inf
        %1916 = vmax.xlane.f32.xlu0 %v1915
        %v1917 = vpop.xlane.xlu0 %1916
        %v1918 = vsub.f32 %v1910, %v1917
        %v1919 = vmul.f32 %v1918, 1.442695
        %v1920 = vpow.pop %v1919
        %v1921 = vsel %vm1412, %v1920, 0.0
        %1922 = vadd.xlane.f32.xlu0 %v1921
        %v1923 = vpop.xlane.xlu0 %1922
        %v1924 = vpack.c.bf16 %v1920, %v1920
        %1925 = vrot.lane.b32.xlu0 %v1650, 80
        %v1926 = vpop.permute.xlu0 %1925
        %v1929 = vsel %vm1412, %v1924, 0
        %1931 = vmatprep.subr.bf16.mxu0 0
        %1932 = vmatpush1.bf16.msra.mxu0 0
        %1933 = vmatprep.subr.bf16.mxu0 0
        %1934 = vmatpush1.bf16.msra.mxu0 0
        %1935 = vmatprep.subr.bf16.mxu0 0
        %1936 = vmatpush1.bf16.msra.mxu0 0
        %1937 = vmatprep.subr.bf16.mxu0 0
        %1938 = vmatpush1.bf16.msra.mxu0 0
        %1939 = vmatprep.subr.bf16.mxu0 0
        %1940 = vmatpush1.bf16.msra.mxu0 0
        %1941 = vmatprep.subr.bf16.mxu0 0
        %1942 = vmatpush1.bf16.msra.mxu0 0
        %1943 = vmatprep.subr.bf16.mxu0 0
        %1944 = vmatpush1.bf16.msra.mxu0 0
        %1945 = vmatprep.subr.bf16.mxu0 0
        %1946 = vmatpush1.bf16.msra.mxu0 %v1926
        %1947 = vmatprep.subr.bf16.mxu0 0
        %1948 = vmatpush2.bf16.msra.mxu0 0
        %1949 = vmatprep.subr.bf16.mxu0 0
        %1950 = vmatpush2.bf16.msra.mxu0 0
        %1951 = vmatprep.subr.bf16.mxu0 0
        %1952 = vmatpush2.bf16.msra.mxu0 0
        %1953 = vmatprep.subr.bf16.mxu0 0
        %1954 = vmatpush2.bf16.msra.mxu0 0
        %1955 = vmatprep.subr.bf16.mxu0 0
        %1956 = vmatpush2.bf16.msra.mxu0 0
        %1957 = vmatprep.subr.bf16.mxu0 0
        %1958 = vmatpush2.bf16.msra.mxu0 0
        %1959 = vmatprep.subr.bf16.mxu0 0
        %1960 = vmatpush2.bf16.msra.mxu0 0
        %1961 = vmatprep.subr.bf16.mxu0 0
        %1962 = vmatpush2.bf16.msra.mxu0 0
        %1963 = vmatprep.mubr.bf16.mxu0 0
        %1964 = vmatmul.mubr.bf16.gmra.mxu0 %v1929
        %v1965 = vpop.f32.mrf.mxu0
        %v1966 = vadd.f32 0.0, %v1965
        %v1967 = vpop.f32.mrf.mxu0
        %v1968 = vpop.f32.mrf.mxu0
        %v1969 = vpop.f32.mrf.mxu0
        %1970 = vdwg.mxu0
        %v1971 = vrcp.pop %v1923
        %v1972 = vmul.f32 %v1966, %v1971
        %1973 = vrot.lane.b32.xlu0 %v1649, 104
        %v1974 = vpop.permute.xlu0 %1973
        %1975 = vrot.lane.b32.xlu0 %v1650, 104
        %v1976 = vpop.permute.xlu0 %1975
        %v1978 = vsel %vm961, %v1974, 0
        %v1981 = vsel %vm961, %v1976, 0
        %1983 = vmatprep.subr.bf16.mxu0 0
        %1984 = vmatpush1.bf16.xpose.msra.mxu0 0
        %1985 = vmatprep.subr.bf16.mxu0 0
        %1986 = vmatpush1.bf16.xpose.msra.mxu0 0
        %1987 = vmatprep.subr.bf16.mxu0 0
        %1988 = vmatpush1.bf16.xpose.msra.mxu0 0
        %1989 = vmatprep.subr.bf16.mxu0 0
        %1990 = vmatpush1.bf16.xpose.msra.mxu0 0
        %1991 = vmatprep.subr.bf16.mxu0 0
        %1992 = vmatpush1.bf16.xpose.msra.mxu0 0
        %1993 = vmatprep.subr.bf16.mxu0 0
        %1994 = vmatpush1.bf16.xpose.msra.mxu0 0
        %1995 = vmatprep.subr.bf16.mxu0 0
        %1996 = vmatpush1.bf16.xpose.msra.mxu0 0
        %1997 = vmatprep.subr.bf16.mxu0 0
        %1998 = vmatpush1.bf16.xpose.msra.mxu0 %v1981
        %1999 = vmatprep.subr.bf16.mxu0 0
        %2000 = vmatpush2.bf16.xpose.msra.mxu0 0
        %2001 = vmatprep.subr.bf16.mxu0 0
        %2002 = vmatpush2.bf16.xpose.msra.mxu0 0
        %2003 = vmatprep.subr.bf16.mxu0 0
        %2004 = vmatpush2.bf16.xpose.msra.mxu0 0
        %2005 = vmatprep.subr.bf16.mxu0 0
        %2006 = vmatpush2.bf16.xpose.msra.mxu0 0
        %2007 = vmatprep.subr.bf16.mxu0 0
        %2008 = vmatpush2.bf16.xpose.msra.mxu0 0
        %2009 = vmatprep.subr.bf16.mxu0 0
        %2010 = vmatpush2.bf16.xpose.msra.mxu0 0
        %2011 = vmatprep.subr.bf16.mxu0 0
        %2012 = vmatpush2.bf16.xpose.msra.mxu0 0
        %2013 = vmatprep.subr.bf16.mxu0 0
        %2014 = vmatpush2.bf16.xpose.msra.mxu0 0
        %2015 = vmatprep.mubr.bf16.mxu0 0
        %2016 = vmatmul.mubr.bf16.gmra.mxu0 %v1978
        %v2017 = vpop.f32.mrf.mxu0
        %v2018 = vadd.f32 0.0, %v2017
        %v2019 = vpop.f32.mrf.mxu0
        %v2020 = vpop.f32.mrf.mxu0
        %v2021 = vpop.f32.mrf.mxu0
        %2022 = vdwg.mxu0
        %v2023 = vsel %vm1412, %v2018, -inf
        %2024 = vmax.xlane.f32.xlu0 %v2023
        %v2025 = vpop.xlane.xlu0 %2024
        %v2026 = vsub.f32 %v2018, %v2025
        %v2027 = vmul.f32 %v2026, 1.442695
        %v2028 = vpow.pop %v2027
        %v2029 = vsel %vm1412, %v2028, 0.0
        %2030 = vadd.xlane.f32.xlu0 %v2029
        %v2031 = vpop.xlane.xlu0 %2030
        %v2032 = vpack.c.bf16 %v2028, %v2028
        %2033 = vrot.lane.b32.xlu0 %v1650, 72
        %v2034 = vpop.permute.xlu0 %2033
        %v2037 = vsel %vm1412, %v2032, 0
        %2039 = vmatprep.subr.bf16.mxu0 0
        %2040 = vmatpush1.bf16.msra.mxu0 0
        %2041 = vmatprep.subr.bf16.mxu0 0
        %2042 = vmatpush1.bf16.msra.mxu0 0
        %2043 = vmatprep.subr.bf16.mxu0 0
        %2044 = vmatpush1.bf16.msra.mxu0 0
        %2045 = vmatprep.subr.bf16.mxu0 0
        %2046 = vmatpush1.bf16.msra.mxu0 0
        %2047 = vmatprep.subr.bf16.mxu0 0
        %2048 = vmatpush1.bf16.msra.mxu0 0
        %2049 = vmatprep.subr.bf16.mxu0 0
        %2050 = vmatpush1.bf16.msra.mxu0 0
        %2051 = vmatprep.subr.bf16.mxu0 0
        %2052 = vmatpush1.bf16.msra.mxu0 0
        %2053 = vmatprep.subr.bf16.mxu0 0
        %2054 = vmatpush1.bf16.msra.mxu0 %v2034
        %2055 = vmatprep.subr.bf16.mxu0 0
        %2056 = vmatpush2.bf16.msra.mxu0 0
        %2057 = vmatprep.subr.bf16.mxu0 0
        %2058 = vmatpush2.bf16.msra.mxu0 0
        %2059 = vmatprep.subr.bf16.mxu0 0
        %2060 = vmatpush2.bf16.msra.mxu0 0
        %2061 = vmatprep.subr.bf16.mxu0 0
        %2062 = vmatpush2.bf16.msra.mxu0 0
        %2063 = vmatprep.subr.bf16.mxu0 0
        %2064 = vmatpush2.bf16.msra.mxu0 0
        %2065 = vmatprep.subr.bf16.mxu0 0
        %2066 = vmatpush2.bf16.msra.mxu0 0
        %2067 = vmatprep.subr.bf16.mxu0 0
        %2068 = vmatpush2.bf16.msra.mxu0 0
        %2069 = vmatprep.subr.bf16.mxu0 0
        %2070 = vmatpush2.bf16.msra.mxu0 0
        %2071 = vmatprep.mubr.bf16.mxu0 0
        %2072 = vmatmul.mubr.bf16.gmra.mxu0 %v2037
        %v2073 = vpop.f32.mrf.mxu0
        %v2074 = vadd.f32 0.0, %v2073
        %v2075 = vpop.f32.mrf.mxu0
        %v2076 = vpop.f32.mrf.mxu0
        %v2077 = vpop.f32.mrf.mxu0
        %2078 = vdwg.mxu0
        %v2079 = vrcp.pop %v2031
        %v2080 = vmul.f32 %v2074, %v2079
        %2082 = vrot.lane.b32.xlu0 %v1864, 8
        %v2083 = vpop.permute.xlu0 %2082
        %2086 = vrot.lane.b32.xlu0 %v1972, 16
        %v2087 = vpop.permute.xlu0 %2086
        %2090 = vrot.lane.b32.xlu0 %v2080, 24
        %v2091 = vpop.permute.xlu0 %2090
        %v2093 = vsel %vm961, %v1755, %v2083
        %v2094 = vsel %vm1412, %v2093, %v2087
        %v2095 = vsel %vm1414, %v2094, %v2091
        %v2096 = vld [vmem:[#allocation17] sm:$0xf]
        %v2097 = vld [vmem:[#allocation17 + $0x4] sm:$0xf]
        %v2098 = vld [vmem:[#allocation17 + $0x8] sm:$0xf]
        %v2099 = vld [vmem:[#allocation17 + $0xc] sm:$0xf]
        %v2100 = vpack.c.bf16 %v2095, %v2095
        %v2101 = vld [vmem:[#allocation19] sm:$0x1]
        %v2103 = vlaneseq
        %v2104 = vshrl.u32 %v2103, 7
        %v2105 = vsub.s32 0, %v2104
        %v2106 = vrot.slane %v2101, %v2105
        %v2112 = vunpack.c.l.b16 %v2096
        %v2113 = vunpack.c.l.b16 %v2097
        %v2114 = vunpack.c.l.b16 %v2098
        %v2115 = vunpack.c.l.b16 %v2099
        %v2116 = vpack.c.b16 %v2113, %v2112
        %v2117 = vpack.c.b16 %v2115, %v2114
        %v2121 = vsel %vm913, %v2100, 0
        %2123 = vmatprep.subr.bf16.mxu0 0
        %2124 = vmatpush1.bf16.msra.mxu0 0
        %2125 = vmatprep.subr.bf16.mxu0 0
        %2126 = vmatpush1.bf16.msra.mxu0 0
        %2127 = vmatprep.subr.bf16.mxu0 0
        %2128 = vmatpush1.bf16.msra.mxu0 0
        %2129 = vmatprep.subr.bf16.mxu0 0
        %2130 = vmatpush1.bf16.msra.mxu0 0
        %2131 = vmatprep.subr.bf16.mxu0 0
        %2132 = vmatpush1.bf16.msra.mxu0 0
        %2133 = vmatprep.subr.bf16.mxu0 0
        %2134 = vmatpush1.bf16.msra.mxu0 0
        %2135 = vmatprep.subr.bf16.mxu0 0
        %2136 = vmatpush1.bf16.msra.mxu0 %v2117
        %2137 = vmatprep.subr.bf16.mxu0 0
        %2138 = vmatpush1.bf16.msra.mxu0 %v2116
        %2139 = vmatprep.subr.bf16.mxu0 0
        %2140 = vmatpush2.bf16.msra.mxu0 0
        %2141 = vmatprep.subr.bf16.mxu0 0
        %2142 = vmatpush2.bf16.msra.mxu0 0
        %2143 = vmatprep.subr.bf16.mxu0 0
        %2144 = vmatpush2.bf16.msra.mxu0 0
        %2145 = vmatprep.subr.bf16.mxu0 0
        %2146 = vmatpush2.bf16.msra.mxu0 0
        %2147 = vmatprep.subr.bf16.mxu0 0
        %2148 = vmatpush2.bf16.msra.mxu0 0
        %2149 = vmatprep.subr.bf16.mxu0 0
        %2150 = vmatpush2.bf16.msra.mxu0 0
        %2151 = vmatprep.subr.bf16.mxu0 0
        %2152 = vmatpush2.bf16.msra.mxu0 0
        %2153 = vmatprep.subr.bf16.mxu0 0
        %2154 = vmatpush2.bf16.msra.mxu0 0
        %2155 = vmatprep.mubr.bf16.mxu0 0
        %2156 = vmatmul.mubr.bf16.gmra.mxu0 %v2121
        %v2157 = vpop.f32.mrf.mxu0
        %v2158 = vadd.f32 %v2106, %v2157
        %v2159 = vpop.f32.mrf.mxu0
        %v2160 = vpop.f32.mrf.mxu0
        %v2161 = vpop.f32.mrf.mxu0
        %2162 = vdwg.mxu0
        %v2163 = vadd.f32 %v1513, %v2158
        %v2164 = vsel %vm913, %v2163, 0.0
        %2165 = vadd.xlane.f32.xlu0 %v2164
        %v2166 = vpop.xlane.xlu0 %2165
        %v2167 = vmul.f32 %v2166, %v1487
        %v2168 = vsub.f32 %v2163, %v2167
        %v2169 = vmul.f32 %v2168, %v2168
        %v2170 = vsel %vm913, %v2169, 0.0
        %2171 = vadd.xlane.f32.xlu0 %v2170
        %v2172 = vpop.xlane.xlu0 %2171
        %v2173 = vmul.f32 %v2172, %v1487
        %v2174 = vadd.f32 %v2173, 1e-05
        %v2175 = vrsqrt.pop %v2174
        %v2176 = vmul.f32 %v2168, %v2175
        %v2177 = vld [vmem:[#allocation20] sm:$0x1]
        %v2179 = vlaneseq
        %v2180 = vshrl.u32 %v2179, 7
        %v2181 = vsub.s32 0, %v2180
        %v2182 = vrot.slane %v2177, %v2181
        %v2184 = vmul.f32 %v2176, %v2182
        %v2185 = vld [vmem:[#allocation22] sm:$0x1]
        %v2187 = vlaneseq
        %v2188 = vshrl.u32 %v2187, 7
        %v2189 = vsub.s32 0, %v2188
        %v2190 = vrot.slane %v2185, %v2189
        %v2192 = vadd.f32 %v2184, %v2190
        %v2193 = vld [vmem:[#allocation23] sm:$0xf]
        %v2194 = vld [vmem:[#allocation23 + $0x4] sm:$0xf]
        %v2195 = vld [vmem:[#allocation23 + $0x8] sm:$0xf]
        %v2196 = vld [vmem:[#allocation23 + $0xc] sm:$0xf]
        %v2197 = vpack.c.bf16 %v2192, %v2192
        %v2198 = vld [vmem:[%s17] sm:$0x1]
        %v2200 = vlaneseq
        %v2201 = vshrl.u32 %v2200, 7
        %v2202 = vsub.s32 0, %v2201
        %v2203 = vrot.slane %v2198, %v2202
        %v2209 = vunpack.c.l.b16 %v2193
        %v2210 = vunpack.c.l.b16 %v2194
        %v2211 = vunpack.c.l.b16 %v2195
        %v2212 = vunpack.c.l.b16 %v2196
        %v2213 = vpack.c.b16 %v2210, %v2209
        %v2214 = vpack.c.b16 %v2212, %v2211
        %v2218 = vsel %vm913, %v2197, 0
        %2220 = vmatprep.subr.bf16.mxu0 0
        %2221 = vmatpush1.bf16.msra.mxu0 0
        %2222 = vmatprep.subr.bf16.mxu0 0
        %2223 = vmatpush1.bf16.msra.mxu0 0
        %2224 = vmatprep.subr.bf16.mxu0 0
        %2225 = vmatpush1.bf16.msra.mxu0 0
        %2226 = vmatprep.subr.bf16.mxu0 0
        %2227 = vmatpush1.bf16.msra.mxu0 0
        %2228 = vmatprep.subr.bf16.mxu0 0
        %2229 = vmatpush1.bf16.msra.mxu0 0
        %2230 = vmatprep.subr.bf16.mxu0 0
        %2231 = vmatpush1.bf16.msra.mxu0 0
        %2232 = vmatprep.subr.bf16.mxu0 0
        %2233 = vmatpush1.bf16.msra.mxu0 %v2214
        %2234 = vmatprep.subr.bf16.mxu0 0
        %2235 = vmatpush1.bf16.msra.mxu0 %v2213
        %2236 = vmatprep.subr.bf16.mxu0 0
        %2237 = vmatpush2.bf16.msra.mxu0 0
        %2238 = vmatprep.subr.bf16.mxu0 0
        %2239 = vmatpush2.bf16.msra.mxu0 0
        %2240 = vmatprep.subr.bf16.mxu0 0
        %2241 = vmatpush2.bf16.msra.mxu0 0
        %2242 = vmatprep.subr.bf16.mxu0 0
        %2243 = vmatpush2.bf16.msra.mxu0 0
        %2244 = vmatprep.subr.bf16.mxu0 0
        %2245 = vmatpush2.bf16.msra.mxu0 0
        %2246 = vmatprep.subr.bf16.mxu0 0
        %2247 = vmatpush2.bf16.msra.mxu0 0
        %2248 = vmatprep.subr.bf16.mxu0 0
        %2249 = vmatpush2.bf16.msra.mxu0 0
        %2250 = vmatprep.subr.bf16.mxu0 0
        %2251 = vmatpush2.bf16.msra.mxu0 0
        %2252 = vmatprep.mubr.bf16.mxu0 0
        %2253 = vmatmul.mubr.bf16.gmra.mxu0 %v2218
        %v2254 = vpop.f32.mrf.mxu0
        %v2255 = vadd.f32 %v2203, %v2254
        %v2256 = vpop.f32.mrf.mxu0
        %v2257 = vpop.f32.mrf.mxu0
        %v2258 = vpop.f32.mrf.mxu0
        %2259 = vdwg.mxu0
        %v2260 = vmax.f32 %v2255, 0.0
        %v2261 = vld [vmem:[%s18] sm:$0xf]
        %v2262 = vld [vmem:[%s18 + $0x4] sm:$0xf]
        %v2263 = vld [vmem:[%s18 + $0x8] sm:$0xf]
        %v2264 = vld [vmem:[%s18 + $0xc] sm:$0xf]
        %v2265 = vld [vmem:[%s18 + $0x10] sm:$0xf]
        %v2266 = vld [vmem:[%s18 + $0x14] sm:$0xf]
        %v2267 = vld [vmem:[%s18 + $0x18] sm:$0xf]
        %v2268 = vld [vmem:[%s18 + $0x1c] sm:$0xf]
        %v2269 = vpack.c.bf16 %v2260, %v2260
        %v2270 = vld [vmem:[%s19] sm:$0x1]
        %v2272 = vlaneseq
        %v2273 = vshrl.u32 %v2272, 7
        %v2274 = vsub.s32 0, %v2273
        %v2275 = vrot.slane %v2270, %v2274
        %v2285 = vunpack.c.l.b16 %v2261
        %v2286 = vunpack.c.l.b16 %v2262
        %v2287 = vunpack.c.l.b16 %v2263
        %v2288 = vunpack.c.l.b16 %v2264
        %v2289 = vunpack.c.l.b16 %v2265
        %v2290 = vunpack.c.l.b16 %v2266
        %v2291 = vunpack.c.l.b16 %v2267
        %v2292 = vunpack.c.l.b16 %v2268
        %v2293 = vpack.c.b16 %v2286, %v2285
        %v2294 = vpack.c.b16 %v2288, %v2287
        %v2295 = vpack.c.b16 %v2290, %v2289
        %v2296 = vpack.c.b16 %v2292, %v2291
        %vm2301 = vcmask 523264
        %v2303 = vsel %vm2301, %v2269, 0
        %2305 = vmatprep.subr.bf16.mxu0 0
        %2306 = vmatpush1.bf16.msra.mxu0 0
        %2307 = vmatprep.subr.bf16.mxu0 0
        %2308 = vmatpush1.bf16.msra.mxu0 0
        %2309 = vmatprep.subr.bf16.mxu0 0
        %2310 = vmatpush1.bf16.msra.mxu0 0
        %2311 = vmatprep.subr.bf16.mxu0 0
        %2312 = vmatpush1.bf16.msra.mxu0 0
        %2313 = vmatprep.subr.bf16.mxu0 0
        %2314 = vmatpush1.bf16.msra.mxu0 %v2296
        %2315 = vmatprep.subr.bf16.mxu0 0
        %2316 = vmatpush1.bf16.msra.mxu0 %v2295
        %2317 = vmatprep.subr.bf16.mxu0 0
        %2318 = vmatpush1.bf16.msra.mxu0 %v2294
        %2319 = vmatprep.subr.bf16.mxu0 0
        %2320 = vmatpush1.bf16.msra.mxu0 %v2293
        %2321 = vmatprep.subr.bf16.mxu0 0
        %2322 = vmatpush2.bf16.msra.mxu0 0
        %2323 = vmatprep.subr.bf16.mxu0 0
        %2324 = vmatpush2.bf16.msra.mxu0 0
        %2325 = vmatprep.subr.bf16.mxu0 0
        %2326 = vmatpush2.bf16.msra.mxu0 0
        %2327 = vmatprep.subr.bf16.mxu0 0
        %2328 = vmatpush2.bf16.msra.mxu0 0
        %2329 = vmatprep.subr.bf16.mxu0 0
        %2330 = vmatpush2.bf16.msra.mxu0 0
        %2331 = vmatprep.subr.bf16.mxu0 0
        %2332 = vmatpush2.bf16.msra.mxu0 0
        %2333 = vmatprep.subr.bf16.mxu0 0
        %2334 = vmatpush2.bf16.msra.mxu0 0
        %2335 = vmatprep.subr.bf16.mxu0 0
        %2336 = vmatpush2.bf16.msra.mxu0 0
        %2337 = vmatprep.mubr.bf16.mxu0 0
        %2338 = vmatmul.mubr.bf16.gmra.mxu0 %v2303
        %v2339 = vpop.f32.mrf.mxu0
        %v2340 = vadd.f32 %v2275, %v2339
        %v2341 = vpop.f32.mrf.mxu0
        %v2342 = vpop.f32.mrf.mxu0
        %v2343 = vpop.f32.mrf.mxu0
        %2344 = vdwg.mxu0
        %v2345 = vadd.f32 %v2192, %v2340
        %v2346 = vsel %vm913, %v2345, 0.0
        %2347 = vadd.xlane.f32.xlu0 %v2346
        %v2348 = vpop.xlane.xlu0 %2347
        %v2349 = vmul.f32 %v2348, %v1487
        %v2350 = vsub.f32 %v2345, %v2349
        %v2351 = vmul.f32 %v2350, %v2350
        %v2352 = vsel %vm913, %v2351, 0.0
        %2353 = vadd.xlane.f32.xlu0 %v2352
        %v2354 = vpop.xlane.xlu0 %2353
        %v2355 = vmul.f32 %v2354, %v1487
        %v2356 = vadd.f32 %v2355, 1e-05
        %v2357 = vrsqrt.pop %v2356
        %v2358 = vmul.f32 %v2350, %v2357
        %v2359 = vld [vmem:[%s20] sm:$0x1]
        %v2361 = vlaneseq
        %v2362 = vshrl.u32 %v2361, 7
        %v2363 = vsub.s32 0, %v2362
        %v2364 = vrot.slane %v2359, %v2363
        %v2366 = vmul.f32 %v2358, %v2364
        %v2367 = vld [vmem:[%s21] sm:$0x1]
        %v2369 = vlaneseq
        %v2370 = vshrl.u32 %v2369, 7
        %v2371 = vsub.s32 0, %v2370
        %v2372 = vrot.slane %v2367, %v2371
        %v2374 = vadd.f32 %v2366, %v2372
        %2375 = vst.msk [vmem:[%s875] sm:$0xff] %vm913, %v2374
        %s2376 = sand.u32 %s524, 1
        %s2377 = scalar_lea.sflag [#allocation4], %s2376
        %s2378 = sand.u32 %s524, 1
        %s2379 = smul.addr %s2378, 8
        %s2380 = scalar_lea.vmem [#allocation25], %s2379
        // Predicated region
        $region165: #{transformer_decoder_layer.1} parent=107 // pred_check
          %p2381 = pneg %p534
        $region166: #{transformer_decoder_layer.1} parent=107 // pred_check_branch
          %2383 = sbr.rel (%p2381) target = $region168
        $region167: #{transformer_decoder_layer.1} parent=107 // pred_region
          %s2385 = ssub.s32 128, 128
          %2386 = vsyncadd %s2377, %s2385
          %s2387 = smul.addr %s44, 128
          %s2388 = scalar_lea.hbm %s22, %s2387
          %s2390 = sshll.u32 %s2380, 4
          %s2391 = int_to_ptr.vmem [resolvable:$true] %s2390
          %2393 = dma.vmem_to_hbm [thread:$0]  %s2391, 128, %s2388, %s2377
        $region168: #{transformer_decoder_layer.1} parent=107 // pred_fallthru
          _
      $region108: #{transformer_decoder_layer.1} parent=5 // pred_fallthru
        _
      %p2394 = scmp.le.s32.totalorder 2, %s39
      // Predicated region
      $region169: #{transformer_decoder_layer.1} parent=5 // pred_check
        %p2395 = pneg %p2394
      $region170: #{transformer_decoder_layer.1} parent=5 // pred_check_branch
        %2397 = sbr.rel (%p2395) target = $region172
      $region171: #{transformer_decoder_layer.1} parent=5 // pred_region
        %s2398 = ssub.s32 %s39, 2
        // Predicated region
        $region173: #{transformer_decoder_layer.1} parent=171 // pred_check
          %p2399 = pneg %p540
        $region174: #{transformer_decoder_layer.1} parent=171 // pred_check_branch
          %2401 = sbr.rel (%p2399) target = $region176
        $region175: #{transformer_decoder_layer.1} parent=171 // pred_region
          %s2402 = sand.u32 %s525, 1
          %s2403 = scalar_lea.sflag [#allocation4], %s2402
          %s2404 = sand.u32 %s525, 1
          %s2405 = smul.addr %s2404, 8
          %s2406 = scalar_lea.vmem [#allocation25], %s2405
          %2407 = dma.done %s2403, 128
        $region176: #{transformer_decoder_layer.1} parent=171 // pred_fallthru
          _
      $region172: #{transformer_decoder_layer.1} parent=5 // pred_fallthru
        _
    $region6: #{transformer_decoder_layer.1} parent=1 // loop_footer
      %s43 = sadd.s32 1, %s39
    $region7: #{transformer_decoder_layer.1} parent=1 // loop_footer_branch
      %38 = sbr.rel target = $region3
    $region8: #{transformer_decoder_layer.1} parent=1 // loop_exit
      _
    %2408 = vsyncpa [#allocation3], 1
    %s2409 = scalar_lea.sflag [#allocation3], 1
    %2410 = vsyncpa %s2409, 1
    %2411 = vsyncpa [#allocation6], 1
    %2412 = vsyncpa [#allocation9], 1
    %2413 = vsyncpa [#allocation12], 1
    %2414 = vsyncpa [#allocation15], 1
    %2415 = vsyncpa [#allocation18], 1
    %2416 = vsyncpa [#allocation21], 1
    %2417 = vsyncpa [#allocation24], 1
    %2418 = vsyncpa [#allocation4], 1
    %s2419 = scalar_lea.sflag [#allocation4], 1
    %2420 = vsyncpa %s2419, 1

</llo_original>
